<compile_context>
chip_gen: v7x
topology: tpu7x:2x2x1
jax: 0.10.0
libtpu: 0.0.40
codegen_flags: <defaults>
</compile_context>

<pallas_src>
import functools

import jax
import jax.numpy as jnp
from jax.experimental import pallas as pl
from jax.experimental.pallas import tpu as pltpu

LANES = 128       # padded output-channel / intermediate lane width
K1 = 256          # core_1 contraction: 5*5 (leading) * 3*3 (spatial) = 225 -> 256
K25 = 640         # block_1 contraction: 5*5 * 5*5 = 625 -> 640
K2 = 9 * LANES    # core_2 contraction: 9 spatial taps * 128 packed lanes = 1152


def _round_up(x, m):
    return (x + m - 1) // m * m


# --------------------------- fused Pallas kernel ----------------------------

def _fused_dimnet(x1, x25, w2a, w2b, w1, bias, *, row_stride):
    """core_1+ReLU -> core_2+ReLU, and block_1, plus the BottleNeck average
    (the 0.5 is pre-folded into the weights), all in one single-step
    pallas_call.  Rows are flattened (b, h, w) with stride `row_stride`; the
    intermediate activation never leaves VMEM.

    x1   : [n_rows, 225] bf16  core_1 im2col, k = (A*5+BB)*9 + c*3+d
    x25  : [n_rows, 625] bf16  block_1 im2col, k = (A*5+BB)*25 + c*5+d
    w2a  : [256, 128]    bf16  core_1 weights, lanes = (i*3+j)*cmid + m
    w2b  : [1152, 128]   bf16  core_2 weights (x0.5), k = (c*3+d)*128 + lane
    w1   : [640, 128]    bf16  block_1 weights (x0.5)
    bias : [3, 128]      f32   rows: core_1 / core_2(x0.5) / block_1(x0.5)
    """
    S = row_stride
    n_rows = x1.shape[0]
    M_OUT = _round_up(n_rows, 8)
    M1 = _round_up(M_OUT + 2 * S + 2, 8)        # intermediate rows incl. halo

    x1p = jnp.pad(x1, ((0, M1 - n_rows), (0, K1 - x1.shape[1])))
    x25p = jnp.pad(x25, ((0, M_OUT - x25.shape[0]), (0, K25 - x25.shape[1])))

    def kernel(x1_ref, x25_ref, w2a_ref, w2b_ref, w1_ref, b_ref,
               o_ref, y_ref, lhs_ref):
        # -- DimBlock_2.core_1 (3^4, Cin=1) for all 3x3 leading output
        #    positions at once (lanes = (i, j, cmid)): ONE K=256 matmul,
        #    bias + ReLU, stored once, already cast to bf16 (the operand dtype
        #    of the next matmul). --
        y = jnp.dot(x1_ref[...], w2a_ref[...],
                    preferred_element_type=jnp.float32)
        y_ref[...] = jnp.maximum(y + b_ref[0:1, :], 0.0).astype(jnp.bfloat16)

        # -- DimBlock_1.core (5^4, no ReLU): ONE K=640 matmul (+ bias). --
        o1 = jnp.dot(x25_ref[...], w1_ref[...],
                     preferred_element_type=jnp.float32) + b_ref[2:3, :]

        # -- DimBlock_2.core_2 (3^4 over the VMEM-resident intermediate):
        #    build its im2col with 9 lane-aligned stores of row-shifted y
        #    slices, then ONE K=1152 matmul (+ bias + ReLU). --
        for c in range(3):
            for d in range(3):
                t = c * 3 + d
                lhs_ref[:, t * LANES:(t + 1) * LANES] = (
                    y_ref[pl.ds(c * S + d, M_OUT), :])
        o2 = jnp.dot(lhs_ref[...], w2b_ref[...],
                     preferred_element_type=jnp.float32) + b_ref[1:2, :]

        # -- BottleNeck: block_1 + relu(core_2); the /2 lives in the weights. --
        o_ref[...] = o1 + jnp.maximum(o2, 0.0)

    flops = 2 * (M1 * K1 * LANES + M_OUT * K25 * LANES + M_OUT * K2 * LANES)
    bytes_accessed = ((x1p.size + x25p.size + w2a.size + w2b.size + w1.size) * 2
                      + bias.size * 4 + M_OUT * LANES * 4)

    return pl.pallas_call(
        kernel,
        out_shape=jax.ShapeDtypeStruct((M_OUT, LANES), jnp.float32),
        grid=(1,),
        in_specs=[
            pl.BlockSpec((M1, K1), lambda i: (0, 0)),
            pl.BlockSpec((M_OUT, K25), lambda i: (0, 0)),
            pl.BlockSpec(w2a.shape, lambda i: (0, 0)),
            pl.BlockSpec(w2b.shape, lambda i: (0, 0)),
            pl.BlockSpec(w1.shape, lambda i: (0, 0)),
            pl.BlockSpec(bias.shape, lambda i: (0, 0)),
        ],
        out_specs=pl.BlockSpec((M_OUT, LANES), lambda i: (0, 0)),
        scratch_shapes=[pltpu.VMEM((M1, LANES), jnp.bfloat16),
                        pltpu.VMEM((M_OUT, K2), jnp.bfloat16)],
        compiler_params=pltpu.CompilerParams(
            dimension_semantics=("arbitrary",)),
        cost_estimate=pl.CostEstimate(flops=flops, transcendentals=0,
                                      bytes_accessed=bytes_accessed),
    )(x1p, x25p, w2a, w2b, w1, bias)


# ------------------------- parameter setup (hoisted) ------------------------

def init_conv_params(key, cout, cin, k):
    kw, kb = jax.random.split(key)
    fan_in = cin * k ** 4
    bound = 1.0 / (fan_in ** 0.5)
    w = jax.random.uniform(kw, (cout, cin, k, k, k, k), jnp.float32, -bound, bound)
    b = jax.random.uniform(kb, (cout,), jnp.float32, -bound, bound)
    return w, b


def prepare_params(raw, upscale_factor):
    """Repack conv weights ONCE into MXU-friendly [K, N] bf16 matrices whose K
    ordering matches the wrapper-side im2col, with the BottleNeck *0.5 folded
    into block_1 / core_2.  Hoisted out of the forward."""
    u = upscale_factor
    cmid = u * 5
    cout = u * u * 25
    assert 9 * cmid <= LANES and cout <= LANES     # caps upscale_factor at 2
    w1, b1 = raw["block1"]               # [cout, 1, 5,5,5,5]
    w2a, b2a = raw["block2_core1"]       # [cmid, 1, 3,3,3,3]
    w2b, b2b = raw["block2_core2"]       # [cout, cmid, 3,3,3,3]

    # core_1: W2A[(A*5+BB)*9 + c*3+d, (i*3+j)*cmid+m] = w2a[m, 0, A-i, BB-j, c, d]
    w2a_k = jnp.transpose(w2a[:, 0], (1, 2, 3, 4, 0))          # [a, bb, c, d, m]
    big = jnp.zeros((5, 5, 3, 3, 3, 3, cmid), jnp.float32)     # [A,BB,c,d,i,j,m]
    for i in range(3):
        for j in range(3):
            big = big.at[i:i + 3, j:j + 3, :, :, i, j, :].set(w2a_k)
    W2A = jnp.pad(big.reshape(225, 9 * cmid),
                  ((0, K1 - 225), (0, LANES - 9 * cmid)))

    # core_2 (x0.5): W2B[(c*3+d)*128 + (a*3+bb)*cmid+m, co] = w2b[co,m,a,bb,c,d]/2
    w2b_t = jnp.transpose(w2b, (4, 5, 2, 3, 1, 0)).reshape(9, 9 * cmid, cout)
    W2B = jnp.pad(0.5 * w2b_t,
                  ((0, 0), (0, LANES - 9 * cmid), (0, LANES - cout)))
    W2B = W2B.reshape(K2, LANES)

    # block_1 (x0.5): W1[(A*5+BB)*25 + c*5+d, co] = w1[co, 0, A, BB, c, d] / 2
    w1_t = jnp.transpose(w1[:, 0], (1, 2, 3, 4, 0)).reshape(625, cout)
    W1 = jnp.pad(0.5 * w1_t, ((0, K25 - 625), (0, LANES - cout)))

    bias = jnp.stack([
        jnp.pad(jnp.tile(b2a, 9), (0, LANES - 9 * cmid)),       # core_1
        jnp.pad(0.5 * b2b, (0, LANES - cout)),                  # core_2 (x0.5)
        jnp.pad(0.5 * b1, (0, LANES - cout)),                   # block_1 (x0.5)
    ]).astype(jnp.float32)

    return {"W2A": W2A.astype(jnp.bfloat16),
            "W2B": W2B.astype(jnp.bfloat16),
            "W1": W1.astype(jnp.bfloat16),
            "bias": bias}


# ------------------------------- JAX glue -----------------------------------

def pixel_shuffle(x, u):
    B, C, H, W = x.shape
    co = C // (u * u)
    x = x.reshape(B, co, u, u, H, W)
    x = jnp.transpose(x, (0, 1, 4, 2, 5, 3))
    return x.reshape(B, co, H * u, W * u)


def dimnet_forward(pic, prepped, upscale_factor):
    u = upscale_factor
    cout = u * u * 25
    B, D1, D2, H, W = pic.shape
    assert D1 >= 5 and D2 >= 5
    RH, RW = H + 2, W + 2           # row-grid spatial extent (= core_1 output)

    # --- Padder: pad the last two dims by 2 on each side with 0.5 ---
    x = jnp.pad(pic, ((0, 0), (0, 0), (0, 0), (2, 2), (2, 2)),
                constant_values=0.5)
    # ReconBlock only reads leading output position (0, 0), so only the
    # leading 5x5 window of the (padded) input is ever needed.
    xw = x[:, :5, :5]                                   # [B, 5, 5, H+4, W+4]

    # im2col for core_1 (3^4): rows = (b, h', w') on the (RH, RW) grid,
    # k = (A*5+BB)*9 + c*3+d (full leading 5x5 window, 3x3 spatial tap).
    c1 = [xw[:, :, :, c:c + RH, d:d + RW] for c in range(3) for d in range(3)]
    x1 = jnp.stack(c1, axis=-1)                          # [B,5,5,RH,RW,9]
    x1 = jnp.transpose(x1, (0, 3, 4, 1, 2, 5)).reshape(B * RH * RW, 225)

    # im2col for block_1 (5^4): k = (A*5+BB)*25 + c*5+d; valid only at h < H,
    # w < W, zero-padded elsewhere so it shares the same row grid.
    c2 = [xw[:, :, :, c:c + H, d:d + W] for c in range(5) for d in range(5)]
    x25 = jnp.stack(c2, axis=-1)                         # [B,5,5,H,W,25]
    x25 = jnp.transpose(x25, (0, 3, 4, 1, 2, 5)).reshape(B, H, W, 625)
    x25 = jnp.pad(x25, ((0, 0), (0, RH - H), (0, RW - W), (0, 0)))
    x25 = x25.reshape(B * RH * RW, 625)

    out = _fused_dimnet(x1.astype(jnp.bfloat16), x25.astype(jnp.bfloat16),
                        prepped["W2A"], prepped["W2B"], prepped["W1"],
                        prepped["bias"], row_stride=RW)

    # --- ReconBlock: valid rows/lanes, NCHW, pixel-shuffle, 5x5 channel grid ---
    y = out[:B * RH * RW].reshape(B, RH, RW, LANES)[:, :H, :W, :cout]
    y = jnp.transpose(y, (0, 3, 1, 2))                   # [B, cout, H, W]
    up = pixel_shuffle(y, u)                             # [B, 25, H*u, W*u]
    return up.reshape(B, 5, 5, H * u, W * u)


# --------------------------- pure-JAX reference ------------------------------

def _conv4d_ref(x, w, b):
    """Valid 4D convolution (convNd, stride=1, padding=0); matmul operands are
    rounded to bf16 to mirror the kernel's MXU inputs (f32 accumulation)."""
    k = w.shape[-1]
    B, cin = x.shape[:2]
    sp = x.shape[2:]
    osp = tuple(s - k + 1 for s in sp)
    cols = []
    for a in range(k):
        for bb in range(k):
            for c in range(k):
                for d in range(k):
                    cols.append(x[:, :, a:a + osp[0], bb:bb + osp[1],
                                  c:c + osp[2], d:d + osp[3]])
    p = jnp.stack(cols, axis=2).reshape(B, cin * k ** 4, *osp)
    p = jnp.moveaxis(p, 1, -1).reshape(-1, cin * k ** 4)
    wm = w.reshape(w.shape[0], -1).T
    f = lambda t: t.astype(jnp.bfloat16).astype(jnp.float32)
    y = f(p) @ f(wm) + b
    return jnp.moveaxis(y.reshape(B, *osp, w.shape[0]), -1, 1)


def dimnet_reference(pic, raw, upscale_factor):
    u = upscale_factor
    x = jnp.pad(pic, ((0, 0), (0, 0), (0, 0), (2, 2), (2, 2)),
                constant_values=0.5)
    x6 = x[:, None]
    w1, b1 = raw["block1"]
    w2a, b2a = raw["block2_core1"]
    w2b, b2b = raw["block2_core2"]
    y1 = _conv4d_ref(x6, w1, b1)                              # DimBlock_1 (no ReLU)
    h = jnp.maximum(_conv4d_ref(x6, w2a, b2a), 0.0)           # core_1 + ReLU
    y2 = jnp.maximum(_conv4d_ref(h, w2b, b2b), 0.0)           # core_2 + ReLU
    y = (y1 + y2) * 0.5                                       # BottleNeck
    sl = y[:, :, 0, 0]                                        # ReconBlock
    up = pixel_shuffle(sl, u)
    return up.reshape(up.shape[0], 5, 5, up.shape[2], up.shape[3])


# ---------------------------------- main -------------------------------------

if __name__ == "__main__":
    upscale_factor = 2
    B, D1, D2, H, W = 2, 5, 5, 8, 8     # D1, D2 >= 5 required by the 5^4 kernel

    key = jax.random.PRNGKey(0)
    k_x, k_b1, k_b2a, k_b2b = jax.random.split(key, 4)
    pic = jax.random.uniform(k_x, (B, D1, D2, H, W), jnp.float32)

    raw_params = {
        # DimBlock_1.core: in=1, out=u^2*25, kernel 5^4
        "block1": init_conv_params(k_b1, upscale_factor ** 2 * 25, 1, 5),
        # DimBlock_2.core_1: in=1, out=u*5, kernel 3^4
        "block2_core1": init_conv_params(k_b2a, upscale_factor * 5, 1, 3),
        # DimBlock_2.core_2: in=u*5, out=u^2*25, kernel 3^4
        "block2_core2": init_conv_params(k_b2b, upscale_factor ** 2 * 25,
                                         upscale_factor * 5, 3),
    }

    prepped = prepare_params(raw_params, upscale_factor)   # hoisted repacking

    fwd = jax.jit(functools.partial(dimnet_forward,
                                    upscale_factor=upscale_factor))
    out = jax.block_until_ready(fwd(pic, prepped))

    assert out.shape == (B, 5, 5, H * upscale_factor, W * upscale_factor), out.shape
    assert out.dtype == jnp.float32

    # Numerical sanity check against a pure-JAX reference that uses the same
    # bf16 matmul operands (f32 accumulation) -> differences are only f32
    # summation order, so a loose tolerance is very safe.
    ref = jax.block_until_ready(
        jax.jit(functools.partial(dimnet_reference,
                                  upscale_factor=upscale_factor))(pic, raw_params))
    err = float(jnp.max(jnp.abs(out - ref)))
    assert err < 1e-2, f"max abs err vs reference: {err}"

    print("KERNEL_OK")
</pallas_src>

<mosaic_0001>
module attributes {stable_mosaic.version = 11 : i64} {
  func.func @kernel(%arg0: i32, %arg1: memref<224x256xbf16, #tpu.memory_space<vmem>>, %arg2: memref<200x640xbf16, #tpu.memory_space<vmem>>, %arg3: memref<256x128xbf16, #tpu.memory_space<vmem>>, %arg4: memref<1152x128xbf16, #tpu.memory_space<vmem>>, %arg5: memref<640x128xbf16, #tpu.memory_space<vmem>>, %arg6: memref<3x128xf32, #tpu.memory_space<vmem>>, %arg7: memref<200x128xf32, #tpu.memory_space<vmem>>, %arg8: memref<224x128xbf16, #tpu.memory_space<vmem>>, %arg9: memref<200x1152xbf16, #tpu.memory_space<vmem>>) attributes {dimension_semantics = [#tpu.dimension_semantics<arbitrary>], iteration_bounds = array<i64: 1>, scalar_prefetch = 0 : i64, scratch_operands = 2 : i64, tpu.core_type = #tpu.core_type<tc>, window_params = [{pipeline_mode = #tpu.pipeline_mode<synchronous>, transform_indices = @transform_0, window_bounds = array<i64: 224, 256>}, {pipeline_mode = #tpu.pipeline_mode<synchronous>, transform_indices = @transform_1, window_bounds = array<i64: 200, 640>}, {pipeline_mode = #tpu.pipeline_mode<synchronous>, transform_indices = @transform_2, window_bounds = array<i64: 256, 128>}, {pipeline_mode = #tpu.pipeline_mode<synchronous>, transform_indices = @transform_3, window_bounds = array<i64: 1152, 128>}, {pipeline_mode = #tpu.pipeline_mode<synchronous>, transform_indices = @transform_4, window_bounds = array<i64: 640, 128>}, {pipeline_mode = #tpu.pipeline_mode<synchronous>, transform_indices = @transform_5, window_bounds = array<i64: 3, 128>}, {pipeline_mode = #tpu.pipeline_mode<synchronous>, transform_indices = @transform_6, window_bounds = array<i64: 200, 128>}]} {
    %c0 = arith.constant 0 : index
    %c0_0 = arith.constant 0 : index
    %0 = vector.load %arg1[%c0, %c0_0] : memref<224x256xbf16, #tpu.memory_space<vmem>>, vector<224x256xbf16>
    %c0_1 = arith.constant 0 : index
    %c0_2 = arith.constant 0 : index
    %1 = vector.load %arg3[%c0_1, %c0_2] : memref<256x128xbf16, #tpu.memory_space<vmem>>, vector<256x128xbf16>
    %cst = arith.constant dense<0.000000e+00> : vector<224x128xf32>
    %2 = tpu.matmul %0, %1, %cst {dimension_numbers = #tpu.dot_dimension_numbers<[1], [0], [0], [1], [0, 0, 1, 1], [], []>} : vector<224x256xbf16>, vector<256x128xbf16>, vector<224x128xf32> -> vector<224x128xf32>
    %c0_3 = arith.constant 0 : index
    %c0_4 = arith.constant 0 : index
    %3 = vector.load %arg6[%c0_3, %c0_4] : memref<3x128xf32, #tpu.memory_space<vmem>>, vector<1x128xf32>
    %4 = vector.broadcast %3 : vector<1x128xf32> to vector<224x128xf32>
    %5 = arith.addf %2, %4 : vector<224x128xf32>
    %cst_5 = arith.constant 0.000000e+00 : f32
    %6 = vector.broadcast %cst_5 : f32 to vector<224x128xf32>
    %7 = arith.maximumf %5, %6 : vector<224x128xf32>
    %8 = arith.truncf %7 : vector<224x128xf32> to vector<224x128xbf16>
    %c0_6 = arith.constant 0 : index
    %c0_7 = arith.constant 0 : index
    %9 = vector.load %arg8[%c0_6, %c0_7] : memref<224x128xbf16, #tpu.memory_space<vmem>>, vector<224x128xbf16>
    tpu.vector_store %arg8[%c0_6, %c0_7], %8 {strides = array<i32>} : memref<224x128xbf16, #tpu.memory_space<vmem>>, vector<224x128xbf16>,
    %c0_8 = arith.constant 0 : index
    %c0_9 = arith.constant 0 : index
    %10 = vector.load %arg2[%c0_8, %c0_9] : memref<200x640xbf16, #tpu.memory_space<vmem>>, vector<200x640xbf16>
    %c0_10 = arith.constant 0 : index
    %c0_11 = arith.constant 0 : index
    %11 = vector.load %arg5[%c0_10, %c0_11] : memref<640x128xbf16, #tpu.memory_space<vmem>>, vector<640x128xbf16>
    %cst_12 = arith.constant dense<0.000000e+00> : vector<200x128xf32>
    %12 = tpu.matmul %10, %11, %cst_12 {dimension_numbers = #tpu.dot_dimension_numbers<[1], [0], [0], [1], [0, 0, 1, 1], [], []>} : vector<200x640xbf16>, vector<640x128xbf16>, vector<200x128xf32> -> vector<200x128xf32>
    %c2 = arith.constant 2 : index
    %c0_13 = arith.constant 0 : index
    %13 = vector.load %arg6[%c2, %c0_13] : memref<3x128xf32, #tpu.memory_space<vmem>>, vector<1x128xf32>
    %14 = vector.broadcast %13 : vector<1x128xf32> to vector<200x128xf32>
    %15 = arith.addf %12, %14 : vector<200x128xf32>
    %c0_14 = arith.constant 0 : index
    %c0_15 = arith.constant 0 : index
    %16 = vector.load %arg8[%c0_14, %c0_15] : memref<224x128xbf16, #tpu.memory_space<vmem>>, vector<200x128xbf16>
    %c0_16 = arith.constant 0 : index
    %c0_17 = arith.constant 0 : index
    %17 = vector.load %arg9[%c0_16, %c0_17] : memref<200x1152xbf16, #tpu.memory_space<vmem>>, vector<200x128xbf16>
    tpu.vector_store %arg9[%c0_16, %c0_17], %16 {strides = array<i32>} : memref<200x1152xbf16, #tpu.memory_space<vmem>>, vector<200x128xbf16>,
    %c1 = arith.constant 1 : index
    %c0_18 = arith.constant 0 : index
    %18 = vector.load %arg8[%c1, %c0_18] : memref<224x128xbf16, #tpu.memory_space<vmem>>, vector<200x128xbf16>
    %c0_19 = arith.constant 0 : index
    %c128 = arith.constant 128 : index
    %19 = vector.load %arg9[%c0_19, %c128] : memref<200x1152xbf16, #tpu.memory_space<vmem>>, vector<200x128xbf16>
    tpu.vector_store %arg9[%c0_19, %c128], %18 {strides = array<i32>} : memref<200x1152xbf16, #tpu.memory_space<vmem>>, vector<200x128xbf16>,
    %c2_20 = arith.constant 2 : index
    %c0_21 = arith.constant 0 : index
    %20 = vector.load %arg8[%c2_20, %c0_21] : memref<224x128xbf16, #tpu.memory_space<vmem>>, vector<200x128xbf16>
    %c0_22 = arith.constant 0 : index
    %c256 = arith.constant 256 : index
    %21 = vector.load %arg9[%c0_22, %c256] : memref<200x1152xbf16, #tpu.memory_space<vmem>>, vector<200x128xbf16>
    tpu.vector_store %arg9[%c0_22, %c256], %20 {strides = array<i32>} : memref<200x1152xbf16, #tpu.memory_space<vmem>>, vector<200x128xbf16>,
    %c10 = arith.constant 10 : index
    %c0_23 = arith.constant 0 : index
    %22 = vector.load %arg8[%c10, %c0_23] : memref<224x128xbf16, #tpu.memory_space<vmem>>, vector<200x128xbf16>
    %c0_24 = arith.constant 0 : index
    %c384 = arith.constant 384 : index
    %23 = vector.load %arg9[%c0_24, %c384] : memref<200x1152xbf16, #tpu.memory_space<vmem>>, vector<200x128xbf16>
    tpu.vector_store %arg9[%c0_24, %c384], %22 {strides = array<i32>} : memref<200x1152xbf16, #tpu.memory_space<vmem>>, vector<200x128xbf16>,
    %c11 = arith.constant 11 : index
    %c0_25 = arith.constant 0 : index
    %24 = vector.load %arg8[%c11, %c0_25] : memref<224x128xbf16, #tpu.memory_space<vmem>>, vector<200x128xbf16>
    %c0_26 = arith.constant 0 : index
    %c512 = arith.constant 512 : index
    %25 = vector.load %arg9[%c0_26, %c512] : memref<200x1152xbf16, #tpu.memory_space<vmem>>, vector<200x128xbf16>
    tpu.vector_store %arg9[%c0_26, %c512], %24 {strides = array<i32>} : memref<200x1152xbf16, #tpu.memory_space<vmem>>, vector<200x128xbf16>,
    %c12 = arith.constant 12 : index
    %c0_27 = arith.constant 0 : index
    %26 = vector.load %arg8[%c12, %c0_27] : memref<224x128xbf16, #tpu.memory_space<vmem>>, vector<200x128xbf16>
    %c0_28 = arith.constant 0 : index
    %c640 = arith.constant 640 : index
    %27 = vector.load %arg9[%c0_28, %c640] : memref<200x1152xbf16, #tpu.memory_space<vmem>>, vector<200x128xbf16>
    tpu.vector_store %arg9[%c0_28, %c640], %26 {strides = array<i32>} : memref<200x1152xbf16, #tpu.memory_space<vmem>>, vector<200x128xbf16>,
    %c20 = arith.constant 20 : index
    %c0_29 = arith.constant 0 : index
    %28 = vector.load %arg8[%c20, %c0_29] : memref<224x128xbf16, #tpu.memory_space<vmem>>, vector<200x128xbf16>
    %c0_30 = arith.constant 0 : index
    %c768 = arith.constant 768 : index
    %29 = vector.load %arg9[%c0_30, %c768] : memref<200x1152xbf16, #tpu.memory_space<vmem>>, vector<200x128xbf16>
    tpu.vector_store %arg9[%c0_30, %c768], %28 {strides = array<i32>} : memref<200x1152xbf16, #tpu.memory_space<vmem>>, vector<200x128xbf16>,
    %c21 = arith.constant 21 : index
    %c0_31 = arith.constant 0 : index
    %30 = vector.load %arg8[%c21, %c0_31] : memref<224x128xbf16, #tpu.memory_space<vmem>>, vector<200x128xbf16>
    %c0_32 = arith.constant 0 : index
    %c896 = arith.constant 896 : index
    %31 = vector.load %arg9[%c0_32, %c896] : memref<200x1152xbf16, #tpu.memory_space<vmem>>, vector<200x128xbf16>
    tpu.vector_store %arg9[%c0_32, %c896], %30 {strides = array<i32>} : memref<200x1152xbf16, #tpu.memory_space<vmem>>, vector<200x128xbf16>,
    %c22 = arith.constant 22 : index
    %c0_33 = arith.constant 0 : index
    %32 = vector.load %arg8[%c22, %c0_33] : memref<224x128xbf16, #tpu.memory_space<vmem>>, vector<200x128xbf16>
    %c0_34 = arith.constant 0 : index
    %c1024 = arith.constant 1024 : index
    %33 = vector.load %arg9[%c0_34, %c1024] : memref<200x1152xbf16, #tpu.memory_space<vmem>>, vector<200x128xbf16>
    tpu.vector_store %arg9[%c0_34, %c1024], %32 {strides = array<i32>} : memref<200x1152xbf16, #tpu.memory_space<vmem>>, vector<200x128xbf16>,
    %c0_35 = arith.constant 0 : index
    %c0_36 = arith.constant 0 : index
    %34 = vector.load %arg9[%c0_35, %c0_36] : memref<200x1152xbf16, #tpu.memory_space<vmem>>, vector<200x1152xbf16>
    %c0_37 = arith.constant 0 : index
    %c0_38 = arith.constant 0 : index
    %35 = vector.load %arg4[%c0_37, %c0_38] : memref<1152x128xbf16, #tpu.memory_space<vmem>>, vector<1152x128xbf16>
    %cst_39 = arith.constant dense<0.000000e+00> : vector<200x128xf32>
    %36 = tpu.matmul %34, %35, %cst_39 {dimension_numbers = #tpu.dot_dimension_numbers<[1], [0], [0], [1], [0, 0, 1, 1], [], []>} : vector<200x1152xbf16>, vector<1152x128xbf16>, vector<200x128xf32> -> vector<200x128xf32>
    %c1_40 = arith.constant 1 : index
    %c0_41 = arith.constant 0 : index
    %37 = vector.load %arg6[%c1_40, %c0_41] : memref<3x128xf32, #tpu.memory_space<vmem>>, vector<1x128xf32>
    %38 = vector.broadcast %37 : vector<1x128xf32> to vector<200x128xf32>
    %39 = arith.addf %36, %38 : vector<200x128xf32>
    %cst_42 = arith.constant 0.000000e+00 : f32
    %40 = vector.broadcast %cst_42 : f32 to vector<200x128xf32>
    %41 = arith.maximumf %39, %40 : vector<200x128xf32>
    %42 = arith.addf %15, %41 : vector<200x128xf32>
    %c0_43 = arith.constant 0 : index
    %c0_44 = arith.constant 0 : index
    %43 = vector.load %arg7[%c0_43, %c0_44] : memref<200x128xf32, #tpu.memory_space<vmem>>, vector<200x128xf32>
    tpu.vector_store %arg7[%c0_43, %c0_44], %42 {strides = array<i32>} : memref<200x128xf32, #tpu.memory_space<vmem>>, vector<200x128xf32>,
    return
  }
  func.func @transform_0(%arg0: i32) -> (i32, i32) {
    %c0_i32 = arith.constant 0 : i32
    %c0_i32_0 = arith.constant 0 : i32
    %c0_i32_1 = arith.constant 0 : i32
    return %c0_i32, %c0_i32_0 : i32, i32
  }
  func.func @transform_1(%arg0: i32) -> (i32, i32) {
    %c0_i32 = arith.constant 0 : i32
    %c0_i32_0 = arith.constant 0 : i32
    %c0_i32_1 = arith.constant 0 : i32
    return %c0_i32, %c0_i32_0 : i32, i32
  }
  func.func @transform_2(%arg0: i32) -> (i32, i32) {
    %c0_i32 = arith.constant 0 : i32
    %c0_i32_0 = arith.constant 0 : i32
    %c0_i32_1 = arith.constant 0 : i32
    return %c0_i32, %c0_i32_0 : i32, i32
  }
  func.func @transform_3(%arg0: i32) -> (i32, i32) {
    %c0_i32 = arith.constant 0 : i32
    %c0_i32_0 = arith.constant 0 : i32
    %c0_i32_1 = arith.constant 0 : i32
    return %c0_i32, %c0_i32_0 : i32, i32
  }
  func.func @transform_4(%arg0: i32) -> (i32, i32) {
    %c0_i32 = arith.constant 0 : i32
    %c0_i32_0 = arith.constant 0 : i32
    %c0_i32_1 = arith.constant 0 : i32
    return %c0_i32, %c0_i32_0 : i32, i32
  }
  func.func @transform_5(%arg0: i32) -> (i32, i32) {
    %c0_i32 = arith.constant 0 : i32
    %c0_i32_0 = arith.constant 0 : i32
    %c0_i32_1 = arith.constant 0 : i32
    return %c0_i32, %c0_i32_0 : i32, i32
  }
  func.func @transform_6(%arg0: i32) -> (i32, i32) {
    %c0_i32 = arith.constant 0 : i32
    %c0_i32_0 = arith.constant 0 : i32
    %c0_i32_1 = arith.constant 0 : i32
    return %c0_i32, %c0_i32_0 : i32, i32
  }
}

</mosaic_0001>

<llo_original>
// kernel: dimnet_forward.1
$region0: #{dimnet_forward.1}
  #allocation0 [shape = 'u32[]', space=smem, size = 0x4, offset = 0x4, fixed_abs, tag = 'smem constant byte address 0x4 - core index']
  #allocation1 [shape = 'u32[144,128]{1,0:T(1,128)}', space=vmem, size = 0x12000, scoped, tag = 'internal scratch']
  #allocation2 [shape = 'bf16[224,128]{1,0:T(16,128)(2,1)}', space=vmem, size = 0xe000, scoped, tag = 'scratch operand']
  #allocation3 [shape = 'bf16[200,1152]{1,0:T(8,128)(2,1)}', space=vmem, size = 0x70800, scoped, tag = 'scratch operand']
  %s0 = inlined_call_operand.vmem [shape: bf16[224,256], index: 0, kind: input, shape index: {}]
  %s1 = inlined_call_operand.vmem [shape: bf16[200,640], index: 1, kind: input, shape index: {}]
  %s2 = inlined_call_operand.vmem [shape: bf16[256,128], index: 2, kind: input, shape index: {}]
  %s3 = inlined_call_operand.vmem [shape: bf16[1152,128], index: 3, kind: input, shape index: {}]
  %s4 = inlined_call_operand.vmem [shape: bf16[640,128], index: 4, kind: input, shape index: {}]
  %s5 = inlined_call_operand.vmem [shape: f32[3,128], index: 5, kind: input, shape index: {}]
  %s6 = inlined_call_operand.vmem [shape: f32[200,128], index: 6, kind: output, shape index: {}]
  %s7 = sld [smem:[#allocation0]]
  $region34: #{dimnet_forward.1} parent=0
    _
  %s9 = ssub.s32 1, %s7
  %s10 = scalar_select 0, %s9, %s7
  // Predicated region
  $region2: #{dimnet_forward.1} parent=0 // pred_check
    _
  $region3: #{dimnet_forward.1} parent=0 // pred_check_branch
    %12 = sbr.rel (0) target = $region5
  $region4: #{dimnet_forward.1} parent=0 // pred_region
    _
  $region5: #{dimnet_forward.1} parent=0 // pred_fallthru
    _
  // Predicated region
  $region6: #{dimnet_forward.1} parent=0 // pred_check
    _
  $region7: #{dimnet_forward.1} parent=0 // pred_check_branch
    %14 = sbr.rel (0) target = $region9
  $region8: #{dimnet_forward.1} parent=0 // pred_region
    _
  $region9: #{dimnet_forward.1} parent=0 // pred_fallthru
    _
  // Predicated region
  $region10: #{dimnet_forward.1} parent=0 // pred_check
    _
  $region11: #{dimnet_forward.1} parent=0 // pred_check_branch
    %16 = sbr.rel (0) target = $region13
  $region12: #{dimnet_forward.1} parent=0 // pred_region
    _
  $region13: #{dimnet_forward.1} parent=0 // pred_fallthru
    _
  // Predicated region
  $region14: #{dimnet_forward.1} parent=0 // pred_check
    _
  $region15: #{dimnet_forward.1} parent=0 // pred_check_branch
    %18 = sbr.rel (0) target = $region17
  $region16: #{dimnet_forward.1} parent=0 // pred_region
    _
  $region17: #{dimnet_forward.1} parent=0 // pred_fallthru
    _
  // Predicated region
  $region18: #{dimnet_forward.1} parent=0 // pred_check
    _
  $region19: #{dimnet_forward.1} parent=0 // pred_check_branch
    %20 = sbr.rel (0) target = $region21
  $region20: #{dimnet_forward.1} parent=0 // pred_region
    _
  $region21: #{dimnet_forward.1} parent=0 // pred_fallthru
    _
  // Predicated region
  $region22: #{dimnet_forward.1} parent=0 // pred_check
    _
  $region23: #{dimnet_forward.1} parent=0 // pred_check_branch
    %22 = sbr.rel (0) target = $region25
  $region24: #{dimnet_forward.1} parent=0 // pred_region
    _
  $region25: #{dimnet_forward.1} parent=0 // pred_fallthru
    _
  %v24 = vld [vmem:[%s0] sm:$0xff]
  %v25 = vld [vmem:[%s0 + $0x8] sm:$0xff]
  %v26 = vld [vmem:[%s0 + $0x10] sm:$0xff]
  %v27 = vld [vmem:[%s0 + $0x18] sm:$0xff]
  %v28 = vld [vmem:[%s0 + $0x20] sm:$0xff]
  %v29 = vld [vmem:[%s0 + $0x28] sm:$0xff]
  %v30 = vld [vmem:[%s0 + $0x30] sm:$0xff]
  %v31 = vld [vmem:[%s0 + $0x38] sm:$0xff]
  %v32 = vld [vmem:[%s0 + $0x40] sm:$0xff]
  %v33 = vld [vmem:[%s0 + $0x48] sm:$0xff]
  %v34 = vld [vmem:[%s0 + $0x50] sm:$0xff]
  %v35 = vld [vmem:[%s0 + $0x58] sm:$0xff]
  %v36 = vld [vmem:[%s0 + $0x60] sm:$0xff]
  %v37 = vld [vmem:[%s0 + $0x68] sm:$0xff]
  %v38 = vld [vmem:[%s0 + $0x70] sm:$0xff]
  %v39 = vld [vmem:[%s0 + $0x78] sm:$0xff]
  %v40 = vld [vmem:[%s0 + $0x80] sm:$0xff]
  %v41 = vld [vmem:[%s0 + $0x88] sm:$0xff]
  %v42 = vld [vmem:[%s0 + $0x90] sm:$0xff]
  %v43 = vld [vmem:[%s0 + $0x98] sm:$0xff]
  %v44 = vld [vmem:[%s0 + $0xa0] sm:$0xff]
  %v45 = vld [vmem:[%s0 + $0xa8] sm:$0xff]
  %v46 = vld [vmem:[%s0 + $0xb0] sm:$0xff]
  %v47 = vld [vmem:[%s0 + $0xb8] sm:$0xff]
  %v48 = vld [vmem:[%s0 + $0xc0] sm:$0xff]
  %v49 = vld [vmem:[%s0 + $0xc8] sm:$0xff]
  %v50 = vld [vmem:[%s0 + $0xd0] sm:$0xff]
  %v51 = vld [vmem:[%s0 + $0xd8] sm:$0xff]
  %v52 = vld [vmem:[%s2] sm:$0xf]
  %v53 = vld [vmem:[%s2 + $0x4] sm:$0xf]
  %v54 = vld [vmem:[%s2 + $0x8] sm:$0xf]
  %v55 = vld [vmem:[%s2 + $0xc] sm:$0xf]
  %v56 = vld [vmem:[%s2 + $0x10] sm:$0xf]
  %v57 = vld [vmem:[%s2 + $0x14] sm:$0xf]
  %v58 = vld [vmem:[%s2 + $0x18] sm:$0xf]
  %v59 = vld [vmem:[%s2 + $0x1c] sm:$0xf]
  %v60 = vld [vmem:[%s2 + $0x20] sm:$0xf]
  %v61 = vld [vmem:[%s2 + $0x24] sm:$0xf]
  %v62 = vld [vmem:[%s2 + $0x28] sm:$0xf]
  %v63 = vld [vmem:[%s2 + $0x2c] sm:$0xf]
  %v64 = vld [vmem:[%s2 + $0x30] sm:$0xf]
  %v65 = vld [vmem:[%s2 + $0x34] sm:$0xf]
  %v66 = vld [vmem:[%s2 + $0x38] sm:$0xf]
  %v67 = vld [vmem:[%s2 + $0x3c] sm:$0xf]
  %v68 = vld [vmem:[%s2 + $0x40] sm:$0xf]
  %v69 = vld [vmem:[%s2 + $0x44] sm:$0xf]
  %v70 = vld [vmem:[%s2 + $0x48] sm:$0xf]
  %v71 = vld [vmem:[%s2 + $0x4c] sm:$0xf]
  %v72 = vld [vmem:[%s2 + $0x50] sm:$0xf]
  %v73 = vld [vmem:[%s2 + $0x54] sm:$0xf]
  %v74 = vld [vmem:[%s2 + $0x58] sm:$0xf]
  %v75 = vld [vmem:[%s2 + $0x5c] sm:$0xf]
  %v76 = vld [vmem:[%s2 + $0x60] sm:$0xf]
  %v77 = vld [vmem:[%s2 + $0x64] sm:$0xf]
  %v78 = vld [vmem:[%s2 + $0x68] sm:$0xf]
  %v79 = vld [vmem:[%s2 + $0x6c] sm:$0xf]
  %v80 = vld [vmem:[%s2 + $0x70] sm:$0xf]
  %v81 = vld [vmem:[%s2 + $0x74] sm:$0xf]
  %v82 = vld [vmem:[%s2 + $0x78] sm:$0xf]
  %v83 = vld [vmem:[%s2 + $0x7c] sm:$0xf]
  %v84 = vld [vmem:[%s5] sm:$0x1]
  %v85 = vlaneseq
  %v86 = vshrl.u32 %v85, 7
  %v87 = vsub.s32 0, %v86
  %v88 = vrot.slane %v84, %v87
  %v117 = vunpack.c.l.b16 %v24
  %v118 = vunpack.c.h.b16 %v24
  %v119 = vunpack.c.l.b16 %v25
  %v120 = vunpack.c.h.b16 %v25
  %v121 = vunpack.c.l.b16 %v26
  %v122 = vunpack.c.h.b16 %v26
  %v123 = vunpack.c.l.b16 %v27
  %v124 = vunpack.c.h.b16 %v27
  %v125 = vunpack.c.l.b16 %v28
  %v126 = vunpack.c.h.b16 %v28
  %v127 = vunpack.c.l.b16 %v29
  %v128 = vunpack.c.h.b16 %v29
  %v129 = vunpack.c.l.b16 %v30
  %v130 = vunpack.c.h.b16 %v30
  %v131 = vunpack.c.l.b16 %v31
  %v132 = vunpack.c.h.b16 %v31
  %v133 = vunpack.c.l.b16 %v32
  %v134 = vunpack.c.h.b16 %v32
  %v135 = vunpack.c.l.b16 %v33
  %v136 = vunpack.c.h.b16 %v33
  %v137 = vunpack.c.l.b16 %v34
  %v138 = vunpack.c.h.b16 %v34
  %v139 = vunpack.c.l.b16 %v35
  %v140 = vunpack.c.h.b16 %v35
  %v141 = vunpack.c.l.b16 %v36
  %v142 = vunpack.c.h.b16 %v36
  %v143 = vunpack.c.l.b16 %v37
  %v144 = vunpack.c.h.b16 %v37
  %v145 = vunpack.c.l.b16 %v38
  %v146 = vunpack.c.h.b16 %v38
  %v147 = vunpack.c.l.b16 %v39
  %v148 = vunpack.c.h.b16 %v39
  %v149 = vunpack.c.l.b16 %v40
  %v150 = vunpack.c.h.b16 %v40
  %v151 = vunpack.c.l.b16 %v41
  %v152 = vunpack.c.h.b16 %v41
  %v153 = vunpack.c.l.b16 %v42
  %v154 = vunpack.c.h.b16 %v42
  %v155 = vunpack.c.l.b16 %v43
  %v156 = vunpack.c.h.b16 %v43
  %v157 = vunpack.c.l.b16 %v44
  %v158 = vunpack.c.h.b16 %v44
  %v159 = vunpack.c.l.b16 %v45
  %v160 = vunpack.c.h.b16 %v45
  %v161 = vunpack.c.l.b16 %v46
  %v162 = vunpack.c.h.b16 %v46
  %v163 = vunpack.c.l.b16 %v47
  %v164 = vunpack.c.h.b16 %v47
  %v165 = vunpack.c.l.b16 %v48
  %v166 = vunpack.c.h.b16 %v48
  %v167 = vunpack.c.l.b16 %v49
  %v168 = vunpack.c.h.b16 %v49
  %v169 = vunpack.c.l.b16 %v50
  %v170 = vunpack.c.h.b16 %v50
  %v171 = vunpack.c.l.b16 %v51
  %v172 = vunpack.c.h.b16 %v51
  %v173 = vpack.c.b16 %v119, %v117
  %v174 = vpack.c.b16 %v120, %v118
  %v175 = vpack.c.b16 %v123, %v121
  %v176 = vpack.c.b16 %v124, %v122
  %v177 = vpack.c.b16 %v127, %v125
  %v178 = vpack.c.b16 %v128, %v126
  %v179 = vpack.c.b16 %v131, %v129
  %v180 = vpack.c.b16 %v132, %v130
  %v181 = vpack.c.b16 %v135, %v133
  %v182 = vpack.c.b16 %v136, %v134
  %v183 = vpack.c.b16 %v139, %v137
  %v184 = vpack.c.b16 %v140, %v138
  %v185 = vpack.c.b16 %v143, %v141
  %v186 = vpack.c.b16 %v144, %v142
  %v187 = vpack.c.b16 %v147, %v145
  %v188 = vpack.c.b16 %v148, %v146
  %v189 = vpack.c.b16 %v151, %v149
  %v190 = vpack.c.b16 %v152, %v150
  %v191 = vpack.c.b16 %v155, %v153
  %v192 = vpack.c.b16 %v156, %v154
  %v193 = vpack.c.b16 %v159, %v157
  %v194 = vpack.c.b16 %v160, %v158
  %v195 = vpack.c.b16 %v163, %v161
  %v196 = vpack.c.b16 %v164, %v162
  %v197 = vpack.c.b16 %v167, %v165
  %v198 = vpack.c.b16 %v168, %v166
  %v199 = vpack.c.b16 %v171, %v169
  %v200 = vpack.c.b16 %v172, %v170
  %v261 = vunpack.c.l.b16 %v52
  %v262 = vunpack.c.l.b16 %v53
  %v263 = vunpack.c.l.b16 %v54
  %v264 = vunpack.c.l.b16 %v55
  %v265 = vunpack.c.l.b16 %v56
  %v266 = vunpack.c.l.b16 %v57
  %v267 = vunpack.c.l.b16 %v58
  %v268 = vunpack.c.l.b16 %v59
  %v269 = vunpack.c.l.b16 %v60
  %v270 = vunpack.c.l.b16 %v61
  %v271 = vunpack.c.l.b16 %v62
  %v272 = vunpack.c.l.b16 %v63
  %v273 = vunpack.c.l.b16 %v64
  %v274 = vunpack.c.l.b16 %v65
  %v275 = vunpack.c.l.b16 %v66
  %v276 = vunpack.c.l.b16 %v67
  %v277 = vunpack.c.l.b16 %v68
  %v278 = vunpack.c.l.b16 %v69
  %v279 = vunpack.c.l.b16 %v70
  %v280 = vunpack.c.l.b16 %v71
  %v281 = vunpack.c.l.b16 %v72
  %v282 = vunpack.c.l.b16 %v73
  %v283 = vunpack.c.l.b16 %v74
  %v284 = vunpack.c.l.b16 %v75
  %v285 = vunpack.c.l.b16 %v76
  %v286 = vunpack.c.l.b16 %v77
  %v287 = vunpack.c.l.b16 %v78
  %v288 = vunpack.c.l.b16 %v79
  %v289 = vunpack.c.l.b16 %v80
  %v290 = vunpack.c.l.b16 %v81
  %v291 = vunpack.c.l.b16 %v82
  %v292 = vunpack.c.l.b16 %v83
  %v293 = vpack.c.b16 %v262, %v261
  %v294 = vpack.c.b16 %v264, %v263
  %v295 = vpack.c.b16 %v266, %v265
  %v296 = vpack.c.b16 %v268, %v267
  %v297 = vpack.c.b16 %v270, %v269
  %v298 = vpack.c.b16 %v272, %v271
  %v299 = vpack.c.b16 %v274, %v273
  %v300 = vpack.c.b16 %v276, %v275
  %v301 = vpack.c.b16 %v278, %v277
  %v302 = vpack.c.b16 %v280, %v279
  %v303 = vpack.c.b16 %v282, %v281
  %v304 = vpack.c.b16 %v284, %v283
  %v305 = vpack.c.b16 %v286, %v285
  %v306 = vpack.c.b16 %v288, %v287
  %v307 = vpack.c.b16 %v290, %v289
  %v308 = vpack.c.b16 %v292, %v291
  %325 = vmatprep.subr.bf16.mxu0 0
  %326 = vmatpush1.bf16.msra.mxu0 %v293
  %327 = vmatprep.subr.bf16.mxu0 0
  %328 = vmatpush1.bf16.msra.mxu0 %v294
  %329 = vmatprep.subr.bf16.mxu0 0
  %330 = vmatpush1.bf16.msra.mxu0 %v295
  %331 = vmatprep.subr.bf16.mxu0 0
  %332 = vmatpush1.bf16.msra.mxu0 %v296
  %333 = vmatprep.subr.bf16.mxu0 0
  %334 = vmatpush1.bf16.msra.mxu0 %v297
  %335 = vmatprep.subr.bf16.mxu0 0
  %336 = vmatpush1.bf16.msra.mxu0 %v298
  %337 = vmatprep.subr.bf16.mxu0 0
  %338 = vmatpush1.bf16.msra.mxu0 %v299
  %339 = vmatprep.subr.bf16.mxu0 0
  %340 = vmatpush1.bf16.msra.mxu0 %v300
  %341 = vmatprep.subr.bf16.mxu0 0
  %342 = vmatpush1.bf16.msra.mxu0 %v301
  %343 = vmatprep.subr.bf16.mxu0 0
  %344 = vmatpush1.bf16.msra.mxu0 %v302
  %345 = vmatprep.subr.bf16.mxu0 0
  %346 = vmatpush1.bf16.msra.mxu0 %v303
  %347 = vmatprep.subr.bf16.mxu0 0
  %348 = vmatpush1.bf16.msra.mxu0 %v304
  %349 = vmatprep.subr.bf16.mxu0 0
  %350 = vmatpush1.bf16.msra.mxu0 %v305
  %351 = vmatprep.subr.bf16.mxu0 0
  %352 = vmatpush1.bf16.msra.mxu0 %v306
  %353 = vmatprep.subr.bf16.mxu0 0
  %354 = vmatpush1.bf16.msra.mxu0 %v307
  %355 = vmatprep.subr.bf16.mxu0 0
  %356 = vmatpush1.bf16.msra.mxu0 %v308
  %357 = vmatprep.mubr.bf16.mxu0 %v174
  %358 = vmatmul.mubr.bf16.gmra.mrb[0].mxu0 %v173
  %v359 = vpop.f32.mrb[0].mxu0
  %v360 = vadd.f32 %v88, %v359
  %v361 = vpop.f32.mrb[0].mxu0
  %v362 = vpop.f32.mrb[0].mxu0
  %v363 = vadd.f32 %v88, %v362
  %v364 = vpop.f32.mrb[0].mxu0
  %365 = vmatprep.mubr.bf16.mxu0 %v176
  %366 = vmatmul.mubr.bf16.gmra.mrb[0].mxu0 %v175
  %v367 = vpop.f32.mrb[0].mxu0
  %v368 = vadd.f32 %v88, %v367
  %v369 = vpop.f32.mrb[0].mxu0
  %v370 = vpop.f32.mrb[0].mxu0
  %v371 = vadd.f32 %v88, %v370
  %v372 = vpop.f32.mrb[0].mxu0
  %373 = vmatprep.mubr.bf16.mxu0 %v178
  %374 = vmatmul.mubr.bf16.gmra.mrb[0].mxu0 %v177
  %v375 = vpop.f32.mrb[0].mxu0
  %v376 = vadd.f32 %v88, %v375
  %v377 = vpop.f32.mrb[0].mxu0
  %v378 = vpop.f32.mrb[0].mxu0
  %v379 = vadd.f32 %v88, %v378
  %v380 = vpop.f32.mrb[0].mxu0
  %381 = vmatprep.mubr.bf16.mxu0 %v180
  %382 = vmatmul.mubr.bf16.gmra.mrb[0].mxu0 %v179
  %v383 = vpop.f32.mrb[0].mxu0
  %v384 = vadd.f32 %v88, %v383
  %v385 = vpop.f32.mrb[0].mxu0
  %v386 = vpop.f32.mrb[0].mxu0
  %v387 = vadd.f32 %v88, %v386
  %v388 = vpop.f32.mrb[0].mxu0
  %389 = vmatprep.mubr.bf16.mxu0 %v182
  %390 = vmatmul.mubr.bf16.gmra.mrb[0].mxu0 %v181
  %v391 = vpop.f32.mrb[0].mxu0
  %v392 = vadd.f32 %v88, %v391
  %v393 = vpop.f32.mrb[0].mxu0
  %v394 = vpop.f32.mrb[0].mxu0
  %v395 = vadd.f32 %v88, %v394
  %v396 = vpop.f32.mrb[0].mxu0
  %397 = vmatprep.mubr.bf16.mxu0 %v184
  %398 = vmatmul.mubr.bf16.gmra.mrb[0].mxu0 %v183
  %v399 = vpop.f32.mrb[0].mxu0
  %v400 = vadd.f32 %v88, %v399
  %v401 = vpop.f32.mrb[0].mxu0
  %v402 = vpop.f32.mrb[0].mxu0
  %v403 = vadd.f32 %v88, %v402
  %v404 = vpop.f32.mrb[0].mxu0
  %405 = vmatprep.mubr.bf16.mxu0 %v186
  %406 = vmatmul.mubr.bf16.gmra.mrb[0].mxu0 %v185
  %v407 = vpop.f32.mrb[0].mxu0
  %v408 = vadd.f32 %v88, %v407
  %v409 = vpop.f32.mrb[0].mxu0
  %v410 = vpop.f32.mrb[0].mxu0
  %v411 = vadd.f32 %v88, %v410
  %v412 = vpop.f32.mrb[0].mxu0
  %413 = vmatprep.mubr.bf16.mxu0 %v188
  %414 = vmatmul.mubr.bf16.gmra.mrb[0].mxu0 %v187
  %v415 = vpop.f32.mrb[0].mxu0
  %v416 = vadd.f32 %v88, %v415
  %v417 = vpop.f32.mrb[0].mxu0
  %v418 = vpop.f32.mrb[0].mxu0
  %v419 = vadd.f32 %v88, %v418
  %v420 = vpop.f32.mrb[0].mxu0
  %421 = vmatprep.mubr.bf16.mxu0 %v190
  %422 = vmatmul.mubr.bf16.gmra.mrb[0].mxu0 %v189
  %v423 = vpop.f32.mrb[0].mxu0
  %v424 = vadd.f32 %v88, %v423
  %v425 = vpop.f32.mrb[0].mxu0
  %v426 = vpop.f32.mrb[0].mxu0
  %v427 = vadd.f32 %v88, %v426
  %v428 = vpop.f32.mrb[0].mxu0
  %429 = vmatprep.mubr.bf16.mxu0 %v192
  %430 = vmatmul.mubr.bf16.gmra.mrb[0].mxu0 %v191
  %v431 = vpop.f32.mrb[0].mxu0
  %v432 = vadd.f32 %v88, %v431
  %v433 = vpop.f32.mrb[0].mxu0
  %v434 = vpop.f32.mrb[0].mxu0
  %v435 = vadd.f32 %v88, %v434
  %v436 = vpop.f32.mrb[0].mxu0
  %437 = vmatprep.mubr.bf16.mxu0 %v194
  %438 = vmatmul.mubr.bf16.gmra.mrb[0].mxu0 %v193
  %v439 = vpop.f32.mrb[0].mxu0
  %v440 = vadd.f32 %v88, %v439
  %v441 = vpop.f32.mrb[0].mxu0
  %v442 = vpop.f32.mrb[0].mxu0
  %v443 = vadd.f32 %v88, %v442
  %v444 = vpop.f32.mrb[0].mxu0
  %445 = vmatprep.mubr.bf16.mxu0 %v196
  %446 = vmatmul.mubr.bf16.gmra.mrb[0].mxu0 %v195
  %v447 = vpop.f32.mrb[0].mxu0
  %v448 = vadd.f32 %v88, %v447
  %v449 = vpop.f32.mrb[0].mxu0
  %v450 = vpop.f32.mrb[0].mxu0
  %v451 = vadd.f32 %v88, %v450
  %v452 = vpop.f32.mrb[0].mxu0
  %453 = vmatprep.mubr.bf16.mxu0 %v198
  %454 = vmatmul.mubr.bf16.gmra.mrb[0].mxu0 %v197
  %v455 = vpop.f32.mrb[0].mxu0
  %v456 = vadd.f32 %v88, %v455
  %v457 = vpop.f32.mrb[0].mxu0
  %v458 = vpop.f32.mrb[0].mxu0
  %v459 = vadd.f32 %v88, %v458
  %v460 = vpop.f32.mrb[0].mxu0
  %461 = vmatprep.mubr.bf16.mxu0 %v200
  %462 = vmatmul.mubr.bf16.gmra.mrb[0].mxu0 %v199
  %v463 = vpop.f32.mrb[0].mxu0
  %v464 = vadd.f32 %v88, %v463
  %v465 = vpop.f32.mrb[0].mxu0
  %v466 = vpop.f32.mrb[0].mxu0
  %v467 = vadd.f32 %v88, %v466
  %v468 = vpop.f32.mrb[0].mxu0
  %469 = vdwg.mxu0
  %v470 = vmax.f32 %v360, 0.0
  %v471 = vmax.f32 %v363, 0.0
  %v472 = vmax.f32 %v368, 0.0
  %v473 = vmax.f32 %v371, 0.0
  %v474 = vmax.f32 %v376, 0.0
  %v475 = vmax.f32 %v379, 0.0
  %v476 = vmax.f32 %v384, 0.0
  %v477 = vmax.f32 %v387, 0.0
  %v478 = vmax.f32 %v392, 0.0
  %v479 = vmax.f32 %v395, 0.0
  %v480 = vmax.f32 %v400, 0.0
  %v481 = vmax.f32 %v403, 0.0
  %v482 = vmax.f32 %v408, 0.0
  %v483 = vmax.f32 %v411, 0.0
  %v484 = vmax.f32 %v416, 0.0
  %v485 = vmax.f32 %v419, 0.0
  %v486 = vmax.f32 %v424, 0.0
  %v487 = vmax.f32 %v427, 0.0
  %v488 = vmax.f32 %v432, 0.0
  %v489 = vmax.f32 %v435, 0.0
  %v490 = vmax.f32 %v440, 0.0
  %v491 = vmax.f32 %v443, 0.0
  %v492 = vmax.f32 %v448, 0.0
  %v493 = vmax.f32 %v451, 0.0
  %v494 = vmax.f32 %v456, 0.0
  %v495 = vmax.f32 %v459, 0.0
  %v496 = vmax.f32 %v464, 0.0
  %v497 = vmax.f32 %v467, 0.0
  %v498 = vpack.c.bf16 %v471, %v470
  %v499 = vpack.c.bf16 %v473, %v472
  %v500 = vpack.c.bf16 %v475, %v474
  %v501 = vpack.c.bf16 %v477, %v476
  %v502 = vpack.c.bf16 %v479, %v478
  %v503 = vpack.c.bf16 %v481, %v480
  %v504 = vpack.c.bf16 %v483, %v482
  %v505 = vpack.c.bf16 %v485, %v484
  %v506 = vpack.c.bf16 %v487, %v486
  %v507 = vpack.c.bf16 %v489, %v488
  %v508 = vpack.c.bf16 %v491, %v490
  %v509 = vpack.c.bf16 %v493, %v492
  %v510 = vpack.c.bf16 %v495, %v494
  %v511 = vpack.c.bf16 %v497, %v496
  %512 = vst [vmem:[#allocation2] sm:$0xff] %v498
  %513 = vst [vmem:[#allocation2 + $0x8] sm:$0xff] %v499
  %514 = vst [vmem:[#allocation2 + $0x10] sm:$0xff] %v500
  %515 = vst [vmem:[#allocation2 + $0x18] sm:$0xff] %v501
  %516 = vst [vmem:[#allocation2 + $0x20] sm:$0xff] %v502
  %517 = vst [vmem:[#allocation2 + $0x28] sm:$0xff] %v503
  %518 = vst [vmem:[#allocation2 + $0x30] sm:$0xff] %v504
  %519 = vst [vmem:[#allocation2 + $0x38] sm:$0xff] %v505
  %520 = vst [vmem:[#allocation2 + $0x40] sm:$0xff] %v506
  %521 = vst [vmem:[#allocation2 + $0x48] sm:$0xff] %v507
  %522 = vst [vmem:[#allocation2 + $0x50] sm:$0xff] %v508
  %523 = vst [vmem:[#allocation2 + $0x58] sm:$0xff] %v509
  %524 = vst [vmem:[#allocation2 + $0x60] sm:$0xff] %v510
  %525 = vst [vmem:[#allocation2 + $0x68] sm:$0xff] %v511
  %v526 = vld [vmem:[%s1] sm:$0xff]
  %v527 = vld [vmem:[%s1 + $0x8] sm:$0xff]
  %v528 = vld [vmem:[%s1 + $0x10] sm:$0xf]
  %v529 = vld [vmem:[%s1 + $0x14] sm:$0xff]
  %v530 = vld [vmem:[%s1 + $0x1c] sm:$0xff]
  %v531 = vld [vmem:[%s1 + $0x24] sm:$0xf]
  %v532 = vld [vmem:[%s1 + $0x28] sm:$0xff]
  %v533 = vld [vmem:[%s1 + $0x30] sm:$0xff]
  %v534 = vld [vmem:[%s1 + $0x38] sm:$0xf]
  %v535 = vld [vmem:[%s1 + $0x3c] sm:$0xff]
  %v536 = vld [vmem:[%s1 + $0x44] sm:$0xff]
  %v537 = vld [vmem:[%s1 + $0x4c] sm:$0xf]
  %v538 = vld [vmem:[%s1 + $0x50] sm:$0xff]
  %v539 = vld [vmem:[%s1 + $0x58] sm:$0xff]
  %v540 = vld [vmem:[%s1 + $0x60] sm:$0xf]
  %v541 = vld [vmem:[%s1 + $0x64] sm:$0xff]
  %v542 = vld [vmem:[%s1 + $0x6c] sm:$0xff]
  %v543 = vld [vmem:[%s1 + $0x74] sm:$0xf]
  %v544 = vld [vmem:[%s1 + $0x78] sm:$0xff]
  %v545 = vld [vmem:[%s1 + $0x80] sm:$0xff]
  %v546 = vld [vmem:[%s1 + $0x88] sm:$0xf]
  %v547 = vld [vmem:[%s1 + $0x8c] sm:$0xff]
  %v548 = vld [vmem:[%s1 + $0x94] sm:$0xff]
  %v549 = vld [vmem:[%s1 + $0x9c] sm:$0xf]
  %v550 = vld [vmem:[%s1 + $0xa0] sm:$0xff]
  %v551 = vld [vmem:[%s1 + $0xa8] sm:$0xff]
  %v552 = vld [vmem:[%s1 + $0xb0] sm:$0xf]
  %v553 = vld [vmem:[%s1 + $0xb4] sm:$0xff]
  %v554 = vld [vmem:[%s1 + $0xbc] sm:$0xff]
  %v555 = vld [vmem:[%s1 + $0xc4] sm:$0xf]
  %v556 = vld [vmem:[%s1 + $0xc8] sm:$0xff]
  %v557 = vld [vmem:[%s1 + $0xd0] sm:$0xff]
  %v558 = vld [vmem:[%s1 + $0xd8] sm:$0xf]
  %v559 = vld [vmem:[%s1 + $0xdc] sm:$0xff]
  %v560 = vld [vmem:[%s1 + $0xe4] sm:$0xff]
  %v561 = vld [vmem:[%s1 + $0xec] sm:$0xf]
  %v562 = vld [vmem:[%s1 + $0xf0] sm:$0xff]
  %v563 = vld [vmem:[%s1 + $0xf8] sm:$0xff]
  %v564 = vld [vmem:[%s1 + $0x100] sm:$0xf]
  %v565 = vld [vmem:[%s1 + $0x104] sm:$0xff]
  %v566 = vld [vmem:[%s1 + $0x10c] sm:$0xff]
  %v567 = vld [vmem:[%s1 + $0x114] sm:$0xf]
  %v568 = vld [vmem:[%s1 + $0x118] sm:$0xff]
  %v569 = vld [vmem:[%s1 + $0x120] sm:$0xff]
  %v570 = vld [vmem:[%s1 + $0x128] sm:$0xf]
  %v571 = vld [vmem:[%s1 + $0x12c] sm:$0xff]
  %v572 = vld [vmem:[%s1 + $0x134] sm:$0xff]
  %v573 = vld [vmem:[%s1 + $0x13c] sm:$0xf]
  %v574 = vld [vmem:[%s1 + $0x140] sm:$0xff]
  %v575 = vld [vmem:[%s1 + $0x148] sm:$0xff]
  %v576 = vld [vmem:[%s1 + $0x150] sm:$0xf]
  %v577 = vld [vmem:[%s1 + $0x154] sm:$0xff]
  %v578 = vld [vmem:[%s1 + $0x15c] sm:$0xff]
  %v579 = vld [vmem:[%s1 + $0x164] sm:$0xf]
  %v580 = vld [vmem:[%s1 + $0x168] sm:$0xff]
  %v581 = vld [vmem:[%s1 + $0x170] sm:$0xff]
  %v582 = vld [vmem:[%s1 + $0x178] sm:$0xf]
  %v583 = vld [vmem:[%s1 + $0x17c] sm:$0xff]
  %v584 = vld [vmem:[%s1 + $0x184] sm:$0xff]
  %v585 = vld [vmem:[%s1 + $0x18c] sm:$0xf]
  %v586 = vld [vmem:[%s1 + $0x190] sm:$0xff]
  %v587 = vld [vmem:[%s1 + $0x198] sm:$0xff]
  %v588 = vld [vmem:[%s1 + $0x1a0] sm:$0xf]
  %v589 = vld [vmem:[%s1 + $0x1a4] sm:$0xff]
  %v590 = vld [vmem:[%s1 + $0x1ac] sm:$0xff]
  %v591 = vld [vmem:[%s1 + $0x1b4] sm:$0xf]
  %v592 = vld [vmem:[%s1 + $0x1b8] sm:$0xff]
  %v593 = vld [vmem:[%s1 + $0x1c0] sm:$0xff]
  %v594 = vld [vmem:[%s1 + $0x1c8] sm:$0xf]
  %v595 = vld [vmem:[%s1 + $0x1cc] sm:$0xff]
  %v596 = vld [vmem:[%s1 + $0x1d4] sm:$0xff]
  %v597 = vld [vmem:[%s1 + $0x1dc] sm:$0xf]
  %v598 = vld [vmem:[%s1 + $0x1e0] sm:$0xff]
  %v599 = vld [vmem:[%s1 + $0x1e8] sm:$0xff]
  %v600 = vld [vmem:[%s1 + $0x1f0] sm:$0xf]
  %v601 = vld [vmem:[%s4] sm:$0xf]
  %v602 = vld [vmem:[%s4 + $0x4] sm:$0xf]
  %v603 = vld [vmem:[%s4 + $0x8] sm:$0xf]
  %v604 = vld [vmem:[%s4 + $0xc] sm:$0xf]
  %v605 = vld [vmem:[%s4 + $0x10] sm:$0xf]
  %v606 = vld [vmem:[%s4 + $0x14] sm:$0xf]
  %v607 = vld [vmem:[%s4 + $0x18] sm:$0xf]
  %v608 = vld [vmem:[%s4 + $0x1c] sm:$0xf]
  %v609 = vld [vmem:[%s4 + $0x20] sm:$0xf]
  %v610 = vld [vmem:[%s4 + $0x24] sm:$0xf]
  %v611 = vld [vmem:[%s4 + $0x28] sm:$0xf]
  %v612 = vld [vmem:[%s4 + $0x2c] sm:$0xf]
  %v613 = vld [vmem:[%s4 + $0x30] sm:$0xf]
  %v614 = vld [vmem:[%s4 + $0x34] sm:$0xf]
  %v615 = vld [vmem:[%s4 + $0x38] sm:$0xf]
  %v616 = vld [vmem:[%s4 + $0x3c] sm:$0xf]
  %v617 = vld [vmem:[%s4 + $0x40] sm:$0xf]
  %v618 = vld [vmem:[%s4 + $0x44] sm:$0xf]
  %v619 = vld [vmem:[%s4 + $0x48] sm:$0xf]
  %v620 = vld [vmem:[%s4 + $0x4c] sm:$0xf]
  %v621 = vld [vmem:[%s4 + $0x50] sm:$0xf]
  %v622 = vld [vmem:[%s4 + $0x54] sm:$0xf]
  %v623 = vld [vmem:[%s4 + $0x58] sm:$0xf]
  %v624 = vld [vmem:[%s4 + $0x5c] sm:$0xf]
  %v625 = vld [vmem:[%s4 + $0x60] sm:$0xf]
  %v626 = vld [vmem:[%s4 + $0x64] sm:$0xf]
  %v627 = vld [vmem:[%s4 + $0x68] sm:$0xf]
  %v628 = vld [vmem:[%s4 + $0x6c] sm:$0xf]
  %v629 = vld [vmem:[%s4 + $0x70] sm:$0xf]
  %v630 = vld [vmem:[%s4 + $0x74] sm:$0xf]
  %v631 = vld [vmem:[%s4 + $0x78] sm:$0xf]
  %v632 = vld [vmem:[%s4 + $0x7c] sm:$0xf]
  %v633 = vld [vmem:[%s4 + $0x80] sm:$0xf]
  %v634 = vld [vmem:[%s4 + $0x84] sm:$0xf]
  %v635 = vld [vmem:[%s4 + $0x88] sm:$0xf]
  %v636 = vld [vmem:[%s4 + $0x8c] sm:$0xf]
  %v637 = vld [vmem:[%s4 + $0x90] sm:$0xf]
  %v638 = vld [vmem:[%s4 + $0x94] sm:$0xf]
  %v639 = vld [vmem:[%s4 + $0x98] sm:$0xf]
  %v640 = vld [vmem:[%s4 + $0x9c] sm:$0xf]
  %v641 = vld [vmem:[%s4 + $0xa0] sm:$0xf]
  %v642 = vld [vmem:[%s4 + $0xa4] sm:$0xf]
  %v643 = vld [vmem:[%s4 + $0xa8] sm:$0xf]
  %v644 = vld [vmem:[%s4 + $0xac] sm:$0xf]
  %v645 = vld [vmem:[%s4 + $0xb0] sm:$0xf]
  %v646 = vld [vmem:[%s4 + $0xb4] sm:$0xf]
  %v647 = vld [vmem:[%s4 + $0xb8] sm:$0xf]
  %v648 = vld [vmem:[%s4 + $0xbc] sm:$0xf]
  %v649 = vld [vmem:[%s4 + $0xc0] sm:$0xf]
  %v650 = vld [vmem:[%s4 + $0xc4] sm:$0xf]
  %v651 = vld [vmem:[%s4 + $0xc8] sm:$0xf]
  %v652 = vld [vmem:[%s4 + $0xcc] sm:$0xf]
  %v653 = vld [vmem:[%s4 + $0xd0] sm:$0xf]
  %v654 = vld [vmem:[%s4 + $0xd4] sm:$0xf]
  %v655 = vld [vmem:[%s4 + $0xd8] sm:$0xf]
  %v656 = vld [vmem:[%s4 + $0xdc] sm:$0xf]
  %v657 = vld [vmem:[%s4 + $0xe0] sm:$0xf]
  %v658 = vld [vmem:[%s4 + $0xe4] sm:$0xf]
  %v659 = vld [vmem:[%s4 + $0xe8] sm:$0xf]
  %v660 = vld [vmem:[%s4 + $0xec] sm:$0xf]
  %v661 = vld [vmem:[%s4 + $0xf0] sm:$0xf]
  %v662 = vld [vmem:[%s4 + $0xf4] sm:$0xf]
  %v663 = vld [vmem:[%s4 + $0xf8] sm:$0xf]
  %v664 = vld [vmem:[%s4 + $0xfc] sm:$0xf]
  %v665 = vld [vmem:[%s4 + $0x100] sm:$0xf]
  %v666 = vld [vmem:[%s4 + $0x104] sm:$0xf]
  %v667 = vld [vmem:[%s4 + $0x108] sm:$0xf]
  %v668 = vld [vmem:[%s4 + $0x10c] sm:$0xf]
  %v669 = vld [vmem:[%s4 + $0x110] sm:$0xf]
  %v670 = vld [vmem:[%s4 + $0x114] sm:$0xf]
  %v671 = vld [vmem:[%s4 + $0x118] sm:$0xf]
  %v672 = vld [vmem:[%s4 + $0x11c] sm:$0xf]
  %v673 = vld [vmem:[%s4 + $0x120] sm:$0xf]
  %v674 = vld [vmem:[%s4 + $0x124] sm:$0xf]
  %v675 = vld [vmem:[%s4 + $0x128] sm:$0xf]
  %v676 = vld [vmem:[%s4 + $0x12c] sm:$0xf]
  %v677 = vld [vmem:[%s4 + $0x130] sm:$0xf]
  %v678 = vld [vmem:[%s4 + $0x134] sm:$0xf]
  %v679 = vld [vmem:[%s4 + $0x138] sm:$0xf]
  %v680 = vld [vmem:[%s4 + $0x13c] sm:$0xf]
  %v681 = vld [vmem:[%s5 + $0x2] sm:$0x1]
  %v682 = vlaneseq
  %v683 = vshrl.u32 %v682, 7
  %v684 = vsub.s32 0, %v683
  %v685 = vrot.slane %v681, %v684
  %v761 = vunpack.c.l.b16 %v526
  %v762 = vunpack.c.h.b16 %v526
  %v763 = vunpack.c.l.b16 %v527
  %v764 = vunpack.c.h.b16 %v527
  %v765 = vunpack.c.l.b16 %v528
  %v766 = vunpack.c.l.b16 %v529
  %v767 = vunpack.c.h.b16 %v529
  %v768 = vunpack.c.l.b16 %v530
  %v769 = vunpack.c.h.b16 %v530
  %v770 = vunpack.c.l.b16 %v531
  %v771 = vunpack.c.l.b16 %v532
  %v772 = vunpack.c.h.b16 %v532
  %v773 = vunpack.c.l.b16 %v533
  %v774 = vunpack.c.h.b16 %v533
  %v775 = vunpack.c.l.b16 %v534
  %v776 = vunpack.c.l.b16 %v535
  %v777 = vunpack.c.h.b16 %v535
  %v778 = vunpack.c.l.b16 %v536
  %v779 = vunpack.c.h.b16 %v536
  %v780 = vunpack.c.l.b16 %v537
  %v781 = vunpack.c.l.b16 %v538
  %v782 = vunpack.c.h.b16 %v538
  %v783 = vunpack.c.l.b16 %v539
  %v784 = vunpack.c.h.b16 %v539
  %v785 = vunpack.c.l.b16 %v540
  %v786 = vunpack.c.l.b16 %v541
  %v787 = vunpack.c.h.b16 %v541
  %v788 = vunpack.c.l.b16 %v542
  %v789 = vunpack.c.h.b16 %v542
  %v790 = vunpack.c.l.b16 %v543
  %v791 = vunpack.c.l.b16 %v544
  %v792 = vunpack.c.h.b16 %v544
  %v793 = vunpack.c.l.b16 %v545
  %v794 = vunpack.c.h.b16 %v545
  %v795 = vunpack.c.l.b16 %v546
  %v796 = vunpack.c.l.b16 %v547
  %v797 = vunpack.c.h.b16 %v547
  %v798 = vunpack.c.l.b16 %v548
  %v799 = vunpack.c.h.b16 %v548
  %v800 = vunpack.c.l.b16 %v549
  %v801 = vunpack.c.l.b16 %v550
  %v802 = vunpack.c.h.b16 %v550
  %v803 = vunpack.c.l.b16 %v551
  %v804 = vunpack.c.h.b16 %v551
  %v805 = vunpack.c.l.b16 %v552
  %v806 = vunpack.c.l.b16 %v553
  %v807 = vunpack.c.h.b16 %v553
  %v808 = vunpack.c.l.b16 %v554
  %v809 = vunpack.c.h.b16 %v554
  %v810 = vunpack.c.l.b16 %v555
  %v811 = vunpack.c.l.b16 %v556
  %v812 = vunpack.c.h.b16 %v556
  %v813 = vunpack.c.l.b16 %v557
  %v814 = vunpack.c.h.b16 %v557
  %v815 = vunpack.c.l.b16 %v558
  %v816 = vunpack.c.l.b16 %v559
  %v817 = vunpack.c.h.b16 %v559
  %v818 = vunpack.c.l.b16 %v560
  %v819 = vunpack.c.h.b16 %v560
  %v820 = vunpack.c.l.b16 %v561
  %v821 = vunpack.c.l.b16 %v562
  %v822 = vunpack.c.h.b16 %v562
  %v823 = vunpack.c.l.b16 %v563
  %v824 = vunpack.c.h.b16 %v563
  %v825 = vunpack.c.l.b16 %v564
  %v826 = vunpack.c.l.b16 %v565
  %v827 = vunpack.c.h.b16 %v565
  %v828 = vunpack.c.l.b16 %v566
  %v829 = vunpack.c.h.b16 %v566
  %v830 = vunpack.c.l.b16 %v567
  %v831 = vunpack.c.l.b16 %v568
  %v832 = vunpack.c.h.b16 %v568
  %v833 = vunpack.c.l.b16 %v569
  %v834 = vunpack.c.h.b16 %v569
  %v835 = vunpack.c.l.b16 %v570
  %v836 = vunpack.c.l.b16 %v571
  %v837 = vunpack.c.h.b16 %v571
  %v838 = vunpack.c.l.b16 %v572
  %v839 = vunpack.c.h.b16 %v572
  %v840 = vunpack.c.l.b16 %v573
  %v841 = vunpack.c.l.b16 %v574
  %v842 = vunpack.c.h.b16 %v574
  %v843 = vunpack.c.l.b16 %v575
  %v844 = vunpack.c.h.b16 %v575
  %v845 = vunpack.c.l.b16 %v576
  %v846 = vunpack.c.l.b16 %v577
  %v847 = vunpack.c.h.b16 %v577
  %v848 = vunpack.c.l.b16 %v578
  %v849 = vunpack.c.h.b16 %v578
  %v850 = vunpack.c.l.b16 %v579
  %v851 = vunpack.c.l.b16 %v580
  %v852 = vunpack.c.h.b16 %v580
  %v853 = vunpack.c.l.b16 %v581
  %v854 = vunpack.c.h.b16 %v581
  %v855 = vunpack.c.l.b16 %v582
  %v856 = vunpack.c.l.b16 %v583
  %v857 = vunpack.c.h.b16 %v583
  %v858 = vunpack.c.l.b16 %v584
  %v859 = vunpack.c.h.b16 %v584
  %v860 = vunpack.c.l.b16 %v585
  %v861 = vunpack.c.l.b16 %v586
  %v862 = vunpack.c.h.b16 %v586
  %v863 = vunpack.c.l.b16 %v587
  %v864 = vunpack.c.h.b16 %v587
  %v865 = vunpack.c.l.b16 %v588
  %v866 = vunpack.c.l.b16 %v589
  %v867 = vunpack.c.h.b16 %v589
  %v868 = vunpack.c.l.b16 %v590
  %v869 = vunpack.c.h.b16 %v590
  %v870 = vunpack.c.l.b16 %v591
  %v871 = vunpack.c.l.b16 %v592
  %v872 = vunpack.c.h.b16 %v592
  %v873 = vunpack.c.l.b16 %v593
  %v874 = vunpack.c.h.b16 %v593
  %v875 = vunpack.c.l.b16 %v594
  %v876 = vunpack.c.l.b16 %v595
  %v877 = vunpack.c.h.b16 %v595
  %v878 = vunpack.c.l.b16 %v596
  %v879 = vunpack.c.h.b16 %v596
  %v880 = vunpack.c.l.b16 %v597
  %v881 = vunpack.c.l.b16 %v598
  %v882 = vunpack.c.h.b16 %v598
  %v883 = vunpack.c.l.b16 %v599
  %v884 = vunpack.c.h.b16 %v599
  %v885 = vunpack.c.l.b16 %v600
  %v886 = vpack.c.b16 %v766, %v761
  %v887 = vpack.c.b16 %v767, %v762
  %v888 = vpack.c.b16 %v768, %v763
  %v889 = vpack.c.b16 %v769, %v764
  %v890 = vpack.c.b16 %v770, %v765
  %v891 = vpack.c.b16 %v776, %v771
  %v892 = vpack.c.b16 %v777, %v772
  %v893 = vpack.c.b16 %v778, %v773
  %v894 = vpack.c.b16 %v779, %v774
  %v895 = vpack.c.b16 %v780, %v775
  %v896 = vpack.c.b16 %v786, %v781
  %v897 = vpack.c.b16 %v787, %v782
  %v898 = vpack.c.b16 %v788, %v783
  %v899 = vpack.c.b16 %v789, %v784
  %v900 = vpack.c.b16 %v790, %v785
  %v901 = vpack.c.b16 %v796, %v791
  %v902 = vpack.c.b16 %v797, %v792
  %v903 = vpack.c.b16 %v798, %v793
  %v904 = vpack.c.b16 %v799, %v794
  %v905 = vpack.c.b16 %v800, %v795
  %v906 = vpack.c.b16 %v806, %v801
  %v907 = vpack.c.b16 %v807, %v802
  %v908 = vpack.c.b16 %v808, %v803
  %v909 = vpack.c.b16 %v809, %v804
  %v910 = vpack.c.b16 %v810, %v805
  %v911 = vpack.c.b16 %v816, %v811
  %v912 = vpack.c.b16 %v817, %v812
  %v913 = vpack.c.b16 %v818, %v813
  %v914 = vpack.c.b16 %v819, %v814
  %v915 = vpack.c.b16 %v820, %v815
  %v916 = vpack.c.b16 %v826, %v821
  %v917 = vpack.c.b16 %v827, %v822
  %v918 = vpack.c.b16 %v828, %v823
  %v919 = vpack.c.b16 %v829, %v824
  %v920 = vpack.c.b16 %v830, %v825
  %v921 = vpack.c.b16 %v836, %v831
  %v922 = vpack.c.b16 %v837, %v832
  %v923 = vpack.c.b16 %v838, %v833
  %v924 = vpack.c.b16 %v839, %v834
  %v925 = vpack.c.b16 %v840, %v835
  %v926 = vpack.c.b16 %v846, %v841
  %v927 = vpack.c.b16 %v847, %v842
  %v928 = vpack.c.b16 %v848, %v843
  %v929 = vpack.c.b16 %v849, %v844
  %v930 = vpack.c.b16 %v850, %v845
  %v931 = vpack.c.b16 %v856, %v851
  %v932 = vpack.c.b16 %v857, %v852
  %v933 = vpack.c.b16 %v858, %v853
  %v934 = vpack.c.b16 %v859, %v854
  %v935 = vpack.c.b16 %v860, %v855
  %v936 = vpack.c.b16 %v866, %v861
  %v937 = vpack.c.b16 %v867, %v862
  %v938 = vpack.c.b16 %v868, %v863
  %v939 = vpack.c.b16 %v869, %v864
  %v940 = vpack.c.b16 %v870, %v865
  %v941 = vpack.c.b16 %v876, %v871
  %v942 = vpack.c.b16 %v877, %v872
  %v943 = vpack.c.b16 %v878, %v873
  %v944 = vpack.c.b16 %v879, %v874
  %v945 = vpack.c.b16 %v880, %v875
  %v946 = vpack.c.b16 %v881, %v881
  %v947 = vpack.c.b16 %v882, %v882
  %v948 = vpack.c.b16 %v883, %v883
  %v949 = vpack.c.b16 %v884, %v884
  %v950 = vpack.c.b16 %v885, %v885
  %v1096 = vunpack.c.l.b16 %v601
  %v1097 = vunpack.c.l.b16 %v602
  %v1098 = vunpack.c.l.b16 %v603
  %v1099 = vunpack.c.l.b16 %v604
  %v1100 = vunpack.c.l.b16 %v605
  %v1101 = vunpack.c.l.b16 %v606
  %v1102 = vunpack.c.l.b16 %v607
  %v1103 = vunpack.c.l.b16 %v608
  %v1104 = vunpack.c.l.b16 %v609
  %v1105 = vunpack.c.l.b16 %v610
  %v1106 = vunpack.c.l.b16 %v611
  %v1107 = vunpack.c.l.b16 %v612
  %v1108 = vunpack.c.l.b16 %v613
  %v1109 = vunpack.c.l.b16 %v614
  %v1110 = vunpack.c.l.b16 %v615
  %v1111 = vunpack.c.l.b16 %v616
  %v1112 = vunpack.c.l.b16 %v617
  %v1113 = vunpack.c.l.b16 %v618
  %v1114 = vunpack.c.l.b16 %v619
  %v1115 = vunpack.c.l.b16 %v620
  %v1116 = vunpack.c.l.b16 %v621
  %v1117 = vunpack.c.l.b16 %v622
  %v1118 = vunpack.c.l.b16 %v623
  %v1119 = vunpack.c.l.b16 %v624
  %v1120 = vunpack.c.l.b16 %v625
  %v1121 = vunpack.c.l.b16 %v626
  %v1122 = vunpack.c.l.b16 %v627
  %v1123 = vunpack.c.l.b16 %v628
  %v1124 = vunpack.c.l.b16 %v629
  %v1125 = vunpack.c.l.b16 %v630
  %v1126 = vunpack.c.l.b16 %v631
  %v1127 = vunpack.c.l.b16 %v632
  %v1128 = vunpack.c.l.b16 %v633
  %v1129 = vunpack.c.l.b16 %v634
  %v1130 = vunpack.c.l.b16 %v635
  %v1131 = vunpack.c.l.b16 %v636
  %v1132 = vunpack.c.l.b16 %v637
  %v1133 = vunpack.c.l.b16 %v638
  %v1134 = vunpack.c.l.b16 %v639
  %v1135 = vunpack.c.l.b16 %v640
  %v1136 = vunpack.c.l.b16 %v641
  %v1137 = vunpack.c.l.b16 %v642
  %v1138 = vunpack.c.l.b16 %v643
  %v1139 = vunpack.c.l.b16 %v644
  %v1140 = vunpack.c.l.b16 %v645
  %v1141 = vunpack.c.l.b16 %v646
  %v1142 = vunpack.c.l.b16 %v647
  %v1143 = vunpack.c.l.b16 %v648
  %v1144 = vunpack.c.l.b16 %v649
  %v1145 = vunpack.c.l.b16 %v650
  %v1146 = vunpack.c.l.b16 %v651
  %v1147 = vunpack.c.l.b16 %v652
  %v1148 = vunpack.c.l.b16 %v653
  %v1149 = vunpack.c.l.b16 %v654
  %v1150 = vunpack.c.l.b16 %v655
  %v1151 = vunpack.c.l.b16 %v656
  %v1152 = vunpack.c.l.b16 %v657
  %v1153 = vunpack.c.l.b16 %v658
  %v1154 = vunpack.c.l.b16 %v659
  %v1155 = vunpack.c.l.b16 %v660
  %v1156 = vunpack.c.l.b16 %v661
  %v1157 = vunpack.c.l.b16 %v662
  %v1158 = vunpack.c.l.b16 %v663
  %v1159 = vunpack.c.l.b16 %v664
  %v1160 = vunpack.c.l.b16 %v665
  %v1161 = vunpack.c.l.b16 %v666
  %v1162 = vunpack.c.l.b16 %v667
  %v1163 = vunpack.c.l.b16 %v668
  %v1164 = vunpack.c.l.b16 %v669
  %v1165 = vunpack.c.l.b16 %v670
  %v1166 = vunpack.c.l.b16 %v671
  %v1167 = vunpack.c.l.b16 %v672
  %v1168 = vunpack.c.l.b16 %v673
  %v1169 = vunpack.c.l.b16 %v674
  %v1170 = vunpack.c.l.b16 %v675
  %v1171 = vunpack.c.l.b16 %v676
  %v1172 = vunpack.c.l.b16 %v677
  %v1173 = vunpack.c.l.b16 %v678
  %v1174 = vunpack.c.l.b16 %v679
  %v1175 = vunpack.c.l.b16 %v680
  %v1176 = vpack.c.b16 %v1097, %v1096
  %v1177 = vpack.c.b16 %v1099, %v1098
  %v1178 = vpack.c.b16 %v1101, %v1100
  %v1179 = vpack.c.b16 %v1103, %v1102
  %v1180 = vpack.c.b16 %v1105, %v1104
  %v1181 = vpack.c.b16 %v1107, %v1106
  %v1182 = vpack.c.b16 %v1109, %v1108
  %v1183 = vpack.c.b16 %v1111, %v1110
  %v1184 = vpack.c.b16 %v1113, %v1112
  %v1185 = vpack.c.b16 %v1115, %v1114
  %v1186 = vpack.c.b16 %v1117, %v1116
  %v1187 = vpack.c.b16 %v1119, %v1118
  %v1188 = vpack.c.b16 %v1121, %v1120
  %v1189 = vpack.c.b16 %v1123, %v1122
  %v1190 = vpack.c.b16 %v1125, %v1124
  %v1191 = vpack.c.b16 %v1127, %v1126
  %v1192 = vpack.c.b16 %v1129, %v1128
  %v1193 = vpack.c.b16 %v1131, %v1130
  %v1194 = vpack.c.b16 %v1133, %v1132
  %v1195 = vpack.c.b16 %v1135, %v1134
  %v1196 = vpack.c.b16 %v1137, %v1136
  %v1197 = vpack.c.b16 %v1139, %v1138
  %v1198 = vpack.c.b16 %v1141, %v1140
  %v1199 = vpack.c.b16 %v1143, %v1142
  %v1200 = vpack.c.b16 %v1145, %v1144
  %v1201 = vpack.c.b16 %v1147, %v1146
  %v1202 = vpack.c.b16 %v1149, %v1148
  %v1203 = vpack.c.b16 %v1151, %v1150
  %v1204 = vpack.c.b16 %v1153, %v1152
  %v1205 = vpack.c.b16 %v1155, %v1154
  %v1206 = vpack.c.b16 %v1157, %v1156
  %v1207 = vpack.c.b16 %v1159, %v1158
  %v1208 = vpack.c.b16 %v1161, %v1160
  %v1209 = vpack.c.b16 %v1163, %v1162
  %v1210 = vpack.c.b16 %v1165, %v1164
  %v1211 = vpack.c.b16 %v1167, %v1166
  %v1212 = vpack.c.b16 %v1169, %v1168
  %v1213 = vpack.c.b16 %v1171, %v1170
  %v1214 = vpack.c.b16 %v1173, %v1172
  %v1215 = vpack.c.b16 %v1175, %v1174
  %1256 = vmatprep.subr.bf16.mxu0 0
  %1257 = vmatpush1.bf16.msra.mxu0 %v1176
  %1258 = vmatprep.subr.bf16.mxu0 0
  %1259 = vmatpush1.bf16.msra.mxu0 %v1177
  %1260 = vmatprep.subr.bf16.mxu0 0
  %1261 = vmatpush1.bf16.msra.mxu0 %v1178
  %1262 = vmatprep.subr.bf16.mxu0 0
  %1263 = vmatpush1.bf16.msra.mxu0 %v1179
  %1264 = vmatprep.subr.bf16.mxu0 0
  %1265 = vmatpush1.bf16.msra.mxu0 %v1180
  %1266 = vmatprep.subr.bf16.mxu0 0
  %1267 = vmatpush1.bf16.msra.mxu0 %v1181
  %1268 = vmatprep.subr.bf16.mxu0 0
  %1269 = vmatpush1.bf16.msra.mxu0 %v1182
  %1270 = vmatprep.subr.bf16.mxu0 0
  %1271 = vmatpush1.bf16.msra.mxu0 %v1183
  %1272 = vmatprep.subr.bf16.mxu0 0
  %1273 = vmatpush1.bf16.msra.mxu0 %v1184
  %1274 = vmatprep.subr.bf16.mxu0 0
  %1275 = vmatpush1.bf16.msra.mxu0 %v1185
  %1276 = vmatprep.subr.bf16.mxu0 0
  %1277 = vmatpush1.bf16.msra.mxu0 %v1186
  %1278 = vmatprep.subr.bf16.mxu0 0
  %1279 = vmatpush1.bf16.msra.mxu0 %v1187
  %1280 = vmatprep.subr.bf16.mxu0 0
  %1281 = vmatpush1.bf16.msra.mxu0 %v1188
  %1282 = vmatprep.subr.bf16.mxu0 0
  %1283 = vmatpush1.bf16.msra.mxu0 %v1189
  %1284 = vmatprep.subr.bf16.mxu0 0
  %1285 = vmatpush1.bf16.msra.mxu0 %v1190
  %1286 = vmatprep.subr.bf16.mxu0 0
  %1287 = vmatpush1.bf16.msra.mxu0 %v1191
  %1288 = vmatprep.mubr.bf16.mxu0 %v887
  %1289 = vmatmul.mubr.bf16.gmra.mrb[0].mxu0 %v886
  %v1290 = vpop.f32.mrb[0].mxu0
  %v1291 = vadd.f32 %v685, %v1290
  %v1292 = vpop.f32.mrb[0].mxu0
  %v1293 = vpop.f32.mrb[0].mxu0
  %v1294 = vadd.f32 %v685, %v1293
  %v1295 = vpop.f32.mrb[0].mxu0
  %1296 = vmatprep.mubr.bf16.mxu0 %v892
  %1297 = vmatmul.mubr.bf16.gmra.mrb[0].mxu0 %v891
  %v1298 = vpop.f32.mrb[0].mxu0
  %v1299 = vadd.f32 %v685, %v1298
  %v1300 = vpop.f32.mrb[0].mxu0
  %v1301 = vpop.f32.mrb[0].mxu0
  %v1302 = vadd.f32 %v685, %v1301
  %v1303 = vpop.f32.mrb[0].mxu0
  %1304 = vmatprep.mubr.bf16.mxu0 %v897
  %1305 = vmatmul.mubr.bf16.gmra.mrb[0].mxu0 %v896
  %v1306 = vpop.f32.mrb[0].mxu0
  %v1307 = vadd.f32 %v685, %v1306
  %v1308 = vpop.f32.mrb[0].mxu0
  %v1309 = vpop.f32.mrb[0].mxu0
  %v1310 = vadd.f32 %v685, %v1309
  %v1311 = vpop.f32.mrb[0].mxu0
  %1312 = vmatprep.mubr.bf16.mxu0 %v902
  %1313 = vmatmul.mubr.bf16.gmra.mrb[0].mxu0 %v901
  %v1314 = vpop.f32.mrb[0].mxu0
  %v1315 = vadd.f32 %v685, %v1314
  %v1316 = vpop.f32.mrb[0].mxu0
  %v1317 = vpop.f32.mrb[0].mxu0
  %v1318 = vadd.f32 %v685, %v1317
  %v1319 = vpop.f32.mrb[0].mxu0
  %1320 = vmatprep.mubr.bf16.mxu0 %v907
  %1321 = vmatmul.mubr.bf16.gmra.mrb[0].mxu0 %v906
  %v1322 = vpop.f32.mrb[0].mxu0
  %v1323 = vadd.f32 %v685, %v1322
  %v1324 = vpop.f32.mrb[0].mxu0
  %v1325 = vpop.f32.mrb[0].mxu0
  %v1326 = vadd.f32 %v685, %v1325
  %v1327 = vpop.f32.mrb[0].mxu0
  %1328 = vmatprep.mubr.bf16.mxu0 %v912
  %1329 = vmatmul.mubr.bf16.gmra.mrb[0].mxu0 %v911
  %v1330 = vpop.f32.mrb[0].mxu0
  %v1331 = vadd.f32 %v685, %v1330
  %v1332 = vpop.f32.mrb[0].mxu0
  %v1333 = vpop.f32.mrb[0].mxu0
  %v1334 = vadd.f32 %v685, %v1333
  %v1335 = vpop.f32.mrb[0].mxu0
  %1336 = vmatprep.mubr.bf16.mxu0 %v917
  %1337 = vmatmul.mubr.bf16.gmra.mrb[0].mxu0 %v916
  %v1338 = vpop.f32.mrb[0].mxu0
  %v1339 = vadd.f32 %v685, %v1338
  %v1340 = vpop.f32.mrb[0].mxu0
  %v1341 = vpop.f32.mrb[0].mxu0
  %v1342 = vadd.f32 %v685, %v1341
  %v1343 = vpop.f32.mrb[0].mxu0
  %1344 = vmatprep.mubr.bf16.mxu0 %v922
  %1345 = vmatmul.mubr.bf16.gmra.mrb[0].mxu0 %v921
  %v1346 = vpop.f32.mrb[0].mxu0
  %v1347 = vadd.f32 %v685, %v1346
  %v1348 = vpop.f32.mrb[0].mxu0
  %v1349 = vpop.f32.mrb[0].mxu0
  %v1350 = vadd.f32 %v685, %v1349
  %v1351 = vpop.f32.mrb[0].mxu0
  %1352 = vmatprep.mubr.bf16.mxu0 %v927
  %1353 = vmatmul.mubr.bf16.gmra.mrb[0].mxu0 %v926
  %v1354 = vpop.f32.mrb[0].mxu0
  %v1355 = vadd.f32 %v685, %v1354
  %v1356 = vpop.f32.mrb[0].mxu0
  %v1357 = vpop.f32.mrb[0].mxu0
  %v1358 = vadd.f32 %v685, %v1357
  %v1359 = vpop.f32.mrb[0].mxu0
  %1360 = vmatprep.mubr.bf16.mxu0 %v932
  %1361 = vmatmul.mubr.bf16.gmra.mrb[0].mxu0 %v931
  %v1362 = vpop.f32.mrb[0].mxu0
  %v1363 = vadd.f32 %v685, %v1362
  %v1364 = vpop.f32.mrb[0].mxu0
  %v1365 = vpop.f32.mrb[0].mxu0
  %v1366 = vadd.f32 %v685, %v1365
  %v1367 = vpop.f32.mrb[0].mxu0
  %1368 = vmatprep.mubr.bf16.mxu0 %v937
  %1369 = vmatmul.mubr.bf16.gmra.mrb[0].mxu0 %v936
  %v1370 = vpop.f32.mrb[0].mxu0
  %v1371 = vadd.f32 %v685, %v1370
  %v1372 = vpop.f32.mrb[0].mxu0
  %v1373 = vpop.f32.mrb[0].mxu0
  %v1374 = vadd.f32 %v685, %v1373
  %v1375 = vpop.f32.mrb[0].mxu0
  %1376 = vmatprep.mubr.bf16.mxu0 %v942
  %1377 = vmatmul.mubr.bf16.gmra.mrb[0].mxu0 %v941
  %v1378 = vpop.f32.mrb[0].mxu0
  %v1379 = vadd.f32 %v685, %v1378
  %v1380 = vpop.f32.mrb[0].mxu0
  %v1381 = vpop.f32.mrb[0].mxu0
  %v1382 = vadd.f32 %v685, %v1381
  %v1383 = vpop.f32.mrb[0].mxu0
  %1384 = vmatprep.mubr.bf16.mxu0 %v947
  %1385 = vmatmul.mubr.bf16.gmra.mrb[0].mxu0 %v946
  %v1386 = vpop.f32.mrb[0].mxu0
  %v1387 = vadd.f32 %v685, %v1386
  %v1388 = vpop.f32.mrb[0].mxu0
  %v1389 = vpop.f32.mrb[0].mxu0
  %v1390 = vpop.f32.mrb[0].mxu0
  %1391 = vdwg.mxu0
  %1392 = vmatprep.subr.bf16.mxu0 0
  %1393 = vmatpush1.bf16.msra.mxu0 %v1192
  %1394 = vmatprep.subr.bf16.mxu0 0
  %1395 = vmatpush1.bf16.msra.mxu0 %v1193
  %1396 = vmatprep.subr.bf16.mxu0 0
  %1397 = vmatpush1.bf16.msra.mxu0 %v1194
  %1398 = vmatprep.subr.bf16.mxu0 0
  %1399 = vmatpush1.bf16.msra.mxu0 %v1195
  %1400 = vmatprep.subr.bf16.mxu0 0
  %1401 = vmatpush1.bf16.msra.mxu0 %v1196
  %1402 = vmatprep.subr.bf16.mxu0 0
  %1403 = vmatpush1.bf16.msra.mxu0 %v1197
  %1404 = vmatprep.subr.bf16.mxu0 0
  %1405 = vmatpush1.bf16.msra.mxu0 %v1198
  %1406 = vmatprep.subr.bf16.mxu0 0
  %1407 = vmatpush1.bf16.msra.mxu0 %v1199
  %1408 = vmatprep.subr.bf16.mxu0 0
  %1409 = vmatpush1.bf16.msra.mxu0 %v1200
  %1410 = vmatprep.subr.bf16.mxu0 0
  %1411 = vmatpush1.bf16.msra.mxu0 %v1201
  %1412 = vmatprep.subr.bf16.mxu0 0
  %1413 = vmatpush1.bf16.msra.mxu0 %v1202
  %1414 = vmatprep.subr.bf16.mxu0 0
  %1415 = vmatpush1.bf16.msra.mxu0 %v1203
  %1416 = vmatprep.subr.bf16.mxu0 0
  %1417 = vmatpush1.bf16.msra.mxu0 %v1204
  %1418 = vmatprep.subr.bf16.mxu0 0
  %1419 = vmatpush1.bf16.msra.mxu0 %v1205
  %1420 = vmatprep.subr.bf16.mxu0 0
  %1421 = vmatpush1.bf16.msra.mxu0 %v1206
  %1422 = vmatprep.subr.bf16.mxu0 0
  %1423 = vmatpush1.bf16.msra.mxu0 %v1207
  %1424 = vmatprep.mubr.bf16.mxu0 %v889
  %1425 = vmatmul.mubr.bf16.gmra.mrb[0].mxu0 %v888
  %v1426 = vpop.f32.mrb[0].mxu0
  %v1427 = vadd.f32 %v1291, %v1426
  %v1428 = vpop.f32.mrb[0].mxu0
  %v1429 = vpop.f32.mrb[0].mxu0
  %v1430 = vadd.f32 %v1294, %v1429
  %v1431 = vpop.f32.mrb[0].mxu0
  %1432 = vmatprep.mubr.bf16.mxu0 %v894
  %1433 = vmatmul.mubr.bf16.gmra.mrb[0].mxu0 %v893
  %v1434 = vpop.f32.mrb[0].mxu0
  %v1435 = vadd.f32 %v1299, %v1434
  %v1436 = vpop.f32.mrb[0].mxu0
  %v1437 = vpop.f32.mrb[0].mxu0
  %v1438 = vadd.f32 %v1302, %v1437
  %v1439 = vpop.f32.mrb[0].mxu0
  %1440 = vmatprep.mubr.bf16.mxu0 %v899
  %1441 = vmatmul.mubr.bf16.gmra.mrb[0].mxu0 %v898
  %v1442 = vpop.f32.mrb[0].mxu0
  %v1443 = vadd.f32 %v1307, %v1442
  %v1444 = vpop.f32.mrb[0].mxu0
  %v1445 = vpop.f32.mrb[0].mxu0
  %v1446 = vadd.f32 %v1310, %v1445
  %v1447 = vpop.f32.mrb[0].mxu0
  %1448 = vmatprep.mubr.bf16.mxu0 %v904
  %1449 = vmatmul.mubr.bf16.gmra.mrb[0].mxu0 %v903
  %v1450 = vpop.f32.mrb[0].mxu0
  %v1451 = vadd.f32 %v1315, %v1450
  %v1452 = vpop.f32.mrb[0].mxu0
  %v1453 = vpop.f32.mrb[0].mxu0
  %v1454 = vadd.f32 %v1318, %v1453
  %v1455 = vpop.f32.mrb[0].mxu0
  %1456 = vmatprep.mubr.bf16.mxu0 %v909
  %1457 = vmatmul.mubr.bf16.gmra.mrb[0].mxu0 %v908
  %v1458 = vpop.f32.mrb[0].mxu0
  %v1459 = vadd.f32 %v1323, %v1458
  %v1460 = vpop.f32.mrb[0].mxu0
  %v1461 = vpop.f32.mrb[0].mxu0
  %v1462 = vadd.f32 %v1326, %v1461
  %v1463 = vpop.f32.mrb[0].mxu0
  %1464 = vmatprep.mubr.bf16.mxu0 %v914
  %1465 = vmatmul.mubr.bf16.gmra.mrb[0].mxu0 %v913
  %v1466 = vpop.f32.mrb[0].mxu0
  %v1467 = vadd.f32 %v1331, %v1466
  %v1468 = vpop.f32.mrb[0].mxu0
  %v1469 = vpop.f32.mrb[0].mxu0
  %v1470 = vadd.f32 %v1334, %v1469
  %v1471 = vpop.f32.mrb[0].mxu0
  %1472 = vmatprep.mubr.bf16.mxu0 %v919
  %1473 = vmatmul.mubr.bf16.gmra.mrb[0].mxu0 %v918
  %v1474 = vpop.f32.mrb[0].mxu0
  %v1475 = vadd.f32 %v1339, %v1474
  %v1476 = vpop.f32.mrb[0].mxu0
  %v1477 = vpop.f32.mrb[0].mxu0
  %v1478 = vadd.f32 %v1342, %v1477
  %v1479 = vpop.f32.mrb[0].mxu0
  %1480 = vmatprep.mubr.bf16.mxu0 %v924
  %1481 = vmatmul.mubr.bf16.gmra.mrb[0].mxu0 %v923
  %v1482 = vpop.f32.mrb[0].mxu0
  %v1483 = vadd.f32 %v1347, %v1482
  %v1484 = vpop.f32.mrb[0].mxu0
  %v1485 = vpop.f32.mrb[0].mxu0
  %v1486 = vadd.f32 %v1350, %v1485
  %v1487 = vpop.f32.mrb[0].mxu0
  %1488 = vmatprep.mubr.bf16.mxu0 %v929
  %1489 = vmatmul.mubr.bf16.gmra.mrb[0].mxu0 %v928
  %v1490 = vpop.f32.mrb[0].mxu0
  %v1491 = vadd.f32 %v1355, %v1490
  %v1492 = vpop.f32.mrb[0].mxu0
  %v1493 = vpop.f32.mrb[0].mxu0
  %v1494 = vadd.f32 %v1358, %v1493
  %v1495 = vpop.f32.mrb[0].mxu0
  %1496 = vmatprep.mubr.bf16.mxu0 %v934
  %1497 = vmatmul.mubr.bf16.gmra.mrb[0].mxu0 %v933
  %v1498 = vpop.f32.mrb[0].mxu0
  %v1499 = vadd.f32 %v1363, %v1498
  %v1500 = vpop.f32.mrb[0].mxu0
  %v1501 = vpop.f32.mrb[0].mxu0
  %v1502 = vadd.f32 %v1366, %v1501
  %v1503 = vpop.f32.mrb[0].mxu0
  %1504 = vmatprep.mubr.bf16.mxu0 %v939
  %1505 = vmatmul.mubr.bf16.gmra.mrb[0].mxu0 %v938
  %v1506 = vpop.f32.mrb[0].mxu0
  %v1507 = vadd.f32 %v1371, %v1506
  %v1508 = vpop.f32.mrb[0].mxu0
  %v1509 = vpop.f32.mrb[0].mxu0
  %v1510 = vadd.f32 %v1374, %v1509
  %v1511 = vpop.f32.mrb[0].mxu0
  %1512 = vmatprep.mubr.bf16.mxu0 %v944
  %1513 = vmatmul.mubr.bf16.gmra.mrb[0].mxu0 %v943
  %v1514 = vpop.f32.mrb[0].mxu0
  %v1515 = vadd.f32 %v1379, %v1514
  %v1516 = vpop.f32.mrb[0].mxu0
  %v1517 = vpop.f32.mrb[0].mxu0
  %v1518 = vadd.f32 %v1382, %v1517
  %v1519 = vpop.f32.mrb[0].mxu0
  %1520 = vmatprep.mubr.bf16.mxu0 %v949
  %1521 = vmatmul.mubr.bf16.gmra.mrb[0].mxu0 %v948
  %v1522 = vpop.f32.mrb[0].mxu0
  %v1523 = vadd.f32 %v1387, %v1522
  %v1524 = vpop.f32.mrb[0].mxu0
  %v1525 = vpop.f32.mrb[0].mxu0
  %v1526 = vpop.f32.mrb[0].mxu0
  %1527 = vdwg.mxu0
  %1528 = vmatprep.subr.bf16.mxu0 0
  %1529 = vmatpush1.bf16.msra.mxu0 %v1208
  %1530 = vmatprep.subr.bf16.mxu0 0
  %1531 = vmatpush1.bf16.msra.mxu0 %v1209
  %1532 = vmatprep.subr.bf16.mxu0 0
  %1533 = vmatpush1.bf16.msra.mxu0 %v1210
  %1534 = vmatprep.subr.bf16.mxu0 0
  %1535 = vmatpush1.bf16.msra.mxu0 %v1211
  %1536 = vmatprep.subr.bf16.mxu0 0
  %1537 = vmatpush1.bf16.msra.mxu0 %v1212
  %1538 = vmatprep.subr.bf16.mxu0 0
  %1539 = vmatpush1.bf16.msra.mxu0 %v1213
  %1540 = vmatprep.subr.bf16.mxu0 0
  %1541 = vmatpush1.bf16.msra.mxu0 %v1214
  %1542 = vmatprep.subr.bf16.mxu0 0
  %1543 = vmatpush1.bf16.msra.mxu0 %v1215
  %1544 = vmatprep.subr.bf16.mxu0 0
  %1545 = vmatpush1.bf16.msra.mxu0 0
  %1546 = vmatprep.subr.bf16.mxu0 0
  %1547 = vmatpush1.bf16.msra.mxu0 0
  %1548 = vmatprep.subr.bf16.mxu0 0
  %1549 = vmatpush1.bf16.msra.mxu0 0
  %1550 = vmatprep.subr.bf16.mxu0 0
  %1551 = vmatpush1.bf16.msra.mxu0 0
  %1552 = vmatprep.subr.bf16.mxu0 0
  %1553 = vmatpush1.bf16.msra.mxu0 0
  %1554 = vmatprep.subr.bf16.mxu0 0
  %1555 = vmatpush1.bf16.msra.mxu0 0
  %1556 = vmatprep.subr.bf16.mxu0 0
  %1557 = vmatpush1.bf16.msra.mxu0 0
  %1558 = vmatprep.subr.bf16.mxu0 0
  %1559 = vmatpush1.bf16.msra.mxu0 0
  %1560 = vmatprep.mubr.bf16.mxu0 0
  %1561 = vmatmul.mubr.bf16.gmra.mrb[0].mxu0 %v890
  %v1562 = vpop.f32.mrb[0].mxu0
  %v1563 = vadd.f32 %v1427, %v1562
  %v1564 = vpop.f32.mrb[0].mxu0
  %v1565 = vpop.f32.mrb[0].mxu0
  %v1566 = vadd.f32 %v1430, %v1565
  %v1567 = vpop.f32.mrb[0].mxu0
  %1568 = vmatprep.mubr.bf16.mxu0 0
  %1569 = vmatmul.mubr.bf16.gmra.mrb[0].mxu0 %v895
  %v1570 = vpop.f32.mrb[0].mxu0
  %v1571 = vadd.f32 %v1435, %v1570
  %v1572 = vpop.f32.mrb[0].mxu0
  %v1573 = vpop.f32.mrb[0].mxu0
  %v1574 = vadd.f32 %v1438, %v1573
  %v1575 = vpop.f32.mrb[0].mxu0
  %1576 = vmatprep.mubr.bf16.mxu0 0
  %1577 = vmatmul.mubr.bf16.gmra.mrb[0].mxu0 %v900
  %v1578 = vpop.f32.mrb[0].mxu0
  %v1579 = vadd.f32 %v1443, %v1578
  %v1580 = vpop.f32.mrb[0].mxu0
  %v1581 = vpop.f32.mrb[0].mxu0
  %v1582 = vadd.f32 %v1446, %v1581
  %v1583 = vpop.f32.mrb[0].mxu0
  %1584 = vmatprep.mubr.bf16.mxu0 0
  %1585 = vmatmul.mubr.bf16.gmra.mrb[0].mxu0 %v905
  %v1586 = vpop.f32.mrb[0].mxu0
  %v1587 = vadd.f32 %v1451, %v1586
  %v1588 = vpop.f32.mrb[0].mxu0
  %v1589 = vpop.f32.mrb[0].mxu0
  %v1590 = vadd.f32 %v1454, %v1589
  %v1591 = vpop.f32.mrb[0].mxu0
  %1592 = vmatprep.mubr.bf16.mxu0 0
  %1593 = vmatmul.mubr.bf16.gmra.mrb[0].mxu0 %v910
  %v1594 = vpop.f32.mrb[0].mxu0
  %v1595 = vadd.f32 %v1459, %v1594
  %v1596 = vpop.f32.mrb[0].mxu0
  %v1597 = vpop.f32.mrb[0].mxu0
  %v1598 = vadd.f32 %v1462, %v1597
  %v1599 = vpop.f32.mrb[0].mxu0
  %1600 = vmatprep.mubr.bf16.mxu0 0
  %1601 = vmatmul.mubr.bf16.gmra.mrb[0].mxu0 %v915
  %v1602 = vpop.f32.mrb[0].mxu0
  %v1603 = vadd.f32 %v1467, %v1602
  %v1604 = vpop.f32.mrb[0].mxu0
  %v1605 = vpop.f32.mrb[0].mxu0
  %v1606 = vadd.f32 %v1470, %v1605
  %v1607 = vpop.f32.mrb[0].mxu0
  %1608 = vmatprep.mubr.bf16.mxu0 0
  %1609 = vmatmul.mubr.bf16.gmra.mrb[0].mxu0 %v920
  %v1610 = vpop.f32.mrb[0].mxu0
  %v1611 = vadd.f32 %v1475, %v1610
  %v1612 = vpop.f32.mrb[0].mxu0
  %v1613 = vpop.f32.mrb[0].mxu0
  %v1614 = vadd.f32 %v1478, %v1613
  %v1615 = vpop.f32.mrb[0].mxu0
  %1616 = vmatprep.mubr.bf16.mxu0 0
  %1617 = vmatmul.mubr.bf16.gmra.mrb[0].mxu0 %v925
  %v1618 = vpop.f32.mrb[0].mxu0
  %v1619 = vadd.f32 %v1483, %v1618
  %v1620 = vpop.f32.mrb[0].mxu0
  %v1621 = vpop.f32.mrb[0].mxu0
  %v1622 = vadd.f32 %v1486, %v1621
  %v1623 = vpop.f32.mrb[0].mxu0
  %1624 = vmatprep.mubr.bf16.mxu0 0
  %1625 = vmatmul.mubr.bf16.gmra.mrb[0].mxu0 %v930
  %v1626 = vpop.f32.mrb[0].mxu0
  %v1627 = vadd.f32 %v1491, %v1626
  %v1628 = vpop.f32.mrb[0].mxu0
  %v1629 = vpop.f32.mrb[0].mxu0
  %v1630 = vadd.f32 %v1494, %v1629
  %v1631 = vpop.f32.mrb[0].mxu0
  %1632 = vmatprep.mubr.bf16.mxu0 0
  %1633 = vmatmul.mubr.bf16.gmra.mrb[0].mxu0 %v935
  %v1634 = vpop.f32.mrb[0].mxu0
  %v1635 = vadd.f32 %v1499, %v1634
  %v1636 = vpop.f32.mrb[0].mxu0
  %v1637 = vpop.f32.mrb[0].mxu0
  %v1638 = vadd.f32 %v1502, %v1637
  %v1639 = vpop.f32.mrb[0].mxu0
  %1640 = vmatprep.mubr.bf16.mxu0 0
  %1641 = vmatmul.mubr.bf16.gmra.mrb[0].mxu0 %v940
  %v1642 = vpop.f32.mrb[0].mxu0
  %v1643 = vadd.f32 %v1507, %v1642
  %v1644 = vpop.f32.mrb[0].mxu0
  %v1645 = vpop.f32.mrb[0].mxu0
  %v1646 = vadd.f32 %v1510, %v1645
  %v1647 = vpop.f32.mrb[0].mxu0
  %1648 = vmatprep.mubr.bf16.mxu0 0
  %1649 = vmatmul.mubr.bf16.gmra.mrb[0].mxu0 %v945
  %v1650 = vpop.f32.mrb[0].mxu0
  %v1651 = vadd.f32 %v1515, %v1650
  %v1652 = vpop.f32.mrb[0].mxu0
  %v1653 = vpop.f32.mrb[0].mxu0
  %v1654 = vadd.f32 %v1518, %v1653
  %v1655 = vpop.f32.mrb[0].mxu0
  %1656 = vmatprep.mubr.bf16.mxu0 0
  %1657 = vmatmul.mubr.bf16.gmra.mrb[0].mxu0 %v950
  %v1658 = vpop.f32.mrb[0].mxu0
  %v1659 = vadd.f32 %v1523, %v1658
  %v1660 = vpop.f32.mrb[0].mxu0
  %v1661 = vpop.f32.mrb[0].mxu0
  %v1662 = vpop.f32.mrb[0].mxu0
  %1663 = vdwg.mxu0
  %v1664 = vld [vmem:[#allocation2] sm:$0xff]
  %v1665 = vld [vmem:[#allocation2 + $0x8] sm:$0xff]
  %v1666 = vld [vmem:[#allocation2 + $0x10] sm:$0xff]
  %v1667 = vld [vmem:[#allocation2 + $0x18] sm:$0xff]
  %v1668 = vld [vmem:[#allocation2 + $0x20] sm:$0xff]
  %v1669 = vld [vmem:[#allocation2 + $0x28] sm:$0xff]
  %v1670 = vld [vmem:[#allocation2 + $0x30] sm:$0xff]
  %v1671 = vld [vmem:[#allocation2 + $0x38] sm:$0xff]
  %v1672 = vld [vmem:[#allocation2 + $0x40] sm:$0xff]
  %v1673 = vld [vmem:[#allocation2 + $0x48] sm:$0xff]
  %v1674 = vld [vmem:[#allocation2 + $0x50] sm:$0xff]
  %v1675 = vld [vmem:[#allocation2 + $0x58] sm:$0xff]
  %v1676 = vld [vmem:[#allocation2 + $0x60] sm:$0xf]
  %v1690 = vunpack.c.l.b16 %v1664
  %v1691 = vunpack.c.h.b16 %v1664
  %v1692 = vunpack.c.l.b16 %v1665
  %v1693 = vunpack.c.h.b16 %v1665
  %v1694 = vunpack.c.l.b16 %v1666
  %v1695 = vunpack.c.h.b16 %v1666
  %v1696 = vunpack.c.l.b16 %v1667
  %v1697 = vunpack.c.h.b16 %v1667
  %v1698 = vunpack.c.l.b16 %v1668
  %v1699 = vunpack.c.h.b16 %v1668
  %v1700 = vunpack.c.l.b16 %v1669
  %v1701 = vunpack.c.h.b16 %v1669
  %v1702 = vunpack.c.l.b16 %v1670
  %v1703 = vunpack.c.h.b16 %v1670
  %v1704 = vunpack.c.l.b16 %v1671
  %v1705 = vunpack.c.h.b16 %v1671
  %v1706 = vunpack.c.l.b16 %v1672
  %v1707 = vunpack.c.h.b16 %v1672
  %v1708 = vunpack.c.l.b16 %v1673
  %v1709 = vunpack.c.h.b16 %v1673
  %v1710 = vunpack.c.l.b16 %v1674
  %v1711 = vunpack.c.h.b16 %v1674
  %v1712 = vunpack.c.l.b16 %v1675
  %v1713 = vunpack.c.h.b16 %v1675
  %v1714 = vunpack.c.l.b16 %v1676
  %v1715 = vpack.c.b16 %v1690, %v1690
  %v1716 = vpack.c.b16 %v1691, %v1691
  %v1717 = vpack.c.b16 %v1692, %v1692
  %v1718 = vpack.c.b16 %v1693, %v1693
  %v1719 = vpack.c.b16 %v1694, %v1694
  %v1720 = vpack.c.b16 %v1695, %v1695
  %v1721 = vpack.c.b16 %v1696, %v1696
  %v1722 = vpack.c.b16 %v1697, %v1697
  %v1723 = vpack.c.b16 %v1698, %v1698
  %v1724 = vpack.c.b16 %v1699, %v1699
  %v1725 = vpack.c.b16 %v1700, %v1700
  %v1726 = vpack.c.b16 %v1701, %v1701
  %v1727 = vpack.c.b16 %v1702, %v1702
  %v1728 = vpack.c.b16 %v1703, %v1703
  %v1729 = vpack.c.b16 %v1704, %v1704
  %v1730 = vpack.c.b16 %v1705, %v1705
  %v1731 = vpack.c.b16 %v1706, %v1706
  %v1732 = vpack.c.b16 %v1707, %v1707
  %v1733 = vpack.c.b16 %v1708, %v1708
  %v1734 = vpack.c.b16 %v1709, %v1709
  %v1735 = vpack.c.b16 %v1710, %v1710
  %v1736 = vpack.c.b16 %v1711, %v1711
  %v1737 = vpack.c.b16 %v1712, %v1712
  %v1738 = vpack.c.b16 %v1713, %v1713
  %v1739 = vpack.c.b16 %v1714, %v1714
  %1765 = vst [vmem:[#allocation3] sm:$0xf] %v1715
  %1766 = vst [vmem:[#allocation3 + $0x24] sm:$0xf] %v1716
  %1767 = vst [vmem:[#allocation3 + $0x48] sm:$0xf] %v1717
  %1768 = vst [vmem:[#allocation3 + $0x6c] sm:$0xf] %v1718
  %1769 = vst [vmem:[#allocation3 + $0x90] sm:$0xf] %v1719
  %1770 = vst [vmem:[#allocation3 + $0xb4] sm:$0xf] %v1720
  %1771 = vst [vmem:[#allocation3 + $0xd8] sm:$0xf] %v1721
  %1772 = vst [vmem:[#allocation3 + $0xfc] sm:$0xf] %v1722
  %1773 = vst [vmem:[#allocation3 + $0x120] sm:$0xf] %v1723
  %1774 = vst [vmem:[#allocation3 + $0x144] sm:$0xf] %v1724
  %1775 = vst [vmem:[#allocation3 + $0x168] sm:$0xf] %v1725
  %1776 = vst [vmem:[#allocation3 + $0x18c] sm:$0xf] %v1726
  %1777 = vst [vmem:[#allocation3 + $0x1b0] sm:$0xf] %v1727
  %1778 = vst [vmem:[#allocation3 + $0x1d4] sm:$0xf] %v1728
  %1779 = vst [vmem:[#allocation3 + $0x1f8] sm:$0xf] %v1729
  %1780 = vst [vmem:[#allocation3 + $0x21c] sm:$0xf] %v1730
  %1781 = vst [vmem:[#allocation3 + $0x240] sm:$0xf] %v1731
  %1782 = vst [vmem:[#allocation3 + $0x264] sm:$0xf] %v1732
  %1783 = vst [vmem:[#allocation3 + $0x288] sm:$0xf] %v1733
  %1784 = vst [vmem:[#allocation3 + $0x2ac] sm:$0xf] %v1734
  %1785 = vst [vmem:[#allocation3 + $0x2d0] sm:$0xf] %v1735
  %1786 = vst [vmem:[#allocation3 + $0x2f4] sm:$0xf] %v1736
  %1787 = vst [vmem:[#allocation3 + $0x318] sm:$0xf] %v1737
  %1788 = vst [vmem:[#allocation3 + $0x33c] sm:$0xf] %v1738
  %1789 = vst [vmem:[#allocation3 + $0x360] sm:$0xf] %v1739
  %v1790 = vld [vmem:[#allocation2] sm:$0xff]
  %v1791 = vld [vmem:[#allocation2 + $0x8] sm:$0xff]
  %v1792 = vld [vmem:[#allocation2 + $0x10] sm:$0xff]
  %v1793 = vld [vmem:[#allocation2 + $0x18] sm:$0xff]
  %v1794 = vld [vmem:[#allocation2 + $0x20] sm:$0xff]
  %v1795 = vld [vmem:[#allocation2 + $0x28] sm:$0xff]
  %v1796 = vld [vmem:[#allocation2 + $0x30] sm:$0xff]
  %v1797 = vld [vmem:[#allocation2 + $0x38] sm:$0xff]
  %v1798 = vld [vmem:[#allocation2 + $0x40] sm:$0xff]
  %v1799 = vld [vmem:[#allocation2 + $0x48] sm:$0xff]
  %v1800 = vld [vmem:[#allocation2 + $0x50] sm:$0xff]
  %v1801 = vld [vmem:[#allocation2 + $0x58] sm:$0xff]
  %v1802 = vld [vmem:[#allocation2 + $0x60] sm:$0x1f]
  %v1816 = vunpack.c.l.b16 %v1790
  %v1817 = vunpack.c.h.b16 %v1790
  %v1818 = vunpack.c.l.b16 %v1791
  %v1819 = vunpack.c.h.b16 %v1791
  %v1820 = vunpack.c.l.b16 %v1792
  %v1821 = vunpack.c.h.b16 %v1792
  %v1822 = vunpack.c.l.b16 %v1793
  %v1823 = vunpack.c.h.b16 %v1793
  %v1824 = vunpack.c.l.b16 %v1794
  %v1825 = vunpack.c.h.b16 %v1794
  %v1826 = vunpack.c.l.b16 %v1795
  %v1827 = vunpack.c.h.b16 %v1795
  %v1828 = vunpack.c.l.b16 %v1796
  %v1829 = vunpack.c.h.b16 %v1796
  %v1830 = vunpack.c.l.b16 %v1797
  %v1831 = vunpack.c.h.b16 %v1797
  %v1832 = vunpack.c.l.b16 %v1798
  %v1833 = vunpack.c.h.b16 %v1798
  %v1834 = vunpack.c.l.b16 %v1799
  %v1835 = vunpack.c.h.b16 %v1799
  %v1836 = vunpack.c.l.b16 %v1800
  %v1837 = vunpack.c.h.b16 %v1800
  %v1838 = vunpack.c.l.b16 %v1801
  %v1839 = vunpack.c.h.b16 %v1801
  %v1840 = vunpack.c.l.b16 %v1802
  %v1841 = vunpack.c.h.b16 %v1802
  %v1842 = vpack.c.b16 %v1816, %v1816
  %v1843 = vpack.c.b16 %v1817, %v1817
  %v1844 = vpack.c.b16 %v1818, %v1818
  %v1845 = vpack.c.b16 %v1819, %v1819
  %v1846 = vpack.c.b16 %v1820, %v1820
  %v1847 = vpack.c.b16 %v1821, %v1821
  %v1848 = vpack.c.b16 %v1822, %v1822
  %v1849 = vpack.c.b16 %v1823, %v1823
  %v1850 = vpack.c.b16 %v1824, %v1824
  %v1851 = vpack.c.b16 %v1825, %v1825
  %v1852 = vpack.c.b16 %v1826, %v1826
  %v1853 = vpack.c.b16 %v1827, %v1827
  %v1854 = vpack.c.b16 %v1828, %v1828
  %v1855 = vpack.c.b16 %v1829, %v1829
  %v1856 = vpack.c.b16 %v1830, %v1830
  %v1857 = vpack.c.b16 %v1831, %v1831
  %v1858 = vpack.c.b16 %v1832, %v1832
  %v1859 = vpack.c.b16 %v1833, %v1833
  %v1860 = vpack.c.b16 %v1834, %v1834
  %v1861 = vpack.c.b16 %v1835, %v1835
  %v1862 = vpack.c.b16 %v1836, %v1836
  %v1863 = vpack.c.b16 %v1837, %v1837
  %v1864 = vpack.c.b16 %v1838, %v1838
  %v1865 = vpack.c.b16 %v1839, %v1839
  %v1866 = vpack.c.b16 %v1840, %v1840
  %v1867 = vpack.c.b16 %v1841, %v1841
  %vm1868 = vsmask.f32 3328
  %vm1869 = vsmask.f32 7440
  %vm1870 = vmor %vm1868, %vm1869
  %v1872 = vshrl.u32 %v1842, 16
  %v1874 = vrot.slane %v1872, 4
  %v1875 = vshll.u32 %v1842, 16
  %v1877 = vrot.slane %v1875, 5
  %v1878 = vor.u32 %v1874, %v1877
  %v1879 = vrot.slane %v1878, 4
  %v1881 = vshll.u32 %v1843, 16
  %v1883 = vrot.slane %v1881, 5
  %v1884 = vsel %vm1870, %v1879, %v1883
  %v1885 = vshrl.u32 %v1843, 16
  %v1887 = vrot.slane %v1885, 4
  %v1888 = vor.u32 %v1887, %v1883
  %v1889 = vrot.slane %v1888, 4
  %v1891 = vshll.u32 %v1844, 16
  %v1893 = vrot.slane %v1891, 5
  %v1894 = vsel %vm1870, %v1889, %v1893
  %v1895 = vshrl.u32 %v1844, 16
  %v1897 = vrot.slane %v1895, 4
  %v1898 = vor.u32 %v1897, %v1893
  %v1899 = vrot.slane %v1898, 4
  %v1901 = vshll.u32 %v1845, 16
  %v1903 = vrot.slane %v1901, 5
  %v1904 = vsel %vm1870, %v1899, %v1903
  %v1905 = vshrl.u32 %v1845, 16
  %v1907 = vrot.slane %v1905, 4
  %v1908 = vor.u32 %v1907, %v1903
  %v1909 = vrot.slane %v1908, 4
  %v1911 = vshll.u32 %v1846, 16
  %v1913 = vrot.slane %v1911, 5
  %v1914 = vsel %vm1870, %v1909, %v1913
  %v1915 = vshrl.u32 %v1846, 16
  %v1917 = vrot.slane %v1915, 4
  %v1918 = vor.u32 %v1917, %v1913
  %v1919 = vrot.slane %v1918, 4
  %v1921 = vshll.u32 %v1847, 16
  %v1923 = vrot.slane %v1921, 5
  %v1924 = vsel %vm1870, %v1919, %v1923
  %v1925 = vshrl.u32 %v1847, 16
  %v1927 = vrot.slane %v1925, 4
  %v1928 = vor.u32 %v1927, %v1923
  %v1929 = vrot.slane %v1928, 4
  %v1931 = vshll.u32 %v1848, 16
  %v1933 = vrot.slane %v1931, 5
  %v1934 = vsel %vm1870, %v1929, %v1933
  %v1935 = vshrl.u32 %v1848, 16
  %v1937 = vrot.slane %v1935, 4
  %v1938 = vor.u32 %v1937, %v1933
  %v1939 = vrot.slane %v1938, 4
  %v1941 = vshll.u32 %v1849, 16
  %v1943 = vrot.slane %v1941, 5
  %v1944 = vsel %vm1870, %v1939, %v1943
  %v1945 = vshrl.u32 %v1849, 16
  %v1947 = vrot.slane %v1945, 4
  %v1948 = vor.u32 %v1947, %v1943
  %v1949 = vrot.slane %v1948, 4
  %v1951 = vshll.u32 %v1850, 16
  %v1953 = vrot.slane %v1951, 5
  %v1954 = vsel %vm1870, %v1949, %v1953
  %v1955 = vshrl.u32 %v1850, 16
  %v1957 = vrot.slane %v1955, 4
  %v1958 = vor.u32 %v1957, %v1953
  %v1959 = vrot.slane %v1958, 4
  %v1961 = vshll.u32 %v1851, 16
  %v1963 = vrot.slane %v1961, 5
  %v1964 = vsel %vm1870, %v1959, %v1963
  %v1965 = vshrl.u32 %v1851, 16
  %v1967 = vrot.slane %v1965, 4
  %v1968 = vor.u32 %v1967, %v1963
  %v1969 = vrot.slane %v1968, 4
  %v1971 = vshll.u32 %v1852, 16
  %v1973 = vrot.slane %v1971, 5
  %v1974 = vsel %vm1870, %v1969, %v1973
  %v1975 = vshrl.u32 %v1852, 16
  %v1977 = vrot.slane %v1975, 4
  %v1978 = vor.u32 %v1977, %v1973
  %v1979 = vrot.slane %v1978, 4
  %v1981 = vshll.u32 %v1853, 16
  %v1983 = vrot.slane %v1981, 5
  %v1984 = vsel %vm1870, %v1979, %v1983
  %v1985 = vshrl.u32 %v1853, 16
  %v1987 = vrot.slane %v1985, 4
  %v1988 = vor.u32 %v1987, %v1983
  %v1989 = vrot.slane %v1988, 4
  %v1991 = vshll.u32 %v1854, 16
  %v1993 = vrot.slane %v1991, 5
  %v1994 = vsel %vm1870, %v1989, %v1993
  %v1995 = vshrl.u32 %v1854, 16
  %v1997 = vrot.slane %v1995, 4
  %v1998 = vor.u32 %v1997, %v1993
  %v1999 = vrot.slane %v1998, 4
  %v2001 = vshll.u32 %v1855, 16
  %v2003 = vrot.slane %v2001, 5
  %v2004 = vsel %vm1870, %v1999, %v2003
  %v2005 = vshrl.u32 %v1855, 16
  %v2007 = vrot.slane %v2005, 4
  %v2008 = vor.u32 %v2007, %v2003
  %v2009 = vrot.slane %v2008, 4
  %v2011 = vshll.u32 %v1856, 16
  %v2013 = vrot.slane %v2011, 5
  %v2014 = vsel %vm1870, %v2009, %v2013
  %v2015 = vshrl.u32 %v1856, 16
  %v2017 = vrot.slane %v2015, 4
  %v2018 = vor.u32 %v2017, %v2013
  %v2019 = vrot.slane %v2018, 4
  %v2021 = vshll.u32 %v1857, 16
  %v2023 = vrot.slane %v2021, 5
  %v2024 = vsel %vm1870, %v2019, %v2023
  %v2025 = vshrl.u32 %v1857, 16
  %v2027 = vrot.slane %v2025, 4
  %v2028 = vor.u32 %v2027, %v2023
  %v2029 = vrot.slane %v2028, 4
  %v2031 = vshll.u32 %v1858, 16
  %v2033 = vrot.slane %v2031, 5
  %v2034 = vsel %vm1870, %v2029, %v2033
  %v2035 = vshrl.u32 %v1858, 16
  %v2037 = vrot.slane %v2035, 4
  %v2038 = vor.u32 %v2037, %v2033
  %v2039 = vrot.slane %v2038, 4
  %v2041 = vshll.u32 %v1859, 16
  %v2043 = vrot.slane %v2041, 5
  %v2044 = vsel %vm1870, %v2039, %v2043
  %v2045 = vshrl.u32 %v1859, 16
  %v2047 = vrot.slane %v2045, 4
  %v2048 = vor.u32 %v2047, %v2043
  %v2049 = vrot.slane %v2048, 4
  %v2051 = vshll.u32 %v1860, 16
  %v2053 = vrot.slane %v2051, 5
  %v2054 = vsel %vm1870, %v2049, %v2053
  %v2055 = vshrl.u32 %v1860, 16
  %v2057 = vrot.slane %v2055, 4
  %v2058 = vor.u32 %v2057, %v2053
  %v2059 = vrot.slane %v2058, 4
  %v2061 = vshll.u32 %v1861, 16
  %v2063 = vrot.slane %v2061, 5
  %v2064 = vsel %vm1870, %v2059, %v2063
  %v2065 = vshrl.u32 %v1861, 16
  %v2067 = vrot.slane %v2065, 4
  %v2068 = vor.u32 %v2067, %v2063
  %v2069 = vrot.slane %v2068, 4
  %v2071 = vshll.u32 %v1862, 16
  %v2073 = vrot.slane %v2071, 5
  %v2074 = vsel %vm1870, %v2069, %v2073
  %v2075 = vshrl.u32 %v1862, 16
  %v2077 = vrot.slane %v2075, 4
  %v2078 = vor.u32 %v2077, %v2073
  %v2079 = vrot.slane %v2078, 4
  %v2081 = vshll.u32 %v1863, 16
  %v2083 = vrot.slane %v2081, 5
  %v2084 = vsel %vm1870, %v2079, %v2083
  %v2085 = vshrl.u32 %v1863, 16
  %v2087 = vrot.slane %v2085, 4
  %v2088 = vor.u32 %v2087, %v2083
  %v2089 = vrot.slane %v2088, 4
  %v2091 = vshll.u32 %v1864, 16
  %v2093 = vrot.slane %v2091, 5
  %v2094 = vsel %vm1870, %v2089, %v2093
  %v2095 = vshrl.u32 %v1864, 16
  %v2097 = vrot.slane %v2095, 4
  %v2098 = vor.u32 %v2097, %v2093
  %v2099 = vrot.slane %v2098, 4
  %v2101 = vshll.u32 %v1865, 16
  %v2103 = vrot.slane %v2101, 5
  %v2104 = vsel %vm1870, %v2099, %v2103
  %v2105 = vshrl.u32 %v1865, 16
  %v2107 = vrot.slane %v2105, 4
  %v2108 = vor.u32 %v2107, %v2103
  %v2109 = vrot.slane %v2108, 4
  %v2111 = vshll.u32 %v1866, 16
  %v2113 = vrot.slane %v2111, 5
  %v2114 = vsel %vm1870, %v2109, %v2113
  %v2115 = vshrl.u32 %v1866, 16
  %v2117 = vrot.slane %v2115, 4
  %v2118 = vor.u32 %v2117, %v2113
  %v2119 = vrot.slane %v2118, 4
  %v2121 = vshll.u32 %v1867, 16
  %v2123 = vrot.slane %v2121, 5
  %v2124 = vsel %vm1870, %v2119, %v2123
  %2150 = vst [vmem:[#allocation3 + $0x4] sm:$0xf] %v1884
  %2151 = vst [vmem:[#allocation3 + $0x28] sm:$0xf] %v1894
  %2152 = vst [vmem:[#allocation3 + $0x4c] sm:$0xf] %v1904
  %2153 = vst [vmem:[#allocation3 + $0x70] sm:$0xf] %v1914
  %2154 = vst [vmem:[#allocation3 + $0x94] sm:$0xf] %v1924
  %2155 = vst [vmem:[#allocation3 + $0xb8] sm:$0xf] %v1934
  %2156 = vst [vmem:[#allocation3 + $0xdc] sm:$0xf] %v1944
  %2157 = vst [vmem:[#allocation3 + $0x100] sm:$0xf] %v1954
  %2158 = vst [vmem:[#allocation3 + $0x124] sm:$0xf] %v1964
  %2159 = vst [vmem:[#allocation3 + $0x148] sm:$0xf] %v1974
  %2160 = vst [vmem:[#allocation3 + $0x16c] sm:$0xf] %v1984
  %2161 = vst [vmem:[#allocation3 + $0x190] sm:$0xf] %v1994
  %2162 = vst [vmem:[#allocation3 + $0x1b4] sm:$0xf] %v2004
  %2163 = vst [vmem:[#allocation3 + $0x1d8] sm:$0xf] %v2014
  %2164 = vst [vmem:[#allocation3 + $0x1fc] sm:$0xf] %v2024
  %2165 = vst [vmem:[#allocation3 + $0x220] sm:$0xf] %v2034
  %2166 = vst [vmem:[#allocation3 + $0x244] sm:$0xf] %v2044
  %2167 = vst [vmem:[#allocation3 + $0x268] sm:$0xf] %v2054
  %2168 = vst [vmem:[#allocation3 + $0x28c] sm:$0xf] %v2064
  %2169 = vst [vmem:[#allocation3 + $0x2b0] sm:$0xf] %v2074
  %2170 = vst [vmem:[#allocation3 + $0x2d4] sm:$0xf] %v2084
  %2171 = vst [vmem:[#allocation3 + $0x2f8] sm:$0xf] %v2094
  %2172 = vst [vmem:[#allocation3 + $0x31c] sm:$0xf] %v2104
  %2173 = vst [vmem:[#allocation3 + $0x340] sm:$0xf] %v2114
  %2174 = vst [vmem:[#allocation3 + $0x364] sm:$0xf] %v2124
  %v2175 = vld [vmem:[#allocation2] sm:$0xfe]
  %v2176 = vld [vmem:[#allocation2 + $0x8] sm:$0xff]
  %v2177 = vld [vmem:[#allocation2 + $0x10] sm:$0xff]
  %v2178 = vld [vmem:[#allocation2 + $0x18] sm:$0xff]
  %v2179 = vld [vmem:[#allocation2 + $0x20] sm:$0xff]
  %v2180 = vld [vmem:[#allocation2 + $0x28] sm:$0xff]
  %v2181 = vld [vmem:[#allocation2 + $0x30] sm:$0xff]
  %v2182 = vld [vmem:[#allocation2 + $0x38] sm:$0xff]
  %v2183 = vld [vmem:[#allocation2 + $0x40] sm:$0xff]
  %v2184 = vld [vmem:[#allocation2 + $0x48] sm:$0xff]
  %v2185 = vld [vmem:[#allocation2 + $0x50] sm:$0xff]
  %v2186 = vld [vmem:[#allocation2 + $0x58] sm:$0xff]
  %v2187 = vld [vmem:[#allocation2 + $0x60] sm:$0x1f]
  %v2201 = vunpack.c.l.b16 %v2175
  %v2202 = vunpack.c.h.b16 %v2175
  %v2203 = vunpack.c.l.b16 %v2176
  %v2204 = vunpack.c.h.b16 %v2176
  %v2205 = vunpack.c.l.b16 %v2177
  %v2206 = vunpack.c.h.b16 %v2177
  %v2207 = vunpack.c.l.b16 %v2178
  %v2208 = vunpack.c.h.b16 %v2178
  %v2209 = vunpack.c.l.b16 %v2179
  %v2210 = vunpack.c.h.b16 %v2179
  %v2211 = vunpack.c.l.b16 %v2180
  %v2212 = vunpack.c.h.b16 %v2180
  %v2213 = vunpack.c.l.b16 %v2181
  %v2214 = vunpack.c.h.b16 %v2181
  %v2215 = vunpack.c.l.b16 %v2182
  %v2216 = vunpack.c.h.b16 %v2182
  %v2217 = vunpack.c.l.b16 %v2183
  %v2218 = vunpack.c.h.b16 %v2183
  %v2219 = vunpack.c.l.b16 %v2184
  %v2220 = vunpack.c.h.b16 %v2184
  %v2221 = vunpack.c.l.b16 %v2185
  %v2222 = vunpack.c.h.b16 %v2185
  %v2223 = vunpack.c.l.b16 %v2186
  %v2224 = vunpack.c.h.b16 %v2186
  %v2225 = vunpack.c.l.b16 %v2187
  %v2226 = vunpack.c.h.b16 %v2187
  %v2227 = vpack.c.b16 %v2201, %v2201
  %v2228 = vpack.c.b16 %v2202, %v2202
  %v2229 = vpack.c.b16 %v2203, %v2203
  %v2230 = vpack.c.b16 %v2204, %v2204
  %v2231 = vpack.c.b16 %v2205, %v2205
  %v2232 = vpack.c.b16 %v2206, %v2206
  %v2233 = vpack.c.b16 %v2207, %v2207
  %v2234 = vpack.c.b16 %v2208, %v2208
  %v2235 = vpack.c.b16 %v2209, %v2209
  %v2236 = vpack.c.b16 %v2210, %v2210
  %v2237 = vpack.c.b16 %v2211, %v2211
  %v2238 = vpack.c.b16 %v2212, %v2212
  %v2239 = vpack.c.b16 %v2213, %v2213
  %v2240 = vpack.c.b16 %v2214, %v2214
  %v2241 = vpack.c.b16 %v2215, %v2215
  %v2242 = vpack.c.b16 %v2216, %v2216
  %v2243 = vpack.c.b16 %v2217, %v2217
  %v2244 = vpack.c.b16 %v2218, %v2218
  %v2245 = vpack.c.b16 %v2219, %v2219
  %v2246 = vpack.c.b16 %v2220, %v2220
  %v2247 = vpack.c.b16 %v2221, %v2221
  %v2248 = vpack.c.b16 %v2222, %v2222
  %v2249 = vpack.c.b16 %v2223, %v2223
  %v2250 = vpack.c.b16 %v2224, %v2224
  %v2251 = vpack.c.b16 %v2225, %v2225
  %v2252 = vpack.c.b16 %v2226, %v2226
  %vm2253 = vcmask 1042432
  %vm2254 = vcmask 1046532
  %vm2255 = vmor %vm2253, %vm2254
  %v2256 = vrot.slane %v2227, 5
  %v2257 = vrot.slane %v2256, 4
  %v2258 = vrot.slane %v2228, 5
  %v2259 = vsel %vm2255, %v2257, %v2258
  %v2260 = vrot.slane %v2258, 4
  %v2261 = vrot.slane %v2229, 5
  %v2262 = vsel %vm2255, %v2260, %v2261
  %v2263 = vrot.slane %v2261, 4
  %v2264 = vrot.slane %v2230, 5
  %v2265 = vsel %vm2255, %v2263, %v2264
  %v2266 = vrot.slane %v2264, 4
  %v2267 = vrot.slane %v2231, 5
  %v2268 = vsel %vm2255, %v2266, %v2267
  %v2269 = vrot.slane %v2267, 4
  %v2270 = vrot.slane %v2232, 5
  %v2271 = vsel %vm2255, %v2269, %v2270
  %v2272 = vrot.slane %v2270, 4
  %v2273 = vrot.slane %v2233, 5
  %v2274 = vsel %vm2255, %v2272, %v2273
  %v2275 = vrot.slane %v2273, 4
  %v2276 = vrot.slane %v2234, 5
  %v2277 = vsel %vm2255, %v2275, %v2276
  %v2278 = vrot.slane %v2276, 4
  %v2279 = vrot.slane %v2235, 5
  %v2280 = vsel %vm2255, %v2278, %v2279
  %v2281 = vrot.slane %v2279, 4
  %v2282 = vrot.slane %v2236, 5
  %v2283 = vsel %vm2255, %v2281, %v2282
  %v2284 = vrot.slane %v2282, 4
  %v2285 = vrot.slane %v2237, 5
  %v2286 = vsel %vm2255, %v2284, %v2285
  %v2287 = vrot.slane %v2285, 4
  %v2288 = vrot.slane %v2238, 5
  %v2289 = vsel %vm2255, %v2287, %v2288
  %v2290 = vrot.slane %v2288, 4
  %v2291 = vrot.slane %v2239, 5
  %v2292 = vsel %vm2255, %v2290, %v2291
  %v2293 = vrot.slane %v2291, 4
  %v2294 = vrot.slane %v2240, 5
  %v2295 = vsel %vm2255, %v2293, %v2294
  %v2296 = vrot.slane %v2294, 4
  %v2297 = vrot.slane %v2241, 5
  %v2298 = vsel %vm2255, %v2296, %v2297
  %v2299 = vrot.slane %v2297, 4
  %v2300 = vrot.slane %v2242, 5
  %v2301 = vsel %vm2255, %v2299, %v2300
  %v2302 = vrot.slane %v2300, 4
  %v2303 = vrot.slane %v2243, 5
  %v2304 = vsel %vm2255, %v2302, %v2303
  %v2305 = vrot.slane %v2303, 4
  %v2306 = vrot.slane %v2244, 5
  %v2307 = vsel %vm2255, %v2305, %v2306
  %v2308 = vrot.slane %v2306, 4
  %v2309 = vrot.slane %v2245, 5
  %v2310 = vsel %vm2255, %v2308, %v2309
  %v2311 = vrot.slane %v2309, 4
  %v2312 = vrot.slane %v2246, 5
  %v2313 = vsel %vm2255, %v2311, %v2312
  %v2314 = vrot.slane %v2312, 4
  %v2315 = vrot.slane %v2247, 5
  %v2316 = vsel %vm2255, %v2314, %v2315
  %v2317 = vrot.slane %v2315, 4
  %v2318 = vrot.slane %v2248, 5
  %v2319 = vsel %vm2255, %v2317, %v2318
  %v2320 = vrot.slane %v2318, 4
  %v2321 = vrot.slane %v2249, 5
  %v2322 = vsel %vm2255, %v2320, %v2321
  %v2323 = vrot.slane %v2321, 4
  %v2324 = vrot.slane %v2250, 5
  %v2325 = vsel %vm2255, %v2323, %v2324
  %v2326 = vrot.slane %v2324, 4
  %v2327 = vrot.slane %v2251, 5
  %v2328 = vsel %vm2255, %v2326, %v2327
  %v2329 = vrot.slane %v2327, 4
  %v2330 = vrot.slane %v2252, 5
  %v2331 = vsel %vm2255, %v2329, %v2330
  %2357 = vst [vmem:[#allocation3 + $0x8] sm:$0xf] %v2259
  %2358 = vst [vmem:[#allocation3 + $0x2c] sm:$0xf] %v2262
  %2359 = vst [vmem:[#allocation3 + $0x50] sm:$0xf] %v2265
  %2360 = vst [vmem:[#allocation3 + $0x74] sm:$0xf] %v2268
  %2361 = vst [vmem:[#allocation3 + $0x98] sm:$0xf] %v2271
  %2362 = vst [vmem:[#allocation3 + $0xbc] sm:$0xf] %v2274
  %2363 = vst [vmem:[#allocation3 + $0xe0] sm:$0xf] %v2277
  %2364 = vst [vmem:[#allocation3 + $0x104] sm:$0xf] %v2280
  %2365 = vst [vmem:[#allocation3 + $0x128] sm:$0xf] %v2283
  %2366 = vst [vmem:[#allocation3 + $0x14c] sm:$0xf] %v2286
  %2367 = vst [vmem:[#allocation3 + $0x170] sm:$0xf] %v2289
  %2368 = vst [vmem:[#allocation3 + $0x194] sm:$0xf] %v2292
  %2369 = vst [vmem:[#allocation3 + $0x1b8] sm:$0xf] %v2295
  %2370 = vst [vmem:[#allocation3 + $0x1dc] sm:$0xf] %v2298
  %2371 = vst [vmem:[#allocation3 + $0x200] sm:$0xf] %v2301
  %2372 = vst [vmem:[#allocation3 + $0x224] sm:$0xf] %v2304
  %2373 = vst [vmem:[#allocation3 + $0x248] sm:$0xf] %v2307
  %2374 = vst [vmem:[#allocation3 + $0x26c] sm:$0xf] %v2310
  %2375 = vst [vmem:[#allocation3 + $0x290] sm:$0xf] %v2313
  %2376 = vst [vmem:[#allocation3 + $0x2b4] sm:$0xf] %v2316
  %2377 = vst [vmem:[#allocation3 + $0x2d8] sm:$0xf] %v2319
  %2378 = vst [vmem:[#allocation3 + $0x2fc] sm:$0xf] %v2322
  %2379 = vst [vmem:[#allocation3 + $0x320] sm:$0xf] %v2325
  %2380 = vst [vmem:[#allocation3 + $0x344] sm:$0xf] %v2328
  %2381 = vst [vmem:[#allocation3 + $0x368] sm:$0xf] %v2331
  %v2382 = vld [vmem:[#allocation2] sm:$0xe0]
  %v2383 = vld [vmem:[#allocation2 + $0x8] sm:$0xff]
  %v2384 = vld [vmem:[#allocation2 + $0x10] sm:$0xff]
  %v2385 = vld [vmem:[#allocation2 + $0x18] sm:$0xff]
  %v2386 = vld [vmem:[#allocation2 + $0x20] sm:$0xff]
  %v2387 = vld [vmem:[#allocation2 + $0x28] sm:$0xff]
  %v2388 = vld [vmem:[#allocation2 + $0x30] sm:$0xff]
  %v2389 = vld [vmem:[#allocation2 + $0x38] sm:$0xff]
  %v2390 = vld [vmem:[#allocation2 + $0x40] sm:$0xff]
  %v2391 = vld [vmem:[#allocation2 + $0x48] sm:$0xff]
  %v2392 = vld [vmem:[#allocation2 + $0x50] sm:$0xff]
  %v2393 = vld [vmem:[#allocation2 + $0x58] sm:$0xff]
  %v2394 = vld [vmem:[#allocation2 + $0x60] sm:$0xff]
  %v2395 = vld [vmem:[#allocation2 + $0x68] sm:$0x1]
  %v2410 = vunpack.c.h.b16 %v2382
  %v2411 = vunpack.c.l.b16 %v2383
  %v2412 = vunpack.c.h.b16 %v2383
  %v2413 = vunpack.c.l.b16 %v2384
  %v2414 = vunpack.c.h.b16 %v2384
  %v2415 = vunpack.c.l.b16 %v2385
  %v2416 = vunpack.c.h.b16 %v2385
  %v2417 = vunpack.c.l.b16 %v2386
  %v2418 = vunpack.c.h.b16 %v2386
  %v2419 = vunpack.c.l.b16 %v2387
  %v2420 = vunpack.c.h.b16 %v2387
  %v2421 = vunpack.c.l.b16 %v2388
  %v2422 = vunpack.c.h.b16 %v2388
  %v2423 = vunpack.c.l.b16 %v2389
  %v2424 = vunpack.c.h.b16 %v2389
  %v2425 = vunpack.c.l.b16 %v2390
  %v2426 = vunpack.c.h.b16 %v2390
  %v2427 = vunpack.c.l.b16 %v2391
  %v2428 = vunpack.c.h.b16 %v2391
  %v2429 = vunpack.c.l.b16 %v2392
  %v2430 = vunpack.c.h.b16 %v2392
  %v2431 = vunpack.c.l.b16 %v2393
  %v2432 = vunpack.c.h.b16 %v2393
  %v2433 = vunpack.c.l.b16 %v2394
  %v2434 = vunpack.c.h.b16 %v2394
  %v2435 = vunpack.c.l.b16 %v2395
  %v2436 = vpack.c.b16 %v2410, %v2410
  %v2437 = vpack.c.b16 %v2411, %v2411
  %v2438 = vpack.c.b16 %v2412, %v2412
  %v2439 = vpack.c.b16 %v2413, %v2413
  %v2440 = vpack.c.b16 %v2414, %v2414
  %v2441 = vpack.c.b16 %v2415, %v2415
  %v2442 = vpack.c.b16 %v2416, %v2416
  %v2443 = vpack.c.b16 %v2417, %v2417
  %v2444 = vpack.c.b16 %v2418, %v2418
  %v2445 = vpack.c.b16 %v2419, %v2419
  %v2446 = vpack.c.b16 %v2420, %v2420
  %v2447 = vpack.c.b16 %v2421, %v2421
  %v2448 = vpack.c.b16 %v2422, %v2422
  %v2449 = vpack.c.b16 %v2423, %v2423
  %v2450 = vpack.c.b16 %v2424, %v2424
  %v2451 = vpack.c.b16 %v2425, %v2425
  %v2452 = vpack.c.b16 %v2426, %v2426
  %v2453 = vpack.c.b16 %v2427, %v2427
  %v2454 = vpack.c.b16 %v2428, %v2428
  %v2455 = vpack.c.b16 %v2429, %v2429
  %v2456 = vpack.c.b16 %v2430, %v2430
  %v2457 = vpack.c.b16 %v2431, %v2431
  %v2458 = vpack.c.b16 %v2432, %v2432
  %v2459 = vpack.c.b16 %v2433, %v2433
  %v2460 = vpack.c.b16 %v2434, %v2434
  %v2461 = vpack.c.b16 %v2435, %v2435
  %v2462 = vrot.slane %v2436, 5
  %v2463 = vrot.slane %v2462, 4
  %v2464 = vrot.slane %v2437, 5
  %v2465 = vsel %vm2255, %v2463, %v2464
  %v2466 = vrot.slane %v2464, 4
  %v2467 = vrot.slane %v2438, 5
  %v2468 = vsel %vm2255, %v2466, %v2467
  %v2469 = vrot.slane %v2467, 4
  %v2470 = vrot.slane %v2439, 5
  %v2471 = vsel %vm2255, %v2469, %v2470
  %v2472 = vrot.slane %v2470, 4
  %v2473 = vrot.slane %v2440, 5
  %v2474 = vsel %vm2255, %v2472, %v2473
  %v2475 = vrot.slane %v2473, 4
  %v2476 = vrot.slane %v2441, 5
  %v2477 = vsel %vm2255, %v2475, %v2476
  %v2478 = vrot.slane %v2476, 4
  %v2479 = vrot.slane %v2442, 5
  %v2480 = vsel %vm2255, %v2478, %v2479
  %v2481 = vrot.slane %v2479, 4
  %v2482 = vrot.slane %v2443, 5
  %v2483 = vsel %vm2255, %v2481, %v2482
  %v2484 = vrot.slane %v2482, 4
  %v2485 = vrot.slane %v2444, 5
  %v2486 = vsel %vm2255, %v2484, %v2485
  %v2487 = vrot.slane %v2485, 4
  %v2488 = vrot.slane %v2445, 5
  %v2489 = vsel %vm2255, %v2487, %v2488
  %v2490 = vrot.slane %v2488, 4
  %v2491 = vrot.slane %v2446, 5
  %v2492 = vsel %vm2255, %v2490, %v2491
  %v2493 = vrot.slane %v2491, 4
  %v2494 = vrot.slane %v2447, 5
  %v2495 = vsel %vm2255, %v2493, %v2494
  %v2496 = vrot.slane %v2494, 4
  %v2497 = vrot.slane %v2448, 5
  %v2498 = vsel %vm2255, %v2496, %v2497
  %v2499 = vrot.slane %v2497, 4
  %v2500 = vrot.slane %v2449, 5
  %v2501 = vsel %vm2255, %v2499, %v2500
  %v2502 = vrot.slane %v2500, 4
  %v2503 = vrot.slane %v2450, 5
  %v2504 = vsel %vm2255, %v2502, %v2503
  %v2505 = vrot.slane %v2503, 4
  %v2506 = vrot.slane %v2451, 5
  %v2507 = vsel %vm2255, %v2505, %v2506
  %v2508 = vrot.slane %v2506, 4
  %v2509 = vrot.slane %v2452, 5
  %v2510 = vsel %vm2255, %v2508, %v2509
  %v2511 = vrot.slane %v2509, 4
  %v2512 = vrot.slane %v2453, 5
  %v2513 = vsel %vm2255, %v2511, %v2512
  %v2514 = vrot.slane %v2512, 4
  %v2515 = vrot.slane %v2454, 5
  %v2516 = vsel %vm2255, %v2514, %v2515
  %v2517 = vrot.slane %v2515, 4
  %v2518 = vrot.slane %v2455, 5
  %v2519 = vsel %vm2255, %v2517, %v2518
  %v2520 = vrot.slane %v2518, 4
  %v2521 = vrot.slane %v2456, 5
  %v2522 = vsel %vm2255, %v2520, %v2521
  %v2523 = vrot.slane %v2521, 4
  %v2524 = vrot.slane %v2457, 5
  %v2525 = vsel %vm2255, %v2523, %v2524
  %v2526 = vrot.slane %v2524, 4
  %v2527 = vrot.slane %v2458, 5
  %v2528 = vsel %vm2255, %v2526, %v2527
  %v2529 = vrot.slane %v2527, 4
  %v2530 = vrot.slane %v2459, 5
  %v2531 = vsel %vm2255, %v2529, %v2530
  %v2532 = vrot.slane %v2530, 4
  %v2533 = vrot.slane %v2460, 5
  %v2534 = vsel %vm2255, %v2532, %v2533
  %v2535 = vrot.slane %v2533, 4
  %v2536 = vrot.slane %v2461, 5
  %v2537 = vsel %vm2255, %v2535, %v2536
  %2563 = vst [vmem:[#allocation3 + $0xc] sm:$0xf] %v2465
  %2564 = vst [vmem:[#allocation3 + $0x30] sm:$0xf] %v2468
  %2565 = vst [vmem:[#allocation3 + $0x54] sm:$0xf] %v2471
  %2566 = vst [vmem:[#allocation3 + $0x78] sm:$0xf] %v2474
  %2567 = vst [vmem:[#allocation3 + $0x9c] sm:$0xf] %v2477
  %2568 = vst [vmem:[#allocation3 + $0xc0] sm:$0xf] %v2480
  %2569 = vst [vmem:[#allocation3 + $0xe4] sm:$0xf] %v2483
  %2570 = vst [vmem:[#allocation3 + $0x108] sm:$0xf] %v2486
  %2571 = vst [vmem:[#allocation3 + $0x12c] sm:$0xf] %v2489
  %2572 = vst [vmem:[#allocation3 + $0x150] sm:$0xf] %v2492
  %2573 = vst [vmem:[#allocation3 + $0x174] sm:$0xf] %v2495
  %2574 = vst [vmem:[#allocation3 + $0x198] sm:$0xf] %v2498
  %2575 = vst [vmem:[#allocation3 + $0x1bc] sm:$0xf] %v2501
  %2576 = vst [vmem:[#allocation3 + $0x1e0] sm:$0xf] %v2504
  %2577 = vst [vmem:[#allocation3 + $0x204] sm:$0xf] %v2507
  %2578 = vst [vmem:[#allocation3 + $0x228] sm:$0xf] %v2510
  %2579 = vst [vmem:[#allocation3 + $0x24c] sm:$0xf] %v2513
  %2580 = vst [vmem:[#allocation3 + $0x270] sm:$0xf] %v2516
  %2581 = vst [vmem:[#allocation3 + $0x294] sm:$0xf] %v2519
  %2582 = vst [vmem:[#allocation3 + $0x2b8] sm:$0xf] %v2522
  %2583 = vst [vmem:[#allocation3 + $0x2dc] sm:$0xf] %v2525
  %2584 = vst [vmem:[#allocation3 + $0x300] sm:$0xf] %v2528
  %2585 = vst [vmem:[#allocation3 + $0x324] sm:$0xf] %v2531
  %2586 = vst [vmem:[#allocation3 + $0x348] sm:$0xf] %v2534
  %2587 = vst [vmem:[#allocation3 + $0x36c] sm:$0xf] %v2537
  %v2588 = vld [vmem:[#allocation2] sm:$0xe0]
  %v2589 = vld [vmem:[#allocation2 + $0x8] sm:$0xff]
  %v2590 = vld [vmem:[#allocation2 + $0x10] sm:$0xff]
  %v2591 = vld [vmem:[#allocation2 + $0x18] sm:$0xff]
  %v2592 = vld [vmem:[#allocation2 + $0x20] sm:$0xff]
  %v2593 = vld [vmem:[#allocation2 + $0x28] sm:$0xff]
  %v2594 = vld [vmem:[#allocation2 + $0x30] sm:$0xff]
  %v2595 = vld [vmem:[#allocation2 + $0x38] sm:$0xff]
  %v2596 = vld [vmem:[#allocation2 + $0x40] sm:$0xff]
  %v2597 = vld [vmem:[#allocation2 + $0x48] sm:$0xff]
  %v2598 = vld [vmem:[#allocation2 + $0x50] sm:$0xff]
  %v2599 = vld [vmem:[#allocation2 + $0x58] sm:$0xff]
  %v2600 = vld [vmem:[#allocation2 + $0x60] sm:$0xff]
  %v2601 = vld [vmem:[#allocation2 + $0x68] sm:$0x3]
  %v2616 = vunpack.c.h.b16 %v2588
  %v2617 = vunpack.c.l.b16 %v2589
  %v2618 = vunpack.c.h.b16 %v2589
  %v2619 = vunpack.c.l.b16 %v2590
  %v2620 = vunpack.c.h.b16 %v2590
  %v2621 = vunpack.c.l.b16 %v2591
  %v2622 = vunpack.c.h.b16 %v2591
  %v2623 = vunpack.c.l.b16 %v2592
  %v2624 = vunpack.c.h.b16 %v2592
  %v2625 = vunpack.c.l.b16 %v2593
  %v2626 = vunpack.c.h.b16 %v2593
  %v2627 = vunpack.c.l.b16 %v2594
  %v2628 = vunpack.c.h.b16 %v2594
  %v2629 = vunpack.c.l.b16 %v2595
  %v2630 = vunpack.c.h.b16 %v2595
  %v2631 = vunpack.c.l.b16 %v2596
  %v2632 = vunpack.c.h.b16 %v2596
  %v2633 = vunpack.c.l.b16 %v2597
  %v2634 = vunpack.c.h.b16 %v2597
  %v2635 = vunpack.c.l.b16 %v2598
  %v2636 = vunpack.c.h.b16 %v2598
  %v2637 = vunpack.c.l.b16 %v2599
  %v2638 = vunpack.c.h.b16 %v2599
  %v2639 = vunpack.c.l.b16 %v2600
  %v2640 = vunpack.c.h.b16 %v2600
  %v2641 = vunpack.c.l.b16 %v2601
  %v2642 = vpack.c.b16 %v2616, %v2616
  %v2643 = vpack.c.b16 %v2617, %v2617
  %v2644 = vpack.c.b16 %v2618, %v2618
  %v2645 = vpack.c.b16 %v2619, %v2619
  %v2646 = vpack.c.b16 %v2620, %v2620
  %v2647 = vpack.c.b16 %v2621, %v2621
  %v2648 = vpack.c.b16 %v2622, %v2622
  %v2649 = vpack.c.b16 %v2623, %v2623
  %v2650 = vpack.c.b16 %v2624, %v2624
  %v2651 = vpack.c.b16 %v2625, %v2625
  %v2652 = vpack.c.b16 %v2626, %v2626
  %v2653 = vpack.c.b16 %v2627, %v2627
  %v2654 = vpack.c.b16 %v2628, %v2628
  %v2655 = vpack.c.b16 %v2629, %v2629
  %v2656 = vpack.c.b16 %v2630, %v2630
  %v2657 = vpack.c.b16 %v2631, %v2631
  %v2658 = vpack.c.b16 %v2632, %v2632
  %v2659 = vpack.c.b16 %v2633, %v2633
  %v2660 = vpack.c.b16 %v2634, %v2634
  %v2661 = vpack.c.b16 %v2635, %v2635
  %v2662 = vpack.c.b16 %v2636, %v2636
  %v2663 = vpack.c.b16 %v2637, %v2637
  %v2664 = vpack.c.b16 %v2638, %v2638
  %v2665 = vpack.c.b16 %v2639, %v2639
  %v2666 = vpack.c.b16 %v2640, %v2640
  %v2667 = vpack.c.b16 %v2641, %v2641
  %vm2668 = vsmask.f32 2304
  %vm2669 = vsmask.f32 6416
  %vm2670 = vmor %vm2668, %vm2669
  %v2672 = vshrl.u32 %v2642, 16
  %v2674 = vrot.slane %v2672, 5
  %v2675 = vshll.u32 %v2642, 16
  %v2677 = vrot.slane %v2675, 6
  %v2678 = vor.u32 %v2674, %v2677
  %v2679 = vrot.slane %v2678, 4
  %v2681 = vshrl.u32 %v2643, 16
  %v2683 = vrot.slane %v2681, 5
  %v2684 = vshll.u32 %v2643, 16
  %v2686 = vrot.slane %v2684, 6
  %v2687 = vor.u32 %v2683, %v2686
  %v2688 = vsel %vm2670, %v2679, %v2687
  %v2689 = vrot.slane %v2687, 4
  %v2691 = vshrl.u32 %v2644, 16
  %v2693 = vrot.slane %v2691, 5
  %v2694 = vshll.u32 %v2644, 16
  %v2696 = vrot.slane %v2694, 6
  %v2697 = vor.u32 %v2693, %v2696
  %v2698 = vsel %vm2670, %v2689, %v2697
  %v2699 = vrot.slane %v2697, 4
  %v2701 = vshrl.u32 %v2645, 16
  %v2703 = vrot.slane %v2701, 5
  %v2704 = vshll.u32 %v2645, 16
  %v2706 = vrot.slane %v2704, 6
  %v2707 = vor.u32 %v2703, %v2706
  %v2708 = vsel %vm2670, %v2699, %v2707
  %v2709 = vrot.slane %v2707, 4
  %v2711 = vshrl.u32 %v2646, 16
  %v2713 = vrot.slane %v2711, 5
  %v2714 = vshll.u32 %v2646, 16
  %v2716 = vrot.slane %v2714, 6
  %v2717 = vor.u32 %v2713, %v2716
  %v2718 = vsel %vm2670, %v2709, %v2717
  %v2719 = vrot.slane %v2717, 4
  %v2721 = vshrl.u32 %v2647, 16
  %v2723 = vrot.slane %v2721, 5
  %v2724 = vshll.u32 %v2647, 16
  %v2726 = vrot.slane %v2724, 6
  %v2727 = vor.u32 %v2723, %v2726
  %v2728 = vsel %vm2670, %v2719, %v2727
  %v2729 = vrot.slane %v2727, 4
  %v2731 = vshrl.u32 %v2648, 16
  %v2733 = vrot.slane %v2731, 5
  %v2734 = vshll.u32 %v2648, 16
  %v2736 = vrot.slane %v2734, 6
  %v2737 = vor.u32 %v2733, %v2736
  %v2738 = vsel %vm2670, %v2729, %v2737
  %v2739 = vrot.slane %v2737, 4
  %v2741 = vshrl.u32 %v2649, 16
  %v2743 = vrot.slane %v2741, 5
  %v2744 = vshll.u32 %v2649, 16
  %v2746 = vrot.slane %v2744, 6
  %v2747 = vor.u32 %v2743, %v2746
  %v2748 = vsel %vm2670, %v2739, %v2747
  %v2749 = vrot.slane %v2747, 4
  %v2751 = vshrl.u32 %v2650, 16
  %v2753 = vrot.slane %v2751, 5
  %v2754 = vshll.u32 %v2650, 16
  %v2756 = vrot.slane %v2754, 6
  %v2757 = vor.u32 %v2753, %v2756
  %v2758 = vsel %vm2670, %v2749, %v2757
  %v2759 = vrot.slane %v2757, 4
  %v2761 = vshrl.u32 %v2651, 16
  %v2763 = vrot.slane %v2761, 5
  %v2764 = vshll.u32 %v2651, 16
  %v2766 = vrot.slane %v2764, 6
  %v2767 = vor.u32 %v2763, %v2766
  %v2768 = vsel %vm2670, %v2759, %v2767
  %v2769 = vrot.slane %v2767, 4
  %v2771 = vshrl.u32 %v2652, 16
  %v2773 = vrot.slane %v2771, 5
  %v2774 = vshll.u32 %v2652, 16
  %v2776 = vrot.slane %v2774, 6
  %v2777 = vor.u32 %v2773, %v2776
  %v2778 = vsel %vm2670, %v2769, %v2777
  %v2779 = vrot.slane %v2777, 4
  %v2781 = vshrl.u32 %v2653, 16
  %v2783 = vrot.slane %v2781, 5
  %v2784 = vshll.u32 %v2653, 16
  %v2786 = vrot.slane %v2784, 6
  %v2787 = vor.u32 %v2783, %v2786
  %v2788 = vsel %vm2670, %v2779, %v2787
  %v2789 = vrot.slane %v2787, 4
  %v2791 = vshrl.u32 %v2654, 16
  %v2793 = vrot.slane %v2791, 5
  %v2794 = vshll.u32 %v2654, 16
  %v2796 = vrot.slane %v2794, 6
  %v2797 = vor.u32 %v2793, %v2796
  %v2798 = vsel %vm2670, %v2789, %v2797
  %v2799 = vrot.slane %v2797, 4
  %v2801 = vshrl.u32 %v2655, 16
  %v2803 = vrot.slane %v2801, 5
  %v2804 = vshll.u32 %v2655, 16
  %v2806 = vrot.slane %v2804, 6
  %v2807 = vor.u32 %v2803, %v2806
  %v2808 = vsel %vm2670, %v2799, %v2807
  %v2809 = vrot.slane %v2807, 4
  %v2811 = vshrl.u32 %v2656, 16
  %v2813 = vrot.slane %v2811, 5
  %v2814 = vshll.u32 %v2656, 16
  %v2816 = vrot.slane %v2814, 6
  %v2817 = vor.u32 %v2813, %v2816
  %v2818 = vsel %vm2670, %v2809, %v2817
  %v2819 = vrot.slane %v2817, 4
  %v2821 = vshrl.u32 %v2657, 16
  %v2823 = vrot.slane %v2821, 5
  %v2824 = vshll.u32 %v2657, 16
  %v2826 = vrot.slane %v2824, 6
  %v2827 = vor.u32 %v2823, %v2826
  %v2828 = vsel %vm2670, %v2819, %v2827
  %v2829 = vrot.slane %v2827, 4
  %v2831 = vshrl.u32 %v2658, 16
  %v2833 = vrot.slane %v2831, 5
  %v2834 = vshll.u32 %v2658, 16
  %v2836 = vrot.slane %v2834, 6
  %v2837 = vor.u32 %v2833, %v2836
  %v2838 = vsel %vm2670, %v2829, %v2837
  %v2839 = vrot.slane %v2837, 4
  %v2841 = vshrl.u32 %v2659, 16
  %v2843 = vrot.slane %v2841, 5
  %v2844 = vshll.u32 %v2659, 16
  %v2846 = vrot.slane %v2844, 6
  %v2847 = vor.u32 %v2843, %v2846
  %v2848 = vsel %vm2670, %v2839, %v2847
  %v2849 = vrot.slane %v2847, 4
  %v2851 = vshrl.u32 %v2660, 16
  %v2853 = vrot.slane %v2851, 5
  %v2854 = vshll.u32 %v2660, 16
  %v2856 = vrot.slane %v2854, 6
  %v2857 = vor.u32 %v2853, %v2856
  %v2858 = vsel %vm2670, %v2849, %v2857
  %v2859 = vrot.slane %v2857, 4
  %v2861 = vshrl.u32 %v2661, 16
  %v2863 = vrot.slane %v2861, 5
  %v2864 = vshll.u32 %v2661, 16
  %v2866 = vrot.slane %v2864, 6
  %v2867 = vor.u32 %v2863, %v2866
  %v2868 = vsel %vm2670, %v2859, %v2867
  %v2869 = vrot.slane %v2867, 4
  %v2871 = vshrl.u32 %v2662, 16
  %v2873 = vrot.slane %v2871, 5
  %v2874 = vshll.u32 %v2662, 16
  %v2876 = vrot.slane %v2874, 6
  %v2877 = vor.u32 %v2873, %v2876
  %v2878 = vsel %vm2670, %v2869, %v2877
  %v2879 = vrot.slane %v2877, 4
  %v2881 = vshrl.u32 %v2663, 16
  %v2883 = vrot.slane %v2881, 5
  %v2884 = vshll.u32 %v2663, 16
  %v2886 = vrot.slane %v2884, 6
  %v2887 = vor.u32 %v2883, %v2886
  %v2888 = vsel %vm2670, %v2879, %v2887
  %v2889 = vrot.slane %v2887, 4
  %v2891 = vshrl.u32 %v2664, 16
  %v2893 = vrot.slane %v2891, 5
  %v2894 = vshll.u32 %v2664, 16
  %v2896 = vrot.slane %v2894, 6
  %v2897 = vor.u32 %v2893, %v2896
  %v2898 = vsel %vm2670, %v2889, %v2897
  %v2899 = vrot.slane %v2897, 4
  %v2901 = vshrl.u32 %v2665, 16
  %v2903 = vrot.slane %v2901, 5
  %v2904 = vshll.u32 %v2665, 16
  %v2906 = vrot.slane %v2904, 6
  %v2907 = vor.u32 %v2903, %v2906
  %v2908 = vsel %vm2670, %v2899, %v2907
  %v2909 = vrot.slane %v2907, 4
  %v2911 = vshrl.u32 %v2666, 16
  %v2913 = vrot.slane %v2911, 5
  %v2914 = vshll.u32 %v2666, 16
  %v2916 = vrot.slane %v2914, 6
  %v2917 = vor.u32 %v2913, %v2916
  %v2918 = vsel %vm2670, %v2909, %v2917
  %v2919 = vrot.slane %v2917, 4
  %v2921 = vshrl.u32 %v2667, 16
  %v2923 = vrot.slane %v2921, 5
  %v2924 = vshll.u32 %v2667, 16
  %v2926 = vrot.slane %v2924, 6
  %v2927 = vor.u32 %v2923, %v2926
  %v2928 = vsel %vm2670, %v2919, %v2927
  %2954 = vst [vmem:[#allocation3 + $0x10] sm:$0xf] %v2688
  %2955 = vst [vmem:[#allocation3 + $0x34] sm:$0xf] %v2698
  %2956 = vst [vmem:[#allocation3 + $0x58] sm:$0xf] %v2708
  %2957 = vst [vmem:[#allocation3 + $0x7c] sm:$0xf] %v2718
  %2958 = vst [vmem:[#allocation3 + $0xa0] sm:$0xf] %v2728
  %2959 = vst [vmem:[#allocation3 + $0xc4] sm:$0xf] %v2738
  %2960 = vst [vmem:[#allocation3 + $0xe8] sm:$0xf] %v2748
  %2961 = vst [vmem:[#allocation3 + $0x10c] sm:$0xf] %v2758
  %2962 = vst [vmem:[#allocation3 + $0x130] sm:$0xf] %v2768
  %2963 = vst [vmem:[#allocation3 + $0x154] sm:$0xf] %v2778
  %2964 = vst [vmem:[#allocation3 + $0x178] sm:$0xf] %v2788
  %2965 = vst [vmem:[#allocation3 + $0x19c] sm:$0xf] %v2798
  %2966 = vst [vmem:[#allocation3 + $0x1c0] sm:$0xf] %v2808
  %2967 = vst [vmem:[#allocation3 + $0x1e4] sm:$0xf] %v2818
  %2968 = vst [vmem:[#allocation3 + $0x208] sm:$0xf] %v2828
  %2969 = vst [vmem:[#allocation3 + $0x22c] sm:$0xf] %v2838
  %2970 = vst [vmem:[#allocation3 + $0x250] sm:$0xf] %v2848
  %2971 = vst [vmem:[#allocation3 + $0x274] sm:$0xf] %v2858
  %2972 = vst [vmem:[#allocation3 + $0x298] sm:$0xf] %v2868
  %2973 = vst [vmem:[#allocation3 + $0x2bc] sm:$0xf] %v2878
  %2974 = vst [vmem:[#allocation3 + $0x2e0] sm:$0xf] %v2888
  %2975 = vst [vmem:[#allocation3 + $0x304] sm:$0xf] %v2898
  %2976 = vst [vmem:[#allocation3 + $0x328] sm:$0xf] %v2908
  %2977 = vst [vmem:[#allocation3 + $0x34c] sm:$0xf] %v2918
  %2978 = vst [vmem:[#allocation3 + $0x370] sm:$0xf] %v2928
  %v2979 = vld [vmem:[#allocation2] sm:$0xc0]
  %v2980 = vld [vmem:[#allocation2 + $0x8] sm:$0xff]
  %v2981 = vld [vmem:[#allocation2 + $0x10] sm:$0xff]
  %v2982 = vld [vmem:[#allocation2 + $0x18] sm:$0xff]
  %v2983 = vld [vmem:[#allocation2 + $0x20] sm:$0xff]
  %v2984 = vld [vmem:[#allocation2 + $0x28] sm:$0xff]
  %v2985 = vld [vmem:[#allocation2 + $0x30] sm:$0xff]
  %v2986 = vld [vmem:[#allocation2 + $0x38] sm:$0xff]
  %v2987 = vld [vmem:[#allocation2 + $0x40] sm:$0xff]
  %v2988 = vld [vmem:[#allocation2 + $0x48] sm:$0xff]
  %v2989 = vld [vmem:[#allocation2 + $0x50] sm:$0xff]
  %v2990 = vld [vmem:[#allocation2 + $0x58] sm:$0xff]
  %v2991 = vld [vmem:[#allocation2 + $0x60] sm:$0xff]
  %v2992 = vld [vmem:[#allocation2 + $0x68] sm:$0x3]
  %v3007 = vunpack.c.h.b16 %v2979
  %v3008 = vunpack.c.l.b16 %v2980
  %v3009 = vunpack.c.h.b16 %v2980
  %v3010 = vunpack.c.l.b16 %v2981
  %v3011 = vunpack.c.h.b16 %v2981
  %v3012 = vunpack.c.l.b16 %v2982
  %v3013 = vunpack.c.h.b16 %v2982
  %v3014 = vunpack.c.l.b16 %v2983
  %v3015 = vunpack.c.h.b16 %v2983
  %v3016 = vunpack.c.l.b16 %v2984
  %v3017 = vunpack.c.h.b16 %v2984
  %v3018 = vunpack.c.l.b16 %v2985
  %v3019 = vunpack.c.h.b16 %v2985
  %v3020 = vunpack.c.l.b16 %v2986
  %v3021 = vunpack.c.h.b16 %v2986
  %v3022 = vunpack.c.l.b16 %v2987
  %v3023 = vunpack.c.h.b16 %v2987
  %v3024 = vunpack.c.l.b16 %v2988
  %v3025 = vunpack.c.h.b16 %v2988
  %v3026 = vunpack.c.l.b16 %v2989
  %v3027 = vunpack.c.h.b16 %v2989
  %v3028 = vunpack.c.l.b16 %v2990
  %v3029 = vunpack.c.h.b16 %v2990
  %v3030 = vunpack.c.l.b16 %v2991
  %v3031 = vunpack.c.h.b16 %v2991
  %v3032 = vunpack.c.l.b16 %v2992
  %v3033 = vpack.c.b16 %v3007, %v3007
  %v3034 = vpack.c.b16 %v3008, %v3008
  %v3035 = vpack.c.b16 %v3009, %v3009
  %v3036 = vpack.c.b16 %v3010, %v3010
  %v3037 = vpack.c.b16 %v3011, %v3011
  %v3038 = vpack.c.b16 %v3012, %v3012
  %v3039 = vpack.c.b16 %v3013, %v3013
  %v3040 = vpack.c.b16 %v3014, %v3014
  %v3041 = vpack.c.b16 %v3015, %v3015
  %v3042 = vpack.c.b16 %v3016, %v3016
  %v3043 = vpack.c.b16 %v3017, %v3017
  %v3044 = vpack.c.b16 %v3018, %v3018
  %v3045 = vpack.c.b16 %v3019, %v3019
  %v3046 = vpack.c.b16 %v3020, %v3020
  %v3047 = vpack.c.b16 %v3021, %v3021
  %v3048 = vpack.c.b16 %v3022, %v3022
  %v3049 = vpack.c.b16 %v3023, %v3023
  %v3050 = vpack.c.b16 %v3024, %v3024
  %v3051 = vpack.c.b16 %v3025, %v3025
  %v3052 = vpack.c.b16 %v3026, %v3026
  %v3053 = vpack.c.b16 %v3027, %v3027
  %v3054 = vpack.c.b16 %v3028, %v3028
  %v3055 = vpack.c.b16 %v3029, %v3029
  %v3056 = vpack.c.b16 %v3030, %v3030
  %v3057 = vpack.c.b16 %v3031, %v3031
  %v3058 = vpack.c.b16 %v3032, %v3032
  %vm3059 = vcmask 1041408
  %vm3060 = vcmask 1045508
  %vm3061 = vmor %vm3059, %vm3060
  %v3062 = vrot.slane %v3033, 6
  %v3063 = vrot.slane %v3062, 4
  %v3064 = vrot.slane %v3034, 6
  %v3065 = vsel %vm3061, %v3063, %v3064
  %v3066 = vrot.slane %v3064, 4
  %v3067 = vrot.slane %v3035, 6
  %v3068 = vsel %vm3061, %v3066, %v3067
  %v3069 = vrot.slane %v3067, 4
  %v3070 = vrot.slane %v3036, 6
  %v3071 = vsel %vm3061, %v3069, %v3070
  %v3072 = vrot.slane %v3070, 4
  %v3073 = vrot.slane %v3037, 6
  %v3074 = vsel %vm3061, %v3072, %v3073
  %v3075 = vrot.slane %v3073, 4
  %v3076 = vrot.slane %v3038, 6
  %v3077 = vsel %vm3061, %v3075, %v3076
  %v3078 = vrot.slane %v3076, 4
  %v3079 = vrot.slane %v3039, 6
  %v3080 = vsel %vm3061, %v3078, %v3079
  %v3081 = vrot.slane %v3079, 4
  %v3082 = vrot.slane %v3040, 6
  %v3083 = vsel %vm3061, %v3081, %v3082
  %v3084 = vrot.slane %v3082, 4
  %v3085 = vrot.slane %v3041, 6
  %v3086 = vsel %vm3061, %v3084, %v3085
  %v3087 = vrot.slane %v3085, 4
  %v3088 = vrot.slane %v3042, 6
  %v3089 = vsel %vm3061, %v3087, %v3088
  %v3090 = vrot.slane %v3088, 4
  %v3091 = vrot.slane %v3043, 6
  %v3092 = vsel %vm3061, %v3090, %v3091
  %v3093 = vrot.slane %v3091, 4
  %v3094 = vrot.slane %v3044, 6
  %v3095 = vsel %vm3061, %v3093, %v3094
  %v3096 = vrot.slane %v3094, 4
  %v3097 = vrot.slane %v3045, 6
  %v3098 = vsel %vm3061, %v3096, %v3097
  %v3099 = vrot.slane %v3097, 4
  %v3100 = vrot.slane %v3046, 6
  %v3101 = vsel %vm3061, %v3099, %v3100
  %v3102 = vrot.slane %v3100, 4
  %v3103 = vrot.slane %v3047, 6
  %v3104 = vsel %vm3061, %v3102, %v3103
  %v3105 = vrot.slane %v3103, 4
  %v3106 = vrot.slane %v3048, 6
  %v3107 = vsel %vm3061, %v3105, %v3106
  %v3108 = vrot.slane %v3106, 4
  %v3109 = vrot.slane %v3049, 6
  %v3110 = vsel %vm3061, %v3108, %v3109
  %v3111 = vrot.slane %v3109, 4
  %v3112 = vrot.slane %v3050, 6
  %v3113 = vsel %vm3061, %v3111, %v3112
  %v3114 = vrot.slane %v3112, 4
  %v3115 = vrot.slane %v3051, 6
  %v3116 = vsel %vm3061, %v3114, %v3115
  %v3117 = vrot.slane %v3115, 4
  %v3118 = vrot.slane %v3052, 6
  %v3119 = vsel %vm3061, %v3117, %v3118
  %v3120 = vrot.slane %v3118, 4
  %v3121 = vrot.slane %v3053, 6
  %v3122 = vsel %vm3061, %v3120, %v3121
  %v3123 = vrot.slane %v3121, 4
  %v3124 = vrot.slane %v3054, 6
  %v3125 = vsel %vm3061, %v3123, %v3124
  %v3126 = vrot.slane %v3124, 4
  %v3127 = vrot.slane %v3055, 6
  %v3128 = vsel %vm3061, %v3126, %v3127
  %v3129 = vrot.slane %v3127, 4
  %v3130 = vrot.slane %v3056, 6
  %v3131 = vsel %vm3061, %v3129, %v3130
  %v3132 = vrot.slane %v3130, 4
  %v3133 = vrot.slane %v3057, 6
  %v3134 = vsel %vm3061, %v3132, %v3133
  %v3135 = vrot.slane %v3133, 4
  %v3136 = vrot.slane %v3058, 6
  %v3137 = vsel %vm3061, %v3135, %v3136
  %3163 = vst [vmem:[#allocation3 + $0x14] sm:$0xf] %v3065
  %3164 = vst [vmem:[#allocation3 + $0x38] sm:$0xf] %v3068
  %3165 = vst [vmem:[#allocation3 + $0x5c] sm:$0xf] %v3071
  %3166 = vst [vmem:[#allocation3 + $0x80] sm:$0xf] %v3074
  %3167 = vst [vmem:[#allocation3 + $0xa4] sm:$0xf] %v3077
  %3168 = vst [vmem:[#allocation3 + $0xc8] sm:$0xf] %v3080
  %3169 = vst [vmem:[#allocation3 + $0xec] sm:$0xf] %v3083
  %3170 = vst [vmem:[#allocation3 + $0x110] sm:$0xf] %v3086
  %3171 = vst [vmem:[#allocation3 + $0x134] sm:$0xf] %v3089
  %3172 = vst [vmem:[#allocation3 + $0x158] sm:$0xf] %v3092
  %3173 = vst [vmem:[#allocation3 + $0x17c] sm:$0xf] %v3095
  %3174 = vst [vmem:[#allocation3 + $0x1a0] sm:$0xf] %v3098
  %3175 = vst [vmem:[#allocation3 + $0x1c4] sm:$0xf] %v3101
  %3176 = vst [vmem:[#allocation3 + $0x1e8] sm:$0xf] %v3104
  %3177 = vst [vmem:[#allocation3 + $0x20c] sm:$0xf] %v3107
  %3178 = vst [vmem:[#allocation3 + $0x230] sm:$0xf] %v3110
  %3179 = vst [vmem:[#allocation3 + $0x254] sm:$0xf] %v3113
  %3180 = vst [vmem:[#allocation3 + $0x278] sm:$0xf] %v3116
  %3181 = vst [vmem:[#allocation3 + $0x29c] sm:$0xf] %v3119
  %3182 = vst [vmem:[#allocation3 + $0x2c0] sm:$0xf] %v3122
  %3183 = vst [vmem:[#allocation3 + $0x2e4] sm:$0xf] %v3125
  %3184 = vst [vmem:[#allocation3 + $0x308] sm:$0xf] %v3128
  %3185 = vst [vmem:[#allocation3 + $0x32c] sm:$0xf] %v3131
  %3186 = vst [vmem:[#allocation3 + $0x350] sm:$0xf] %v3134
  %3187 = vst [vmem:[#allocation3 + $0x374] sm:$0xf] %v3137
  %v3188 = vld [vmem:[#allocation2 + $0x8] sm:$0xfc]
  %v3189 = vld [vmem:[#allocation2 + $0x10] sm:$0xff]
  %v3190 = vld [vmem:[#allocation2 + $0x18] sm:$0xff]
  %v3191 = vld [vmem:[#allocation2 + $0x20] sm:$0xff]
  %v3192 = vld [vmem:[#allocation2 + $0x28] sm:$0xff]
  %v3193 = vld [vmem:[#allocation2 + $0x30] sm:$0xff]
  %v3194 = vld [vmem:[#allocation2 + $0x38] sm:$0xff]
  %v3195 = vld [vmem:[#allocation2 + $0x40] sm:$0xff]
  %v3196 = vld [vmem:[#allocation2 + $0x48] sm:$0xff]
  %v3197 = vld [vmem:[#allocation2 + $0x50] sm:$0xff]
  %v3198 = vld [vmem:[#allocation2 + $0x58] sm:$0xff]
  %v3199 = vld [vmem:[#allocation2 + $0x60] sm:$0xff]
  %v3200 = vld [vmem:[#allocation2 + $0x68] sm:$0x3f]
  %v3214 = vunpack.c.l.b16 %v3188
  %v3215 = vunpack.c.h.b16 %v3188
  %v3216 = vunpack.c.l.b16 %v3189
  %v3217 = vunpack.c.h.b16 %v3189
  %v3218 = vunpack.c.l.b16 %v3190
  %v3219 = vunpack.c.h.b16 %v3190
  %v3220 = vunpack.c.l.b16 %v3191
  %v3221 = vunpack.c.h.b16 %v3191
  %v3222 = vunpack.c.l.b16 %v3192
  %v3223 = vunpack.c.h.b16 %v3192
  %v3224 = vunpack.c.l.b16 %v3193
  %v3225 = vunpack.c.h.b16 %v3193
  %v3226 = vunpack.c.l.b16 %v3194
  %v3227 = vunpack.c.h.b16 %v3194
  %v3228 = vunpack.c.l.b16 %v3195
  %v3229 = vunpack.c.h.b16 %v3195
  %v3230 = vunpack.c.l.b16 %v3196
  %v3231 = vunpack.c.h.b16 %v3196
  %v3232 = vunpack.c.l.b16 %v3197
  %v3233 = vunpack.c.h.b16 %v3197
  %v3234 = vunpack.c.l.b16 %v3198
  %v3235 = vunpack.c.h.b16 %v3198
  %v3236 = vunpack.c.l.b16 %v3199
  %v3237 = vunpack.c.h.b16 %v3199
  %v3238 = vunpack.c.l.b16 %v3200
  %v3239 = vunpack.c.h.b16 %v3200
  %v3240 = vpack.c.b16 %v3214, %v3214
  %v3241 = vpack.c.b16 %v3215, %v3215
  %v3242 = vpack.c.b16 %v3216, %v3216
  %v3243 = vpack.c.b16 %v3217, %v3217
  %v3244 = vpack.c.b16 %v3218, %v3218
  %v3245 = vpack.c.b16 %v3219, %v3219
  %v3246 = vpack.c.b16 %v3220, %v3220
  %v3247 = vpack.c.b16 %v3221, %v3221
  %v3248 = vpack.c.b16 %v3222, %v3222
  %v3249 = vpack.c.b16 %v3223, %v3223
  %v3250 = vpack.c.b16 %v3224, %v3224
  %v3251 = vpack.c.b16 %v3225, %v3225
  %v3252 = vpack.c.b16 %v3226, %v3226
  %v3253 = vpack.c.b16 %v3227, %v3227
  %v3254 = vpack.c.b16 %v3228, %v3228
  %v3255 = vpack.c.b16 %v3229, %v3229
  %v3256 = vpack.c.b16 %v3230, %v3230
  %v3257 = vpack.c.b16 %v3231, %v3231
  %v3258 = vpack.c.b16 %v3232, %v3232
  %v3259 = vpack.c.b16 %v3233, %v3233
  %v3260 = vpack.c.b16 %v3234, %v3234
  %v3261 = vpack.c.b16 %v3235, %v3235
  %v3262 = vpack.c.b16 %v3236, %v3236
  %v3263 = vpack.c.b16 %v3237, %v3237
  %v3264 = vpack.c.b16 %v3238, %v3238
  %v3265 = vpack.c.b16 %v3239, %v3239
  %v3266 = vrot.slane %v3240, 6
  %v3267 = vrot.slane %v3266, 4
  %v3268 = vrot.slane %v3241, 6
  %v3269 = vsel %vm3061, %v3267, %v3268
  %v3270 = vrot.slane %v3268, 4
  %v3271 = vrot.slane %v3242, 6
  %v3272 = vsel %vm3061, %v3270, %v3271
  %v3273 = vrot.slane %v3271, 4
  %v3274 = vrot.slane %v3243, 6
  %v3275 = vsel %vm3061, %v3273, %v3274
  %v3276 = vrot.slane %v3274, 4
  %v3277 = vrot.slane %v3244, 6
  %v3278 = vsel %vm3061, %v3276, %v3277
  %v3279 = vrot.slane %v3277, 4
  %v3280 = vrot.slane %v3245, 6
  %v3281 = vsel %vm3061, %v3279, %v3280
  %v3282 = vrot.slane %v3280, 4
  %v3283 = vrot.slane %v3246, 6
  %v3284 = vsel %vm3061, %v3282, %v3283
  %v3285 = vrot.slane %v3283, 4
  %v3286 = vrot.slane %v3247, 6
  %v3287 = vsel %vm3061, %v3285, %v3286
  %v3288 = vrot.slane %v3286, 4
  %v3289 = vrot.slane %v3248, 6
  %v3290 = vsel %vm3061, %v3288, %v3289
  %v3291 = vrot.slane %v3289, 4
  %v3292 = vrot.slane %v3249, 6
  %v3293 = vsel %vm3061, %v3291, %v3292
  %v3294 = vrot.slane %v3292, 4
  %v3295 = vrot.slane %v3250, 6
  %v3296 = vsel %vm3061, %v3294, %v3295
  %v3297 = vrot.slane %v3295, 4
  %v3298 = vrot.slane %v3251, 6
  %v3299 = vsel %vm3061, %v3297, %v3298
  %v3300 = vrot.slane %v3298, 4
  %v3301 = vrot.slane %v3252, 6
  %v3302 = vsel %vm3061, %v3300, %v3301
  %v3303 = vrot.slane %v3301, 4
  %v3304 = vrot.slane %v3253, 6
  %v3305 = vsel %vm3061, %v3303, %v3304
  %v3306 = vrot.slane %v3304, 4
  %v3307 = vrot.slane %v3254, 6
  %v3308 = vsel %vm3061, %v3306, %v3307
  %v3309 = vrot.slane %v3307, 4
  %v3310 = vrot.slane %v3255, 6
  %v3311 = vsel %vm3061, %v3309, %v3310
  %v3312 = vrot.slane %v3310, 4
  %v3313 = vrot.slane %v3256, 6
  %v3314 = vsel %vm3061, %v3312, %v3313
  %v3315 = vrot.slane %v3313, 4
  %v3316 = vrot.slane %v3257, 6
  %v3317 = vsel %vm3061, %v3315, %v3316
  %v3318 = vrot.slane %v3316, 4
  %v3319 = vrot.slane %v3258, 6
  %v3320 = vsel %vm3061, %v3318, %v3319
  %v3321 = vrot.slane %v3319, 4
  %v3322 = vrot.slane %v3259, 6
  %v3323 = vsel %vm3061, %v3321, %v3322
  %v3324 = vrot.slane %v3322, 4
  %v3325 = vrot.slane %v3260, 6
  %v3326 = vsel %vm3061, %v3324, %v3325
  %v3327 = vrot.slane %v3325, 4
  %v3328 = vrot.slane %v3261, 6
  %v3329 = vsel %vm3061, %v3327, %v3328
  %v3330 = vrot.slane %v3328, 4
  %v3331 = vrot.slane %v3262, 6
  %v3332 = vsel %vm3061, %v3330, %v3331
  %v3333 = vrot.slane %v3331, 4
  %v3334 = vrot.slane %v3263, 6
  %v3335 = vsel %vm3061, %v3333, %v3334
  %v3336 = vrot.slane %v3334, 4
  %v3337 = vrot.slane %v3264, 6
  %v3338 = vsel %vm3061, %v3336, %v3337
  %v3339 = vrot.slane %v3337, 4
  %v3340 = vrot.slane %v3265, 6
  %v3341 = vsel %vm3061, %v3339, %v3340
  %3367 = vst [vmem:[#allocation3 + $0x18] sm:$0xf] %v3269
  %3368 = vst [vmem:[#allocation3 + $0x3c] sm:$0xf] %v3272
  %3369 = vst [vmem:[#allocation3 + $0x60] sm:$0xf] %v3275
  %3370 = vst [vmem:[#allocation3 + $0x84] sm:$0xf] %v3278
  %3371 = vst [vmem:[#allocation3 + $0xa8] sm:$0xf] %v3281
  %3372 = vst [vmem:[#allocation3 + $0xcc] sm:$0xf] %v3284
  %3373 = vst [vmem:[#allocation3 + $0xf0] sm:$0xf] %v3287
  %3374 = vst [vmem:[#allocation3 + $0x114] sm:$0xf] %v3290
  %3375 = vst [vmem:[#allocation3 + $0x138] sm:$0xf] %v3293
  %3376 = vst [vmem:[#allocation3 + $0x15c] sm:$0xf] %v3296
  %3377 = vst [vmem:[#allocation3 + $0x180] sm:$0xf] %v3299
  %3378 = vst [vmem:[#allocation3 + $0x1a4] sm:$0xf] %v3302
  %3379 = vst [vmem:[#allocation3 + $0x1c8] sm:$0xf] %v3305
  %3380 = vst [vmem:[#allocation3 + $0x1ec] sm:$0xf] %v3308
  %3381 = vst [vmem:[#allocation3 + $0x210] sm:$0xf] %v3311
  %3382 = vst [vmem:[#allocation3 + $0x234] sm:$0xf] %v3314
  %3383 = vst [vmem:[#allocation3 + $0x258] sm:$0xf] %v3317
  %3384 = vst [vmem:[#allocation3 + $0x27c] sm:$0xf] %v3320
  %3385 = vst [vmem:[#allocation3 + $0x2a0] sm:$0xf] %v3323
  %3386 = vst [vmem:[#allocation3 + $0x2c4] sm:$0xf] %v3326
  %3387 = vst [vmem:[#allocation3 + $0x2e8] sm:$0xf] %v3329
  %3388 = vst [vmem:[#allocation3 + $0x30c] sm:$0xf] %v3332
  %3389 = vst [vmem:[#allocation3 + $0x330] sm:$0xf] %v3335
  %3390 = vst [vmem:[#allocation3 + $0x354] sm:$0xf] %v3338
  %3391 = vst [vmem:[#allocation3 + $0x378] sm:$0xf] %v3341
  %v3392 = vld [vmem:[#allocation2 + $0x8] sm:$0xfc]
  %v3393 = vld [vmem:[#allocation2 + $0x10] sm:$0xff]
  %v3394 = vld [vmem:[#allocation2 + $0x18] sm:$0xff]
  %v3395 = vld [vmem:[#allocation2 + $0x20] sm:$0xff]
  %v3396 = vld [vmem:[#allocation2 + $0x28] sm:$0xff]
  %v3397 = vld [vmem:[#allocation2 + $0x30] sm:$0xff]
  %v3398 = vld [vmem:[#allocation2 + $0x38] sm:$0xff]
  %v3399 = vld [vmem:[#allocation2 + $0x40] sm:$0xff]
  %v3400 = vld [vmem:[#allocation2 + $0x48] sm:$0xff]
  %v3401 = vld [vmem:[#allocation2 + $0x50] sm:$0xff]
  %v3402 = vld [vmem:[#allocation2 + $0x58] sm:$0xff]
  %v3403 = vld [vmem:[#allocation2 + $0x60] sm:$0xff]
  %v3404 = vld [vmem:[#allocation2 + $0x68] sm:$0x7f]
  %v3418 = vunpack.c.l.b16 %v3392
  %v3419 = vunpack.c.h.b16 %v3392
  %v3420 = vunpack.c.l.b16 %v3393
  %v3421 = vunpack.c.h.b16 %v3393
  %v3422 = vunpack.c.l.b16 %v3394
  %v3423 = vunpack.c.h.b16 %v3394
  %v3424 = vunpack.c.l.b16 %v3395
  %v3425 = vunpack.c.h.b16 %v3395
  %v3426 = vunpack.c.l.b16 %v3396
  %v3427 = vunpack.c.h.b16 %v3396
  %v3428 = vunpack.c.l.b16 %v3397
  %v3429 = vunpack.c.h.b16 %v3397
  %v3430 = vunpack.c.l.b16 %v3398
  %v3431 = vunpack.c.h.b16 %v3398
  %v3432 = vunpack.c.l.b16 %v3399
  %v3433 = vunpack.c.h.b16 %v3399
  %v3434 = vunpack.c.l.b16 %v3400
  %v3435 = vunpack.c.h.b16 %v3400
  %v3436 = vunpack.c.l.b16 %v3401
  %v3437 = vunpack.c.h.b16 %v3401
  %v3438 = vunpack.c.l.b16 %v3402
  %v3439 = vunpack.c.h.b16 %v3402
  %v3440 = vunpack.c.l.b16 %v3403
  %v3441 = vunpack.c.h.b16 %v3403
  %v3442 = vunpack.c.l.b16 %v3404
  %v3443 = vunpack.c.h.b16 %v3404
  %v3444 = vpack.c.b16 %v3418, %v3418
  %v3445 = vpack.c.b16 %v3419, %v3419
  %v3446 = vpack.c.b16 %v3420, %v3420
  %v3447 = vpack.c.b16 %v3421, %v3421
  %v3448 = vpack.c.b16 %v3422, %v3422
  %v3449 = vpack.c.b16 %v3423, %v3423
  %v3450 = vpack.c.b16 %v3424, %v3424
  %v3451 = vpack.c.b16 %v3425, %v3425
  %v3452 = vpack.c.b16 %v3426, %v3426
  %v3453 = vpack.c.b16 %v3427, %v3427
  %v3454 = vpack.c.b16 %v3428, %v3428
  %v3455 = vpack.c.b16 %v3429, %v3429
  %v3456 = vpack.c.b16 %v3430, %v3430
  %v3457 = vpack.c.b16 %v3431, %v3431
  %v3458 = vpack.c.b16 %v3432, %v3432
  %v3459 = vpack.c.b16 %v3433, %v3433
  %v3460 = vpack.c.b16 %v3434, %v3434
  %v3461 = vpack.c.b16 %v3435, %v3435
  %v3462 = vpack.c.b16 %v3436, %v3436
  %v3463 = vpack.c.b16 %v3437, %v3437
  %v3464 = vpack.c.b16 %v3438, %v3438
  %v3465 = vpack.c.b16 %v3439, %v3439
  %v3466 = vpack.c.b16 %v3440, %v3440
  %v3467 = vpack.c.b16 %v3441, %v3441
  %v3468 = vpack.c.b16 %v3442, %v3442
  %v3469 = vpack.c.b16 %v3443, %v3443
  %vm3470 = vsmask.f32 1280
  %vm3471 = vsmask.f32 5392
  %vm3472 = vmor %vm3470, %vm3471
  %v3474 = vshrl.u32 %v3444, 16
  %v3476 = vrot.slane %v3474, 6
  %v3477 = vshll.u32 %v3444, 16
  %v3479 = vrot.slane %v3477, 7
  %v3480 = vor.u32 %v3476, %v3479
  %v3481 = vrot.slane %v3480, 4
  %v3483 = vshrl.u32 %v3445, 16
  %v3485 = vrot.slane %v3483, 6
  %v3486 = vshll.u32 %v3445, 16
  %v3488 = vrot.slane %v3486, 7
  %v3489 = vor.u32 %v3485, %v3488
  %v3490 = vsel %vm3472, %v3481, %v3489
  %v3491 = vrot.slane %v3489, 4
  %v3493 = vshrl.u32 %v3446, 16
  %v3495 = vrot.slane %v3493, 6
  %v3496 = vshll.u32 %v3446, 16
  %v3498 = vrot.slane %v3496, 7
  %v3499 = vor.u32 %v3495, %v3498
  %v3500 = vsel %vm3472, %v3491, %v3499
  %v3501 = vrot.slane %v3499, 4
  %v3503 = vshrl.u32 %v3447, 16
  %v3505 = vrot.slane %v3503, 6
  %v3506 = vshll.u32 %v3447, 16
  %v3508 = vrot.slane %v3506, 7
  %v3509 = vor.u32 %v3505, %v3508
  %v3510 = vsel %vm3472, %v3501, %v3509
  %v3511 = vrot.slane %v3509, 4
  %v3513 = vshrl.u32 %v3448, 16
  %v3515 = vrot.slane %v3513, 6
  %v3516 = vshll.u32 %v3448, 16
  %v3518 = vrot.slane %v3516, 7
  %v3519 = vor.u32 %v3515, %v3518
  %v3520 = vsel %vm3472, %v3511, %v3519
  %v3521 = vrot.slane %v3519, 4
  %v3523 = vshrl.u32 %v3449, 16
  %v3525 = vrot.slane %v3523, 6
  %v3526 = vshll.u32 %v3449, 16
  %v3528 = vrot.slane %v3526, 7
  %v3529 = vor.u32 %v3525, %v3528
  %v3530 = vsel %vm3472, %v3521, %v3529
  %v3531 = vrot.slane %v3529, 4
  %v3533 = vshrl.u32 %v3450, 16
  %v3535 = vrot.slane %v3533, 6
  %v3536 = vshll.u32 %v3450, 16
  %v3538 = vrot.slane %v3536, 7
  %v3539 = vor.u32 %v3535, %v3538
  %v3540 = vsel %vm3472, %v3531, %v3539
  %v3541 = vrot.slane %v3539, 4
  %v3543 = vshrl.u32 %v3451, 16
  %v3545 = vrot.slane %v3543, 6
  %v3546 = vshll.u32 %v3451, 16
  %v3548 = vrot.slane %v3546, 7
  %v3549 = vor.u32 %v3545, %v3548
  %v3550 = vsel %vm3472, %v3541, %v3549
  %v3551 = vrot.slane %v3549, 4
  %v3553 = vshrl.u32 %v3452, 16
  %v3555 = vrot.slane %v3553, 6
  %v3556 = vshll.u32 %v3452, 16
  %v3558 = vrot.slane %v3556, 7
  %v3559 = vor.u32 %v3555, %v3558
  %v3560 = vsel %vm3472, %v3551, %v3559
  %v3561 = vrot.slane %v3559, 4
  %v3563 = vshrl.u32 %v3453, 16
  %v3565 = vrot.slane %v3563, 6
  %v3566 = vshll.u32 %v3453, 16
  %v3568 = vrot.slane %v3566, 7
  %v3569 = vor.u32 %v3565, %v3568
  %v3570 = vsel %vm3472, %v3561, %v3569
  %v3571 = vrot.slane %v3569, 4
  %v3573 = vshrl.u32 %v3454, 16
  %v3575 = vrot.slane %v3573, 6
  %v3576 = vshll.u32 %v3454, 16
  %v3578 = vrot.slane %v3576, 7
  %v3579 = vor.u32 %v3575, %v3578
  %v3580 = vsel %vm3472, %v3571, %v3579
  %v3581 = vrot.slane %v3579, 4
  %v3583 = vshrl.u32 %v3455, 16
  %v3585 = vrot.slane %v3583, 6
  %v3586 = vshll.u32 %v3455, 16
  %v3588 = vrot.slane %v3586, 7
  %v3589 = vor.u32 %v3585, %v3588
  %v3590 = vsel %vm3472, %v3581, %v3589
  %v3591 = vrot.slane %v3589, 4
  %v3593 = vshrl.u32 %v3456, 16
  %v3595 = vrot.slane %v3593, 6
  %v3596 = vshll.u32 %v3456, 16
  %v3598 = vrot.slane %v3596, 7
  %v3599 = vor.u32 %v3595, %v3598
  %v3600 = vsel %vm3472, %v3591, %v3599
  %v3601 = vrot.slane %v3599, 4
  %v3603 = vshrl.u32 %v3457, 16
  %v3605 = vrot.slane %v3603, 6
  %v3606 = vshll.u32 %v3457, 16
  %v3608 = vrot.slane %v3606, 7
  %v3609 = vor.u32 %v3605, %v3608
  %v3610 = vsel %vm3472, %v3601, %v3609
  %v3611 = vrot.slane %v3609, 4
  %v3613 = vshrl.u32 %v3458, 16
  %v3615 = vrot.slane %v3613, 6
  %v3616 = vshll.u32 %v3458, 16
  %v3618 = vrot.slane %v3616, 7
  %v3619 = vor.u32 %v3615, %v3618
  %v3620 = vsel %vm3472, %v3611, %v3619
  %v3621 = vrot.slane %v3619, 4
  %v3623 = vshrl.u32 %v3459, 16
  %v3625 = vrot.slane %v3623, 6
  %v3626 = vshll.u32 %v3459, 16
  %v3628 = vrot.slane %v3626, 7
  %v3629 = vor.u32 %v3625, %v3628
  %v3630 = vsel %vm3472, %v3621, %v3629
  %v3631 = vrot.slane %v3629, 4
  %v3633 = vshrl.u32 %v3460, 16
  %v3635 = vrot.slane %v3633, 6
  %v3636 = vshll.u32 %v3460, 16
  %v3638 = vrot.slane %v3636, 7
  %v3639 = vor.u32 %v3635, %v3638
  %v3640 = vsel %vm3472, %v3631, %v3639
  %v3641 = vrot.slane %v3639, 4
  %v3643 = vshrl.u32 %v3461, 16
  %v3645 = vrot.slane %v3643, 6
  %v3646 = vshll.u32 %v3461, 16
  %v3648 = vrot.slane %v3646, 7
  %v3649 = vor.u32 %v3645, %v3648
  %v3650 = vsel %vm3472, %v3641, %v3649
  %v3651 = vrot.slane %v3649, 4
  %v3653 = vshrl.u32 %v3462, 16
  %v3655 = vrot.slane %v3653, 6
  %v3656 = vshll.u32 %v3462, 16
  %v3658 = vrot.slane %v3656, 7
  %v3659 = vor.u32 %v3655, %v3658
  %v3660 = vsel %vm3472, %v3651, %v3659
  %v3661 = vrot.slane %v3659, 4
  %v3663 = vshrl.u32 %v3463, 16
  %v3665 = vrot.slane %v3663, 6
  %v3666 = vshll.u32 %v3463, 16
  %v3668 = vrot.slane %v3666, 7
  %v3669 = vor.u32 %v3665, %v3668
  %v3670 = vsel %vm3472, %v3661, %v3669
  %v3671 = vrot.slane %v3669, 4
  %v3673 = vshrl.u32 %v3464, 16
  %v3675 = vrot.slane %v3673, 6
  %v3676 = vshll.u32 %v3464, 16
  %v3678 = vrot.slane %v3676, 7
  %v3679 = vor.u32 %v3675, %v3678
  %v3680 = vsel %vm3472, %v3671, %v3679
  %v3681 = vrot.slane %v3679, 4
  %v3683 = vshrl.u32 %v3465, 16
  %v3685 = vrot.slane %v3683, 6
  %v3686 = vshll.u32 %v3465, 16
  %v3688 = vrot.slane %v3686, 7
  %v3689 = vor.u32 %v3685, %v3688
  %v3690 = vsel %vm3472, %v3681, %v3689
  %v3691 = vrot.slane %v3689, 4
  %v3693 = vshrl.u32 %v3466, 16
  %v3695 = vrot.slane %v3693, 6
  %v3696 = vshll.u32 %v3466, 16
  %v3698 = vrot.slane %v3696, 7
  %v3699 = vor.u32 %v3695, %v3698
  %v3700 = vsel %vm3472, %v3691, %v3699
  %v3701 = vrot.slane %v3699, 4
  %v3703 = vshrl.u32 %v3467, 16
  %v3705 = vrot.slane %v3703, 6
  %v3706 = vshll.u32 %v3467, 16
  %v3708 = vrot.slane %v3706, 7
  %v3709 = vor.u32 %v3705, %v3708
  %v3710 = vsel %vm3472, %v3701, %v3709
  %v3711 = vrot.slane %v3709, 4
  %v3713 = vshrl.u32 %v3468, 16
  %v3715 = vrot.slane %v3713, 6
  %v3716 = vshll.u32 %v3468, 16
  %v3718 = vrot.slane %v3716, 7
  %v3719 = vor.u32 %v3715, %v3718
  %v3720 = vsel %vm3472, %v3711, %v3719
  %v3721 = vrot.slane %v3719, 4
  %v3723 = vshrl.u32 %v3469, 16
  %v3725 = vrot.slane %v3723, 6
  %v3726 = vshll.u32 %v3469, 16
  %v3728 = vrot.slane %v3726, 7
  %v3729 = vor.u32 %v3725, %v3728
  %v3730 = vsel %vm3472, %v3721, %v3729
  %3756 = vst [vmem:[#allocation3 + $0x1c] sm:$0xf] %v3490
  %3757 = vst [vmem:[#allocation3 + $0x40] sm:$0xf] %v3500
  %3758 = vst [vmem:[#allocation3 + $0x64] sm:$0xf] %v3510
  %3759 = vst [vmem:[#allocation3 + $0x88] sm:$0xf] %v3520
  %3760 = vst [vmem:[#allocation3 + $0xac] sm:$0xf] %v3530
  %3761 = vst [vmem:[#allocation3 + $0xd0] sm:$0xf] %v3540
  %3762 = vst [vmem:[#allocation3 + $0xf4] sm:$0xf] %v3550
  %3763 = vst [vmem:[#allocation3 + $0x118] sm:$0xf] %v3560
  %3764 = vst [vmem:[#allocation3 + $0x13c] sm:$0xf] %v3570
  %3765 = vst [vmem:[#allocation3 + $0x160] sm:$0xf] %v3580
  %3766 = vst [vmem:[#allocation3 + $0x184] sm:$0xf] %v3590
  %3767 = vst [vmem:[#allocation3 + $0x1a8] sm:$0xf] %v3600
  %3768 = vst [vmem:[#allocation3 + $0x1cc] sm:$0xf] %v3610
  %3769 = vst [vmem:[#allocation3 + $0x1f0] sm:$0xf] %v3620
  %3770 = vst [vmem:[#allocation3 + $0x214] sm:$0xf] %v3630
  %3771 = vst [vmem:[#allocation3 + $0x238] sm:$0xf] %v3640
  %3772 = vst [vmem:[#allocation3 + $0x25c] sm:$0xf] %v3650
  %3773 = vst [vmem:[#allocation3 + $0x280] sm:$0xf] %v3660
  %3774 = vst [vmem:[#allocation3 + $0x2a4] sm:$0xf] %v3670
  %3775 = vst [vmem:[#allocation3 + $0x2c8] sm:$0xf] %v3680
  %3776 = vst [vmem:[#allocation3 + $0x2ec] sm:$0xf] %v3690
  %3777 = vst [vmem:[#allocation3 + $0x310] sm:$0xf] %v3700
  %3778 = vst [vmem:[#allocation3 + $0x334] sm:$0xf] %v3710
  %3779 = vst [vmem:[#allocation3 + $0x358] sm:$0xf] %v3720
  %3780 = vst [vmem:[#allocation3 + $0x37c] sm:$0xf] %v3730
  %v3781 = vld [vmem:[#allocation2 + $0x8] sm:$0xf8]
  %v3782 = vld [vmem:[#allocation2 + $0x10] sm:$0xff]
  %v3783 = vld [vmem:[#allocation2 + $0x18] sm:$0xff]
  %v3784 = vld [vmem:[#allocation2 + $0x20] sm:$0xff]
  %v3785 = vld [vmem:[#allocation2 + $0x28] sm:$0xff]
  %v3786 = vld [vmem:[#allocation2 + $0x30] sm:$0xff]
  %v3787 = vld [vmem:[#allocation2 + $0x38] sm:$0xff]
  %v3788 = vld [vmem:[#allocation2 + $0x40] sm:$0xff]
  %v3789 = vld [vmem:[#allocation2 + $0x48] sm:$0xff]
  %v3790 = vld [vmem:[#allocation2 + $0x50] sm:$0xff]
  %v3791 = vld [vmem:[#allocation2 + $0x58] sm:$0xff]
  %v3792 = vld [vmem:[#allocation2 + $0x60] sm:$0xff]
  %v3793 = vld [vmem:[#allocation2 + $0x68] sm:$0x7f]
  %v3807 = vunpack.c.l.b16 %v3781
  %v3808 = vunpack.c.h.b16 %v3781
  %v3809 = vunpack.c.l.b16 %v3782
  %v3810 = vunpack.c.h.b16 %v3782
  %v3811 = vunpack.c.l.b16 %v3783
  %v3812 = vunpack.c.h.b16 %v3783
  %v3813 = vunpack.c.l.b16 %v3784
  %v3814 = vunpack.c.h.b16 %v3784
  %v3815 = vunpack.c.l.b16 %v3785
  %v3816 = vunpack.c.h.b16 %v3785
  %v3817 = vunpack.c.l.b16 %v3786
  %v3818 = vunpack.c.h.b16 %v3786
  %v3819 = vunpack.c.l.b16 %v3787
  %v3820 = vunpack.c.h.b16 %v3787
  %v3821 = vunpack.c.l.b16 %v3788
  %v3822 = vunpack.c.h.b16 %v3788
  %v3823 = vunpack.c.l.b16 %v3789
  %v3824 = vunpack.c.h.b16 %v3789
  %v3825 = vunpack.c.l.b16 %v3790
  %v3826 = vunpack.c.h.b16 %v3790
  %v3827 = vunpack.c.l.b16 %v3791
  %v3828 = vunpack.c.h.b16 %v3791
  %v3829 = vunpack.c.l.b16 %v3792
  %v3830 = vunpack.c.h.b16 %v3792
  %v3831 = vunpack.c.l.b16 %v3793
  %v3832 = vunpack.c.h.b16 %v3793
  %v3833 = vpack.c.b16 %v3807, %v3807
  %v3834 = vpack.c.b16 %v3808, %v3808
  %v3835 = vpack.c.b16 %v3809, %v3809
  %v3836 = vpack.c.b16 %v3810, %v3810
  %v3837 = vpack.c.b16 %v3811, %v3811
  %v3838 = vpack.c.b16 %v3812, %v3812
  %v3839 = vpack.c.b16 %v3813, %v3813
  %v3840 = vpack.c.b16 %v3814, %v3814
  %v3841 = vpack.c.b16 %v3815, %v3815
  %v3842 = vpack.c.b16 %v3816, %v3816
  %v3843 = vpack.c.b16 %v3817, %v3817
  %v3844 = vpack.c.b16 %v3818, %v3818
  %v3845 = vpack.c.b16 %v3819, %v3819
  %v3846 = vpack.c.b16 %v3820, %v3820
  %v3847 = vpack.c.b16 %v3821, %v3821
  %v3848 = vpack.c.b16 %v3822, %v3822
  %v3849 = vpack.c.b16 %v3823, %v3823
  %v3850 = vpack.c.b16 %v3824, %v3824
  %v3851 = vpack.c.b16 %v3825, %v3825
  %v3852 = vpack.c.b16 %v3826, %v3826
  %v3853 = vpack.c.b16 %v3827, %v3827
  %v3854 = vpack.c.b16 %v3828, %v3828
  %v3855 = vpack.c.b16 %v3829, %v3829
  %v3856 = vpack.c.b16 %v3830, %v3830
  %v3857 = vpack.c.b16 %v3831, %v3831
  %v3858 = vpack.c.b16 %v3832, %v3832
  %vm3859 = vcmask 1040384
  %vm3860 = vcmask 1044484
  %vm3861 = vmor %vm3859, %vm3860
  %v3862 = vrot.slane %v3833, 7
  %v3863 = vrot.slane %v3862, 4
  %v3864 = vrot.slane %v3834, 7
  %v3865 = vsel %vm3861, %v3863, %v3864
  %v3866 = vrot.slane %v3864, 4
  %v3867 = vrot.slane %v3835, 7
  %v3868 = vsel %vm3861, %v3866, %v3867
  %v3869 = vrot.slane %v3867, 4
  %v3870 = vrot.slane %v3836, 7
  %v3871 = vsel %vm3861, %v3869, %v3870
  %v3872 = vrot.slane %v3870, 4
  %v3873 = vrot.slane %v3837, 7
  %v3874 = vsel %vm3861, %v3872, %v3873
  %v3875 = vrot.slane %v3873, 4
  %v3876 = vrot.slane %v3838, 7
  %v3877 = vsel %vm3861, %v3875, %v3876
  %v3878 = vrot.slane %v3876, 4
  %v3879 = vrot.slane %v3839, 7
  %v3880 = vsel %vm3861, %v3878, %v3879
  %v3881 = vrot.slane %v3879, 4
  %v3882 = vrot.slane %v3840, 7
  %v3883 = vsel %vm3861, %v3881, %v3882
  %v3884 = vrot.slane %v3882, 4
  %v3885 = vrot.slane %v3841, 7
  %v3886 = vsel %vm3861, %v3884, %v3885
  %v3887 = vrot.slane %v3885, 4
  %v3888 = vrot.slane %v3842, 7
  %v3889 = vsel %vm3861, %v3887, %v3888
  %v3890 = vrot.slane %v3888, 4
  %v3891 = vrot.slane %v3843, 7
  %v3892 = vsel %vm3861, %v3890, %v3891
  %v3893 = vrot.slane %v3891, 4
  %v3894 = vrot.slane %v3844, 7
  %v3895 = vsel %vm3861, %v3893, %v3894
  %v3896 = vrot.slane %v3894, 4
  %v3897 = vrot.slane %v3845, 7
  %v3898 = vsel %vm3861, %v3896, %v3897
  %v3899 = vrot.slane %v3897, 4
  %v3900 = vrot.slane %v3846, 7
  %v3901 = vsel %vm3861, %v3899, %v3900
  %v3902 = vrot.slane %v3900, 4
  %v3903 = vrot.slane %v3847, 7
  %v3904 = vsel %vm3861, %v3902, %v3903
  %v3905 = vrot.slane %v3903, 4
  %v3906 = vrot.slane %v3848, 7
  %v3907 = vsel %vm3861, %v3905, %v3906
  %v3908 = vrot.slane %v3906, 4
  %v3909 = vrot.slane %v3849, 7
  %v3910 = vsel %vm3861, %v3908, %v3909
  %v3911 = vrot.slane %v3909, 4
  %v3912 = vrot.slane %v3850, 7
  %v3913 = vsel %vm3861, %v3911, %v3912
  %v3914 = vrot.slane %v3912, 4
  %v3915 = vrot.slane %v3851, 7
  %v3916 = vsel %vm3861, %v3914, %v3915
  %v3917 = vrot.slane %v3915, 4
  %v3918 = vrot.slane %v3852, 7
  %v3919 = vsel %vm3861, %v3917, %v3918
  %v3920 = vrot.slane %v3918, 4
  %v3921 = vrot.slane %v3853, 7
  %v3922 = vsel %vm3861, %v3920, %v3921
  %v3923 = vrot.slane %v3921, 4
  %v3924 = vrot.slane %v3854, 7
  %v3925 = vsel %vm3861, %v3923, %v3924
  %v3926 = vrot.slane %v3924, 4
  %v3927 = vrot.slane %v3855, 7
  %v3928 = vsel %vm3861, %v3926, %v3927
  %v3929 = vrot.slane %v3927, 4
  %v3930 = vrot.slane %v3856, 7
  %v3931 = vsel %vm3861, %v3929, %v3930
  %v3932 = vrot.slane %v3930, 4
  %v3933 = vrot.slane %v3857, 7
  %v3934 = vsel %vm3861, %v3932, %v3933
  %v3935 = vrot.slane %v3933, 4
  %v3936 = vrot.slane %v3858, 7
  %v3937 = vsel %vm3861, %v3935, %v3936
  %3963 = vst [vmem:[#allocation3 + $0x20] sm:$0xf] %v3865
  %3964 = vst [vmem:[#allocation3 + $0x44] sm:$0xf] %v3868
  %3965 = vst [vmem:[#allocation3 + $0x68] sm:$0xf] %v3871
  %3966 = vst [vmem:[#allocation3 + $0x8c] sm:$0xf] %v3874
  %3967 = vst [vmem:[#allocation3 + $0xb0] sm:$0xf] %v3877
  %3968 = vst [vmem:[#allocation3 + $0xd4] sm:$0xf] %v3880
  %3969 = vst [vmem:[#allocation3 + $0xf8] sm:$0xf] %v3883
  %3970 = vst [vmem:[#allocation3 + $0x11c] sm:$0xf] %v3886
  %3971 = vst [vmem:[#allocation3 + $0x140] sm:$0xf] %v3889
  %3972 = vst [vmem:[#allocation3 + $0x164] sm:$0xf] %v3892
  %3973 = vst [vmem:[#allocation3 + $0x188] sm:$0xf] %v3895
  %3974 = vst [vmem:[#allocation3 + $0x1ac] sm:$0xf] %v3898
  %3975 = vst [vmem:[#allocation3 + $0x1d0] sm:$0xf] %v3901
  %3976 = vst [vmem:[#allocation3 + $0x1f4] sm:$0xf] %v3904
  %3977 = vst [vmem:[#allocation3 + $0x218] sm:$0xf] %v3907
  %3978 = vst [vmem:[#allocation3 + $0x23c] sm:$0xf] %v3910
  %3979 = vst [vmem:[#allocation3 + $0x260] sm:$0xf] %v3913
  %3980 = vst [vmem:[#allocation3 + $0x284] sm:$0xf] %v3916
  %3981 = vst [vmem:[#allocation3 + $0x2a8] sm:$0xf] %v3919
  %3982 = vst [vmem:[#allocation3 + $0x2cc] sm:$0xf] %v3922
  %3983 = vst [vmem:[#allocation3 + $0x2f0] sm:$0xf] %v3925
  %3984 = vst [vmem:[#allocation3 + $0x314] sm:$0xf] %v3928
  %3985 = vst [vmem:[#allocation3 + $0x338] sm:$0xf] %v3931
  %3986 = vst [vmem:[#allocation3 + $0x35c] sm:$0xf] %v3934
  %3987 = vst [vmem:[#allocation3 + $0x380] sm:$0xf] %v3937
  %v3988 = vld [vmem:[#allocation3] sm:$0xff]
  %v3989 = vld [vmem:[#allocation3 + $0x8] sm:$0xff]
  %v3990 = vld [vmem:[#allocation3 + $0x10] sm:$0xff]
  %v3991 = vld [vmem:[#allocation3 + $0x18] sm:$0xff]
  %v3992 = vld [vmem:[#allocation3 + $0x20] sm:$0xf]
  %v3993 = vld [vmem:[#allocation3 + $0x24] sm:$0xff]
  %v3994 = vld [vmem:[#allocation3 + $0x2c] sm:$0xff]
  %v3995 = vld [vmem:[#allocation3 + $0x34] sm:$0xff]
  %v3996 = vld [vmem:[#allocation3 + $0x3c] sm:$0xff]
  %v3997 = vld [vmem:[#allocation3 + $0x44] sm:$0xf]
  %v3998 = vld [vmem:[#allocation3 + $0x48] sm:$0xff]
  %v3999 = vld [vmem:[#allocation3 + $0x50] sm:$0xff]
  %v4000 = vld [vmem:[#allocation3 + $0x58] sm:$0xff]
  %v4001 = vld [vmem:[#allocation3 + $0x60] sm:$0xff]
  %v4002 = vld [vmem:[#allocation3 + $0x68] sm:$0xf]
  %v4003 = vld [vmem:[#allocation3 + $0x6c] sm:$0xff]
  %v4004 = vld [vmem:[#allocation3 + $0x74] sm:$0xff]
  %v4005 = vld [vmem:[#allocation3 + $0x7c] sm:$0xff]
  %v4006 = vld [vmem:[#allocation3 + $0x84] sm:$0xff]
  %v4007 = vld [vmem:[#allocation3 + $0x8c] sm:$0xf]
  %v4008 = vld [vmem:[#allocation3 + $0x90] sm:$0xff]
  %v4009 = vld [vmem:[#allocation3 + $0x98] sm:$0xff]
  %v4010 = vld [vmem:[#allocation3 + $0xa0] sm:$0xff]
  %v4011 = vld [vmem:[#allocation3 + $0xa8] sm:$0xff]
  %v4012 = vld [vmem:[#allocation3 + $0xb0] sm:$0xf]
  %v4013 = vld [vmem:[#allocation3 + $0xb4] sm:$0xff]
  %v4014 = vld [vmem:[#allocation3 + $0xbc] sm:$0xff]
  %v4015 = vld [vmem:[#allocation3 + $0xc4] sm:$0xff]
  %v4016 = vld [vmem:[#allocation3 + $0xcc] sm:$0xff]
  %v4017 = vld [vmem:[#allocation3 + $0xd4] sm:$0xf]
  %v4018 = vld [vmem:[#allocation3 + $0xd8] sm:$0xff]
  %v4019 = vld [vmem:[#allocation3 + $0xe0] sm:$0xff]
  %v4020 = vld [vmem:[#allocation3 + $0xe8] sm:$0xff]
  %v4021 = vld [vmem:[#allocation3 + $0xf0] sm:$0xff]
  %v4022 = vld [vmem:[#allocation3 + $0xf8] sm:$0xf]
  %v4023 = vld [vmem:[#allocation3 + $0xfc] sm:$0xff]
  %v4024 = vld [vmem:[#allocation3 + $0x104] sm:$0xff]
  %v4025 = vld [vmem:[#allocation3 + $0x10c] sm:$0xff]
  %v4026 = vld [vmem:[#allocation3 + $0x114] sm:$0xff]
  %v4027 = vld [vmem:[#allocation3 + $0x11c] sm:$0xf]
  %v4028 = vld [vmem:[#allocation3 + $0x120] sm:$0xff]
  %v4029 = vld [vmem:[#allocation3 + $0x128] sm:$0xff]
  %v4030 = vld [vmem:[#allocation3 + $0x130] sm:$0xff]
  %v4031 = vld [vmem:[#allocation3 + $0x138] sm:$0xff]
  %v4032 = vld [vmem:[#allocation3 + $0x140] sm:$0xf]
  %v4033 = vld [vmem:[#allocation3 + $0x144] sm:$0xff]
  %v4034 = vld [vmem:[#allocation3 + $0x14c] sm:$0xff]
  %v4035 = vld [vmem:[#allocation3 + $0x154] sm:$0xff]
  %v4036 = vld [vmem:[#allocation3 + $0x15c] sm:$0xff]
  %v4037 = vld [vmem:[#allocation3 + $0x164] sm:$0xf]
  %v4038 = vld [vmem:[#allocation3 + $0x168] sm:$0xff]
  %v4039 = vld [vmem:[#allocation3 + $0x170] sm:$0xff]
  %v4040 = vld [vmem:[#allocation3 + $0x178] sm:$0xff]
  %v4041 = vld [vmem:[#allocation3 + $0x180] sm:$0xff]
  %v4042 = vld [vmem:[#allocation3 + $0x188] sm:$0xf]
  %v4043 = vld [vmem:[#allocation3 + $0x18c] sm:$0xff]
  %v4044 = vld [vmem:[#allocation3 + $0x194] sm:$0xff]
  %v4045 = vld [vmem:[#allocation3 + $0x19c] sm:$0xff]
  %v4046 = vld [vmem:[#allocation3 + $0x1a4] sm:$0xff]
  %v4047 = vld [vmem:[#allocation3 + $0x1ac] sm:$0xf]
  %v4048 = vld [vmem:[#allocation3 + $0x1b0] sm:$0xff]
  %v4049 = vld [vmem:[#allocation3 + $0x1b8] sm:$0xff]
  %v4050 = vld [vmem:[#allocation3 + $0x1c0] sm:$0xff]
  %v4051 = vld [vmem:[#allocation3 + $0x1c8] sm:$0xff]
  %v4052 = vld [vmem:[#allocation3 + $0x1d0] sm:$0xf]
  %v4053 = vld [vmem:[#allocation3 + $0x1d4] sm:$0xff]
  %v4054 = vld [vmem:[#allocation3 + $0x1dc] sm:$0xff]
  %v4055 = vld [vmem:[#allocation3 + $0x1e4] sm:$0xff]
  %v4056 = vld [vmem:[#allocation3 + $0x1ec] sm:$0xff]
  %v4057 = vld [vmem:[#allocation3 + $0x1f4] sm:$0xf]
  %v4058 = vld [vmem:[#allocation3 + $0x1f8] sm:$0xff]
  %v4059 = vld [vmem:[#allocation3 + $0x200] sm:$0xff]
  %v4060 = vld [vmem:[#allocation3 + $0x208] sm:$0xff]
  %v4061 = vld [vmem:[#allocation3 + $0x210] sm:$0xff]
  %v4062 = vld [vmem:[#allocation3 + $0x218] sm:$0xf]
  %v4063 = vld [vmem:[#allocation3 + $0x21c] sm:$0xff]
  %v4064 = vld [vmem:[#allocation3 + $0x224] sm:$0xff]
  %v4065 = vld [vmem:[#allocation3 + $0x22c] sm:$0xff]
  %v4066 = vld [vmem:[#allocation3 + $0x234] sm:$0xff]
  %v4067 = vld [vmem:[#allocation3 + $0x23c] sm:$0xf]
  %v4068 = vld [vmem:[#allocation3 + $0x240] sm:$0xff]
  %v4069 = vld [vmem:[#allocation3 + $0x248] sm:$0xff]
  %v4070 = vld [vmem:[#allocation3 + $0x250] sm:$0xff]
  %v4071 = vld [vmem:[#allocation3 + $0x258] sm:$0xff]
  %v4072 = vld [vmem:[#allocation3 + $0x260] sm:$0xf]
  %v4073 = vld [vmem:[#allocation3 + $0x264] sm:$0xff]
  %v4074 = vld [vmem:[#allocation3 + $0x26c] sm:$0xff]
  %v4075 = vld [vmem:[#allocation3 + $0x274] sm:$0xff]
  %v4076 = vld [vmem:[#allocation3 + $0x27c] sm:$0xff]
  %v4077 = vld [vmem:[#allocation3 + $0x284] sm:$0xf]
  %v4078 = vld [vmem:[#allocation3 + $0x288] sm:$0xff]
  %v4079 = vld [vmem:[#allocation3 + $0x290] sm:$0xff]
  %v4080 = vld [vmem:[#allocation3 + $0x298] sm:$0xff]
  %v4081 = vld [vmem:[#allocation3 + $0x2a0] sm:$0xff]
  %v4082 = vld [vmem:[#allocation3 + $0x2a8] sm:$0xf]
  %v4083 = vld [vmem:[#allocation3 + $0x2ac] sm:$0xff]
  %v4084 = vld [vmem:[#allocation3 + $0x2b4] sm:$0xff]
  %v4085 = vld [vmem:[#allocation3 + $0x2bc] sm:$0xff]
  %v4086 = vld [vmem:[#allocation3 + $0x2c4] sm:$0xff]
  %v4087 = vld [vmem:[#allocation3 + $0x2cc] sm:$0xf]
  %v4088 = vld [vmem:[#allocation3 + $0x2d0] sm:$0xff]
  %v4089 = vld [vmem:[#allocation3 + $0x2d8] sm:$0xff]
  %v4090 = vld [vmem:[#allocation3 + $0x2e0] sm:$0xff]
  %v4091 = vld [vmem:[#allocation3 + $0x2e8] sm:$0xff]
  %v4092 = vld [vmem:[#allocation3 + $0x2f0] sm:$0xf]
  %v4093 = vld [vmem:[#allocation3 + $0x2f4] sm:$0xff]
  %v4094 = vld [vmem:[#allocation3 + $0x2fc] sm:$0xff]
  %v4095 = vld [vmem:[#allocation3 + $0x304] sm:$0xff]
  %v4096 = vld [vmem:[#allocation3 + $0x30c] sm:$0xff]
  %v4097 = vld [vmem:[#allocation3 + $0x314] sm:$0xf]
  %v4098 = vld [vmem:[#allocation3 + $0x318] sm:$0xff]
  %v4099 = vld [vmem:[#allocation3 + $0x320] sm:$0xff]
  %v4100 = vld [vmem:[#allocation3 + $0x328] sm:$0xff]
  %v4101 = vld [vmem:[#allocation3 + $0x330] sm:$0xff]
  %v4102 = vld [vmem:[#allocation3 + $0x338] sm:$0xf]
  %v4103 = vld [vmem:[#allocation3 + $0x33c] sm:$0xff]
  %v4104 = vld [vmem:[#allocation3 + $0x344] sm:$0xff]
  %v4105 = vld [vmem:[#allocation3 + $0x34c] sm:$0xff]
  %v4106 = vld [vmem:[#allocation3 + $0x354] sm:$0xff]
  %v4107 = vld [vmem:[#allocation3 + $0x35c] sm:$0xf]
  %v4108 = vld [vmem:[#allocation3 + $0x360] sm:$0xff]
  %v4109 = vld [vmem:[#allocation3 + $0x368] sm:$0xff]
  %v4110 = vld [vmem:[#allocation3 + $0x370] sm:$0xff]
  %v4111 = vld [vmem:[#allocation3 + $0x378] sm:$0xff]
  %v4112 = vld [vmem:[#allocation3 + $0x380] sm:$0xf]
  %v4113 = vld [vmem:[%s3] sm:$0xf]
  %v4114 = vld [vmem:[%s3 + $0x4] sm:$0xf]
  %v4115 = vld [vmem:[%s3 + $0x8] sm:$0xf]
  %v4116 = vld [vmem:[%s3 + $0xc] sm:$0xf]
  %v4117 = vld [vmem:[%s3 + $0x10] sm:$0xf]
  %v4118 = vld [vmem:[%s3 + $0x14] sm:$0xf]
  %v4119 = vld [vmem:[%s3 + $0x18] sm:$0xf]
  %v4120 = vld [vmem:[%s3 + $0x1c] sm:$0xf]
  %v4121 = vld [vmem:[%s3 + $0x20] sm:$0xf]
  %v4122 = vld [vmem:[%s3 + $0x24] sm:$0xf]
  %v4123 = vld [vmem:[%s3 + $0x28] sm:$0xf]
  %v4124 = vld [vmem:[%s3 + $0x2c] sm:$0xf]
  %v4125 = vld [vmem:[%s3 + $0x30] sm:$0xf]
  %v4126 = vld [vmem:[%s3 + $0x34] sm:$0xf]
  %v4127 = vld [vmem:[%s3 + $0x38] sm:$0xf]
  %v4128 = vld [vmem:[%s3 + $0x3c] sm:$0xf]
  %v4129 = vld [vmem:[%s3 + $0x40] sm:$0xf]
  %v4130 = vld [vmem:[%s3 + $0x44] sm:$0xf]
  %v4131 = vld [vmem:[%s3 + $0x48] sm:$0xf]
  %v4132 = vld [vmem:[%s3 + $0x4c] sm:$0xf]
  %v4133 = vld [vmem:[%s3 + $0x50] sm:$0xf]
  %v4134 = vld [vmem:[%s3 + $0x54] sm:$0xf]
  %v4135 = vld [vmem:[%s3 + $0x58] sm:$0xf]
  %v4136 = vld [vmem:[%s3 + $0x5c] sm:$0xf]
  %v4137 = vld [vmem:[%s3 + $0x60] sm:$0xf]
  %v4138 = vld [vmem:[%s3 + $0x64] sm:$0xf]
  %v4139 = vld [vmem:[%s3 + $0x68] sm:$0xf]
  %v4140 = vld [vmem:[%s3 + $0x6c] sm:$0xf]
  %v4141 = vld [vmem:[%s3 + $0x70] sm:$0xf]
  %v4142 = vld [vmem:[%s3 + $0x74] sm:$0xf]
  %v4143 = vld [vmem:[%s3 + $0x78] sm:$0xf]
  %v4144 = vld [vmem:[%s3 + $0x7c] sm:$0xf]
  %v4145 = vld [vmem:[%s3 + $0x80] sm:$0xf]
  %v4146 = vld [vmem:[%s3 + $0x84] sm:$0xf]
  %v4147 = vld [vmem:[%s3 + $0x88] sm:$0xf]
  %v4148 = vld [vmem:[%s3 + $0x8c] sm:$0xf]
  %v4149 = vld [vmem:[%s3 + $0x90] sm:$0xf]
  %v4150 = vld [vmem:[%s3 + $0x94] sm:$0xf]
  %v4151 = vld [vmem:[%s3 + $0x98] sm:$0xf]
  %v4152 = vld [vmem:[%s3 + $0x9c] sm:$0xf]
  %v4153 = vld [vmem:[%s3 + $0xa0] sm:$0xf]
  %v4154 = vld [vmem:[%s3 + $0xa4] sm:$0xf]
  %v4155 = vld [vmem:[%s3 + $0xa8] sm:$0xf]
  %v4156 = vld [vmem:[%s3 + $0xac] sm:$0xf]
  %v4157 = vld [vmem:[%s3 + $0xb0] sm:$0xf]
  %v4158 = vld [vmem:[%s3 + $0xb4] sm:$0xf]
  %v4159 = vld [vmem:[%s3 + $0xb8] sm:$0xf]
  %v4160 = vld [vmem:[%s3 + $0xbc] sm:$0xf]
  %v4161 = vld [vmem:[%s3 + $0xc0] sm:$0xf]
  %v4162 = vld [vmem:[%s3 + $0xc4] sm:$0xf]
  %v4163 = vld [vmem:[%s3 + $0xc8] sm:$0xf]
  %v4164 = vld [vmem:[%s3 + $0xcc] sm:$0xf]
  %v4165 = vld [vmem:[%s3 + $0xd0] sm:$0xf]
  %v4166 = vld [vmem:[%s3 + $0xd4] sm:$0xf]
  %v4167 = vld [vmem:[%s3 + $0xd8] sm:$0xf]
  %v4168 = vld [vmem:[%s3 + $0xdc] sm:$0xf]
  %v4169 = vld [vmem:[%s3 + $0xe0] sm:$0xf]
  %v4170 = vld [vmem:[%s3 + $0xe4] sm:$0xf]
  %v4171 = vld [vmem:[%s3 + $0xe8] sm:$0xf]
  %v4172 = vld [vmem:[%s3 + $0xec] sm:$0xf]
  %v4173 = vld [vmem:[%s3 + $0xf0] sm:$0xf]
  %v4174 = vld [vmem:[%s3 + $0xf4] sm:$0xf]
  %v4175 = vld [vmem:[%s3 + $0xf8] sm:$0xf]
  %v4176 = vld [vmem:[%s3 + $0xfc] sm:$0xf]
  %v4177 = vld [vmem:[%s3 + $0x100] sm:$0xf]
  %v4178 = vld [vmem:[%s3 + $0x104] sm:$0xf]
  %v4179 = vld [vmem:[%s3 + $0x108] sm:$0xf]
  %v4180 = vld [vmem:[%s3 + $0x10c] sm:$0xf]
  %v4181 = vld [vmem:[%s3 + $0x110] sm:$0xf]
  %v4182 = vld [vmem:[%s3 + $0x114] sm:$0xf]
  %v4183 = vld [vmem:[%s3 + $0x118] sm:$0xf]
  %v4184 = vld [vmem:[%s3 + $0x11c] sm:$0xf]
  %v4185 = vld [vmem:[%s3 + $0x120] sm:$0xf]
  %v4186 = vld [vmem:[%s3 + $0x124] sm:$0xf]
  %v4187 = vld [vmem:[%s3 + $0x128] sm:$0xf]
  %v4188 = vld [vmem:[%s3 + $0x12c] sm:$0xf]
  %v4189 = vld [vmem:[%s3 + $0x130] sm:$0xf]
  %v4190 = vld [vmem:[%s3 + $0x134] sm:$0xf]
  %v4191 = vld [vmem:[%s3 + $0x138] sm:$0xf]
  %v4192 = vld [vmem:[%s3 + $0x13c] sm:$0xf]
  %v4193 = vld [vmem:[%s3 + $0x140] sm:$0xf]
  %v4194 = vld [vmem:[%s3 + $0x144] sm:$0xf]
  %v4195 = vld [vmem:[%s3 + $0x148] sm:$0xf]
  %v4196 = vld [vmem:[%s3 + $0x14c] sm:$0xf]
  %v4197 = vld [vmem:[%s3 + $0x150] sm:$0xf]
  %v4198 = vld [vmem:[%s3 + $0x154] sm:$0xf]
  %v4199 = vld [vmem:[%s3 + $0x158] sm:$0xf]
  %v4200 = vld [vmem:[%s3 + $0x15c] sm:$0xf]
  %v4201 = vld [vmem:[%s3 + $0x160] sm:$0xf]
  %v4202 = vld [vmem:[%s3 + $0x164] sm:$0xf]
  %v4203 = vld [vmem:[%s3 + $0x168] sm:$0xf]
  %v4204 = vld [vmem:[%s3 + $0x16c] sm:$0xf]
  %v4205 = vld [vmem:[%s3 + $0x170] sm:$0xf]
  %v4206 = vld [vmem:[%s3 + $0x174] sm:$0xf]
  %v4207 = vld [vmem:[%s3 + $0x178] sm:$0xf]
  %v4208 = vld [vmem:[%s3 + $0x17c] sm:$0xf]
  %v4209 = vld [vmem:[%s3 + $0x180] sm:$0xf]
  %v4210 = vld [vmem:[%s3 + $0x184] sm:$0xf]
  %v4211 = vld [vmem:[%s3 + $0x188] sm:$0xf]
  %v4212 = vld [vmem:[%s3 + $0x18c] sm:$0xf]
  %v4213 = vld [vmem:[%s3 + $0x190] sm:$0xf]
  %v4214 = vld [vmem:[%s3 + $0x194] sm:$0xf]
  %v4215 = vld [vmem:[%s3 + $0x198] sm:$0xf]
  %v4216 = vld [vmem:[%s3 + $0x19c] sm:$0xf]
  %v4217 = vld [vmem:[%s3 + $0x1a0] sm:$0xf]
  %v4218 = vld [vmem:[%s3 + $0x1a4] sm:$0xf]
  %v4219 = vld [vmem:[%s3 + $0x1a8] sm:$0xf]
  %v4220 = vld [vmem:[%s3 + $0x1ac] sm:$0xf]
  %v4221 = vld [vmem:[%s3 + $0x1b0] sm:$0xf]
  %v4222 = vld [vmem:[%s3 + $0x1b4] sm:$0xf]
  %v4223 = vld [vmem:[%s3 + $0x1b8] sm:$0xf]
  %v4224 = vld [vmem:[%s3 + $0x1bc] sm:$0xf]
  %v4225 = vld [vmem:[%s3 + $0x1c0] sm:$0xf]
  %v4226 = vld [vmem:[%s3 + $0x1c4] sm:$0xf]
  %v4227 = vld [vmem:[%s3 + $0x1c8] sm:$0xf]
  %v4228 = vld [vmem:[%s3 + $0x1cc] sm:$0xf]
  %v4229 = vld [vmem:[%s3 + $0x1d0] sm:$0xf]
  %v4230 = vld [vmem:[%s3 + $0x1d4] sm:$0xf]
  %v4231 = vld [vmem:[%s3 + $0x1d8] sm:$0xf]
  %v4232 = vld [vmem:[%s3 + $0x1dc] sm:$0xf]
  %v4233 = vld [vmem:[%s3 + $0x1e0] sm:$0xf]
  %v4234 = vld [vmem:[%s3 + $0x1e4] sm:$0xf]
  %v4235 = vld [vmem:[%s3 + $0x1e8] sm:$0xf]
  %v4236 = vld [vmem:[%s3 + $0x1ec] sm:$0xf]
  %v4237 = vld [vmem:[%s3 + $0x1f0] sm:$0xf]
  %v4238 = vld [vmem:[%s3 + $0x1f4] sm:$0xf]
  %v4239 = vld [vmem:[%s3 + $0x1f8] sm:$0xf]
  %v4240 = vld [vmem:[%s3 + $0x1fc] sm:$0xf]
  %v4241 = vld [vmem:[%s3 + $0x200] sm:$0xf]
  %v4242 = vld [vmem:[%s3 + $0x204] sm:$0xf]
  %v4243 = vld [vmem:[%s3 + $0x208] sm:$0xf]
  %v4244 = vld [vmem:[%s3 + $0x20c] sm:$0xf]
  %v4245 = vld [vmem:[%s3 + $0x210] sm:$0xf]
  %v4246 = vld [vmem:[%s3 + $0x214] sm:$0xf]
  %v4247 = vld [vmem:[%s3 + $0x218] sm:$0xf]
  %v4248 = vld [vmem:[%s3 + $0x21c] sm:$0xf]
  %v4249 = vld [vmem:[%s3 + $0x220] sm:$0xf]
  %v4250 = vld [vmem:[%s3 + $0x224] sm:$0xf]
  %v4251 = vld [vmem:[%s3 + $0x228] sm:$0xf]
  %v4252 = vld [vmem:[%s3 + $0x22c] sm:$0xf]
  %v4253 = vld [vmem:[%s3 + $0x230] sm:$0xf]
  %v4254 = vld [vmem:[%s3 + $0x234] sm:$0xf]
  %v4255 = vld [vmem:[%s3 + $0x238] sm:$0xf]
  %v4256 = vld [vmem:[%s3 + $0x23c] sm:$0xf]
  %v4257 = vld [vmem:[%s5 + $0x1] sm:$0x1]
  %v4258 = vlaneseq
  %v4259 = vshrl.u32 %v4258, 7
  %v4260 = vsub.s32 0, %v4259
  %v4261 = vrot.slane %v4257, %v4260
  %v4387 = vunpack.c.l.b16 %v3988
  %v4388 = vunpack.c.h.b16 %v3988
  %v4389 = vunpack.c.l.b16 %v3989
  %v4390 = vunpack.c.h.b16 %v3989
  %v4391 = vunpack.c.l.b16 %v3990
  %v4392 = vunpack.c.h.b16 %v3990
  %v4393 = vunpack.c.l.b16 %v3991
  %v4394 = vunpack.c.h.b16 %v3991
  %v4395 = vunpack.c.l.b16 %v3992
  %v4396 = vunpack.c.l.b16 %v3993
  %v4397 = vunpack.c.h.b16 %v3993
  %v4398 = vunpack.c.l.b16 %v3994
  %v4399 = vunpack.c.h.b16 %v3994
  %v4400 = vunpack.c.l.b16 %v3995
  %v4401 = vunpack.c.h.b16 %v3995
  %v4402 = vunpack.c.l.b16 %v3996
  %v4403 = vunpack.c.h.b16 %v3996
  %v4404 = vunpack.c.l.b16 %v3997
  %v4405 = vunpack.c.l.b16 %v3998
  %v4406 = vunpack.c.h.b16 %v3998
  %v4407 = vunpack.c.l.b16 %v3999
  %v4408 = vunpack.c.h.b16 %v3999
  %v4409 = vunpack.c.l.b16 %v4000
  %v4410 = vunpack.c.h.b16 %v4000
  %v4411 = vunpack.c.l.b16 %v4001
  %v4412 = vunpack.c.h.b16 %v4001
  %v4413 = vunpack.c.l.b16 %v4002
  %v4414 = vunpack.c.l.b16 %v4003
  %v4415 = vunpack.c.h.b16 %v4003
  %v4416 = vunpack.c.l.b16 %v4004
  %v4417 = vunpack.c.h.b16 %v4004
  %v4418 = vunpack.c.l.b16 %v4005
  %v4419 = vunpack.c.h.b16 %v4005
  %v4420 = vunpack.c.l.b16 %v4006
  %v4421 = vunpack.c.h.b16 %v4006
  %v4422 = vunpack.c.l.b16 %v4007
  %v4423 = vunpack.c.l.b16 %v4008
  %v4424 = vunpack.c.h.b16 %v4008
  %v4425 = vunpack.c.l.b16 %v4009
  %v4426 = vunpack.c.h.b16 %v4009
  %v4427 = vunpack.c.l.b16 %v4010
  %v4428 = vunpack.c.h.b16 %v4010
  %v4429 = vunpack.c.l.b16 %v4011
  %v4430 = vunpack.c.h.b16 %v4011
  %v4431 = vunpack.c.l.b16 %v4012
  %v4432 = vunpack.c.l.b16 %v4013
  %v4433 = vunpack.c.h.b16 %v4013
  %v4434 = vunpack.c.l.b16 %v4014
  %v4435 = vunpack.c.h.b16 %v4014
  %v4436 = vunpack.c.l.b16 %v4015
  %v4437 = vunpack.c.h.b16 %v4015
  %v4438 = vunpack.c.l.b16 %v4016
  %v4439 = vunpack.c.h.b16 %v4016
  %v4440 = vunpack.c.l.b16 %v4017
  %v4441 = vunpack.c.l.b16 %v4018
  %v4442 = vunpack.c.h.b16 %v4018
  %v4443 = vunpack.c.l.b16 %v4019
  %v4444 = vunpack.c.h.b16 %v4019
  %v4445 = vunpack.c.l.b16 %v4020
  %v4446 = vunpack.c.h.b16 %v4020
  %v4447 = vunpack.c.l.b16 %v4021
  %v4448 = vunpack.c.h.b16 %v4021
  %v4449 = vunpack.c.l.b16 %v4022
  %v4450 = vunpack.c.l.b16 %v4023
  %v4451 = vunpack.c.h.b16 %v4023
  %v4452 = vunpack.c.l.b16 %v4024
  %v4453 = vunpack.c.h.b16 %v4024
  %v4454 = vunpack.c.l.b16 %v4025
  %v4455 = vunpack.c.h.b16 %v4025
  %v4456 = vunpack.c.l.b16 %v4026
  %v4457 = vunpack.c.h.b16 %v4026
  %v4458 = vunpack.c.l.b16 %v4027
  %v4459 = vunpack.c.l.b16 %v4028
  %v4460 = vunpack.c.h.b16 %v4028
  %v4461 = vunpack.c.l.b16 %v4029
  %v4462 = vunpack.c.h.b16 %v4029
  %v4463 = vunpack.c.l.b16 %v4030
  %v4464 = vunpack.c.h.b16 %v4030
  %v4465 = vunpack.c.l.b16 %v4031
  %v4466 = vunpack.c.h.b16 %v4031
  %v4467 = vunpack.c.l.b16 %v4032
  %v4468 = vunpack.c.l.b16 %v4033
  %v4469 = vunpack.c.h.b16 %v4033
  %v4470 = vunpack.c.l.b16 %v4034
  %v4471 = vunpack.c.h.b16 %v4034
  %v4472 = vunpack.c.l.b16 %v4035
  %v4473 = vunpack.c.h.b16 %v4035
  %v4474 = vunpack.c.l.b16 %v4036
  %v4475 = vunpack.c.h.b16 %v4036
  %v4476 = vunpack.c.l.b16 %v4037
  %v4477 = vunpack.c.l.b16 %v4038
  %v4478 = vunpack.c.h.b16 %v4038
  %v4479 = vunpack.c.l.b16 %v4039
  %v4480 = vunpack.c.h.b16 %v4039
  %v4481 = vunpack.c.l.b16 %v4040
  %v4482 = vunpack.c.h.b16 %v4040
  %v4483 = vunpack.c.l.b16 %v4041
  %v4484 = vunpack.c.h.b16 %v4041
  %v4485 = vunpack.c.l.b16 %v4042
  %v4486 = vunpack.c.l.b16 %v4043
  %v4487 = vunpack.c.h.b16 %v4043
  %v4488 = vunpack.c.l.b16 %v4044
  %v4489 = vunpack.c.h.b16 %v4044
  %v4490 = vunpack.c.l.b16 %v4045
  %v4491 = vunpack.c.h.b16 %v4045
  %v4492 = vunpack.c.l.b16 %v4046
  %v4493 = vunpack.c.h.b16 %v4046
  %v4494 = vunpack.c.l.b16 %v4047
  %v4495 = vunpack.c.l.b16 %v4048
  %v4496 = vunpack.c.h.b16 %v4048
  %v4497 = vunpack.c.l.b16 %v4049
  %v4498 = vunpack.c.h.b16 %v4049
  %v4499 = vunpack.c.l.b16 %v4050
  %v4500 = vunpack.c.h.b16 %v4050
  %v4501 = vunpack.c.l.b16 %v4051
  %v4502 = vunpack.c.h.b16 %v4051
  %v4503 = vunpack.c.l.b16 %v4052
  %v4504 = vunpack.c.l.b16 %v4053
  %v4505 = vunpack.c.h.b16 %v4053
  %v4506 = vunpack.c.l.b16 %v4054
  %v4507 = vunpack.c.h.b16 %v4054
  %v4508 = vunpack.c.l.b16 %v4055
  %v4509 = vunpack.c.h.b16 %v4055
  %v4510 = vunpack.c.l.b16 %v4056
  %v4511 = vunpack.c.h.b16 %v4056
  %v4512 = vunpack.c.l.b16 %v4057
  %v4513 = vunpack.c.l.b16 %v4058
  %v4514 = vunpack.c.h.b16 %v4058
  %v4515 = vunpack.c.l.b16 %v4059
  %v4516 = vunpack.c.h.b16 %v4059
  %v4517 = vunpack.c.l.b16 %v4060
  %v4518 = vunpack.c.h.b16 %v4060
  %v4519 = vunpack.c.l.b16 %v4061
  %v4520 = vunpack.c.h.b16 %v4061
  %v4521 = vunpack.c.l.b16 %v4062
  %v4522 = vunpack.c.l.b16 %v4063
  %v4523 = vunpack.c.h.b16 %v4063
  %v4524 = vunpack.c.l.b16 %v4064
  %v4525 = vunpack.c.h.b16 %v4064
  %v4526 = vunpack.c.l.b16 %v4065
  %v4527 = vunpack.c.h.b16 %v4065
  %v4528 = vunpack.c.l.b16 %v4066
  %v4529 = vunpack.c.h.b16 %v4066
  %v4530 = vunpack.c.l.b16 %v4067
  %v4531 = vunpack.c.l.b16 %v4068
  %v4532 = vunpack.c.h.b16 %v4068
  %v4533 = vunpack.c.l.b16 %v4069
  %v4534 = vunpack.c.h.b16 %v4069
  %v4535 = vunpack.c.l.b16 %v4070
  %v4536 = vunpack.c.h.b16 %v4070
  %v4537 = vunpack.c.l.b16 %v4071
  %v4538 = vunpack.c.h.b16 %v4071
  %v4539 = vunpack.c.l.b16 %v4072
  %v4540 = vunpack.c.l.b16 %v4073
  %v4541 = vunpack.c.h.b16 %v4073
  %v4542 = vunpack.c.l.b16 %v4074
  %v4543 = vunpack.c.h.b16 %v4074
  %v4544 = vunpack.c.l.b16 %v4075
  %v4545 = vunpack.c.h.b16 %v4075
  %v4546 = vunpack.c.l.b16 %v4076
  %v4547 = vunpack.c.h.b16 %v4076
  %v4548 = vunpack.c.l.b16 %v4077
  %v4549 = vunpack.c.l.b16 %v4078
  %v4550 = vunpack.c.h.b16 %v4078
  %v4551 = vunpack.c.l.b16 %v4079
  %v4552 = vunpack.c.h.b16 %v4079
  %v4553 = vunpack.c.l.b16 %v4080
  %v4554 = vunpack.c.h.b16 %v4080
  %v4555 = vunpack.c.l.b16 %v4081
  %v4556 = vunpack.c.h.b16 %v4081
  %v4557 = vunpack.c.l.b16 %v4082
  %v4558 = vunpack.c.l.b16 %v4083
  %v4559 = vunpack.c.h.b16 %v4083
  %v4560 = vunpack.c.l.b16 %v4084
  %v4561 = vunpack.c.h.b16 %v4084
  %v4562 = vunpack.c.l.b16 %v4085
  %v4563 = vunpack.c.h.b16 %v4085
  %v4564 = vunpack.c.l.b16 %v4086
  %v4565 = vunpack.c.h.b16 %v4086
  %v4566 = vunpack.c.l.b16 %v4087
  %v4567 = vunpack.c.l.b16 %v4088
  %v4568 = vunpack.c.h.b16 %v4088
  %v4569 = vunpack.c.l.b16 %v4089
  %v4570 = vunpack.c.h.b16 %v4089
  %v4571 = vunpack.c.l.b16 %v4090
  %v4572 = vunpack.c.h.b16 %v4090
  %v4573 = vunpack.c.l.b16 %v4091
  %v4574 = vunpack.c.h.b16 %v4091
  %v4575 = vunpack.c.l.b16 %v4092
  %v4576 = vunpack.c.l.b16 %v4093
  %v4577 = vunpack.c.h.b16 %v4093
  %v4578 = vunpack.c.l.b16 %v4094
  %v4579 = vunpack.c.h.b16 %v4094
  %v4580 = vunpack.c.l.b16 %v4095
  %v4581 = vunpack.c.h.b16 %v4095
  %v4582 = vunpack.c.l.b16 %v4096
  %v4583 = vunpack.c.h.b16 %v4096
  %v4584 = vunpack.c.l.b16 %v4097
  %v4585 = vunpack.c.l.b16 %v4098
  %v4586 = vunpack.c.h.b16 %v4098
  %v4587 = vunpack.c.l.b16 %v4099
  %v4588 = vunpack.c.h.b16 %v4099
  %v4589 = vunpack.c.l.b16 %v4100
  %v4590 = vunpack.c.h.b16 %v4100
  %v4591 = vunpack.c.l.b16 %v4101
  %v4592 = vunpack.c.h.b16 %v4101
  %v4593 = vunpack.c.l.b16 %v4102
  %v4594 = vunpack.c.l.b16 %v4103
  %v4595 = vunpack.c.h.b16 %v4103
  %v4596 = vunpack.c.l.b16 %v4104
  %v4597 = vunpack.c.h.b16 %v4104
  %v4598 = vunpack.c.l.b16 %v4105
  %v4599 = vunpack.c.h.b16 %v4105
  %v4600 = vunpack.c.l.b16 %v4106
  %v4601 = vunpack.c.h.b16 %v4106
  %v4602 = vunpack.c.l.b16 %v4107
  %v4603 = vunpack.c.l.b16 %v4108
  %v4604 = vunpack.c.h.b16 %v4108
  %v4605 = vunpack.c.l.b16 %v4109
  %v4606 = vunpack.c.h.b16 %v4109
  %v4607 = vunpack.c.l.b16 %v4110
  %v4608 = vunpack.c.h.b16 %v4110
  %v4609 = vunpack.c.l.b16 %v4111
  %v4610 = vunpack.c.h.b16 %v4111
  %v4611 = vunpack.c.l.b16 %v4112
  %v4612 = vpack.c.b16 %v4396, %v4387
  %v4613 = vpack.c.b16 %v4397, %v4388
  %v4614 = vpack.c.b16 %v4398, %v4389
  %v4615 = vpack.c.b16 %v4399, %v4390
  %v4616 = vpack.c.b16 %v4400, %v4391
  %v4617 = vpack.c.b16 %v4401, %v4392
  %v4618 = vpack.c.b16 %v4402, %v4393
  %v4619 = vpack.c.b16 %v4403, %v4394
  %v4620 = vpack.c.b16 %v4404, %v4395
  %v4621 = vpack.c.b16 %v4414, %v4405
  %v4622 = vpack.c.b16 %v4415, %v4406
  %v4623 = vpack.c.b16 %v4416, %v4407
  %v4624 = vpack.c.b16 %v4417, %v4408
  %v4625 = vpack.c.b16 %v4418, %v4409
  %v4626 = vpack.c.b16 %v4419, %v4410
  %v4627 = vpack.c.b16 %v4420, %v4411
  %v4628 = vpack.c.b16 %v4421, %v4412
  %v4629 = vpack.c.b16 %v4422, %v4413
  %v4630 = vpack.c.b16 %v4432, %v4423
  %v4631 = vpack.c.b16 %v4433, %v4424
  %v4632 = vpack.c.b16 %v4434, %v4425
  %v4633 = vpack.c.b16 %v4435, %v4426
  %v4634 = vpack.c.b16 %v4436, %v4427
  %v4635 = vpack.c.b16 %v4437, %v4428
  %v4636 = vpack.c.b16 %v4438, %v4429
  %v4637 = vpack.c.b16 %v4439, %v4430
  %v4638 = vpack.c.b16 %v4440, %v4431
  %v4639 = vpack.c.b16 %v4450, %v4441
  %v4640 = vpack.c.b16 %v4451, %v4442
  %v4641 = vpack.c.b16 %v4452, %v4443
  %v4642 = vpack.c.b16 %v4453, %v4444
  %v4643 = vpack.c.b16 %v4454, %v4445
  %v4644 = vpack.c.b16 %v4455, %v4446
  %v4645 = vpack.c.b16 %v4456, %v4447
  %v4646 = vpack.c.b16 %v4457, %v4448
  %v4647 = vpack.c.b16 %v4458, %v4449
  %v4648 = vpack.c.b16 %v4468, %v4459
  %v4649 = vpack.c.b16 %v4469, %v4460
  %v4650 = vpack.c.b16 %v4470, %v4461
  %v4651 = vpack.c.b16 %v4471, %v4462
  %v4652 = vpack.c.b16 %v4472, %v4463
  %v4653 = vpack.c.b16 %v4473, %v4464
  %v4654 = vpack.c.b16 %v4474, %v4465
  %v4655 = vpack.c.b16 %v4475, %v4466
  %v4656 = vpack.c.b16 %v4476, %v4467
  %v4657 = vpack.c.b16 %v4486, %v4477
  %v4658 = vpack.c.b16 %v4487, %v4478
  %v4659 = vpack.c.b16 %v4488, %v4479
  %v4660 = vpack.c.b16 %v4489, %v4480
  %v4661 = vpack.c.b16 %v4490, %v4481
  %v4662 = vpack.c.b16 %v4491, %v4482
  %v4663 = vpack.c.b16 %v4492, %v4483
  %v4664 = vpack.c.b16 %v4493, %v4484
  %v4665 = vpack.c.b16 %v4494, %v4485
  %v4666 = vpack.c.b16 %v4504, %v4495
  %v4667 = vpack.c.b16 %v4505, %v4496
  %v4668 = vpack.c.b16 %v4506, %v4497
  %v4669 = vpack.c.b16 %v4507, %v4498
  %v4670 = vpack.c.b16 %v4508, %v4499
  %v4671 = vpack.c.b16 %v4509, %v4500
  %v4672 = vpack.c.b16 %v4510, %v4501
  %v4673 = vpack.c.b16 %v4511, %v4502
  %v4674 = vpack.c.b16 %v4512, %v4503
  %v4675 = vpack.c.b16 %v4522, %v4513
  %v4676 = vpack.c.b16 %v4523, %v4514
  %v4677 = vpack.c.b16 %v4524, %v4515
  %v4678 = vpack.c.b16 %v4525, %v4516
  %v4679 = vpack.c.b16 %v4526, %v4517
  %v4680 = vpack.c.b16 %v4527, %v4518
  %v4681 = vpack.c.b16 %v4528, %v4519
  %v4682 = vpack.c.b16 %v4529, %v4520
  %v4683 = vpack.c.b16 %v4530, %v4521
  %v4684 = vpack.c.b16 %v4540, %v4531
  %v4685 = vpack.c.b16 %v4541, %v4532
  %v4686 = vpack.c.b16 %v4542, %v4533
  %v4687 = vpack.c.b16 %v4543, %v4534
  %v4688 = vpack.c.b16 %v4544, %v4535
  %v4689 = vpack.c.b16 %v4545, %v4536
  %v4690 = vpack.c.b16 %v4546, %v4537
  %v4691 = vpack.c.b16 %v4547, %v4538
  %v4692 = vpack.c.b16 %v4548, %v4539
  %v4693 = vpack.c.b16 %v4558, %v4549
  %v4694 = vpack.c.b16 %v4559, %v4550
  %v4695 = vpack.c.b16 %v4560, %v4551
  %v4696 = vpack.c.b16 %v4561, %v4552
  %v4697 = vpack.c.b16 %v4562, %v4553
  %v4698 = vpack.c.b16 %v4563, %v4554
  %v4699 = vpack.c.b16 %v4564, %v4555
  %v4700 = vpack.c.b16 %v4565, %v4556
  %v4701 = vpack.c.b16 %v4566, %v4557
  %v4702 = vpack.c.b16 %v4576, %v4567
  %v4703 = vpack.c.b16 %v4577, %v4568
  %v4704 = vpack.c.b16 %v4578, %v4569
  %v4705 = vpack.c.b16 %v4579, %v4570
  %v4706 = vpack.c.b16 %v4580, %v4571
  %v4707 = vpack.c.b16 %v4581, %v4572
  %v4708 = vpack.c.b16 %v4582, %v4573
  %v4709 = vpack.c.b16 %v4583, %v4574
  %v4710 = vpack.c.b16 %v4584, %v4575
  %v4711 = vpack.c.b16 %v4594, %v4585
  %v4712 = vpack.c.b16 %v4595, %v4586
  %v4713 = vpack.c.b16 %v4596, %v4587
  %v4714 = vpack.c.b16 %v4597, %v4588
  %v4715 = vpack.c.b16 %v4598, %v4589
  %v4716 = vpack.c.b16 %v4599, %v4590
  %v4717 = vpack.c.b16 %v4600, %v4591
  %v4718 = vpack.c.b16 %v4601, %v4592
  %v4719 = vpack.c.b16 %v4602, %v4593
  %v4720 = vpack.c.b16 %v4603, %v4603
  %v4721 = vpack.c.b16 %v4604, %v4604
  %v4722 = vpack.c.b16 %v4605, %v4605
  %v4723 = vpack.c.b16 %v4606, %v4606
  %v4724 = vpack.c.b16 %v4607, %v4607
  %v4725 = vpack.c.b16 %v4608, %v4608
  %v4726 = vpack.c.b16 %v4609, %v4609
  %v4727 = vpack.c.b16 %v4610, %v4610
  %v4728 = vpack.c.b16 %v4611, %v4611
  %v4990 = vunpack.c.l.b16 %v4113
  %v4991 = vunpack.c.l.b16 %v4114
  %v4992 = vunpack.c.l.b16 %v4115
  %v4993 = vunpack.c.l.b16 %v4116
  %v4994 = vunpack.c.l.b16 %v4117
  %v4995 = vunpack.c.l.b16 %v4118
  %v4996 = vunpack.c.l.b16 %v4119
  %v4997 = vunpack.c.l.b16 %v4120
  %v4998 = vunpack.c.l.b16 %v4121
  %v4999 = vunpack.c.l.b16 %v4122
  %v5000 = vunpack.c.l.b16 %v4123
  %v5001 = vunpack.c.l.b16 %v4124
  %v5002 = vunpack.c.l.b16 %v4125
  %v5003 = vunpack.c.l.b16 %v4126
  %v5004 = vunpack.c.l.b16 %v4127
  %v5005 = vunpack.c.l.b16 %v4128
  %v5006 = vunpack.c.l.b16 %v4129
  %v5007 = vunpack.c.l.b16 %v4130
  %v5008 = vunpack.c.l.b16 %v4131
  %v5009 = vunpack.c.l.b16 %v4132
  %v5010 = vunpack.c.l.b16 %v4133
  %v5011 = vunpack.c.l.b16 %v4134
  %v5012 = vunpack.c.l.b16 %v4135
  %v5013 = vunpack.c.l.b16 %v4136
  %v5014 = vunpack.c.l.b16 %v4137
  %v5015 = vunpack.c.l.b16 %v4138
  %v5016 = vunpack.c.l.b16 %v4139
  %v5017 = vunpack.c.l.b16 %v4140
  %v5018 = vunpack.c.l.b16 %v4141
  %v5019 = vunpack.c.l.b16 %v4142
  %v5020 = vunpack.c.l.b16 %v4143
  %v5021 = vunpack.c.l.b16 %v4144
  %v5022 = vunpack.c.l.b16 %v4145
  %v5023 = vunpack.c.l.b16 %v4146
  %v5024 = vunpack.c.l.b16 %v4147
  %v5025 = vunpack.c.l.b16 %v4148
  %v5026 = vunpack.c.l.b16 %v4149
  %v5027 = vunpack.c.l.b16 %v4150
  %v5028 = vunpack.c.l.b16 %v4151
  %v5029 = vunpack.c.l.b16 %v4152
  %v5030 = vunpack.c.l.b16 %v4153
  %v5031 = vunpack.c.l.b16 %v4154
  %v5032 = vunpack.c.l.b16 %v4155
  %v5033 = vunpack.c.l.b16 %v4156
  %v5034 = vunpack.c.l.b16 %v4157
  %v5035 = vunpack.c.l.b16 %v4158
  %v5036 = vunpack.c.l.b16 %v4159
  %v5037 = vunpack.c.l.b16 %v4160
  %v5038 = vunpack.c.l.b16 %v4161
  %v5039 = vunpack.c.l.b16 %v4162
  %v5040 = vunpack.c.l.b16 %v4163
  %v5041 = vunpack.c.l.b16 %v4164
  %v5042 = vunpack.c.l.b16 %v4165
  %v5043 = vunpack.c.l.b16 %v4166
  %v5044 = vunpack.c.l.b16 %v4167
  %v5045 = vunpack.c.l.b16 %v4168
  %v5046 = vunpack.c.l.b16 %v4169
  %v5047 = vunpack.c.l.b16 %v4170
  %v5048 = vunpack.c.l.b16 %v4171
  %v5049 = vunpack.c.l.b16 %v4172
  %v5050 = vunpack.c.l.b16 %v4173
  %v5051 = vunpack.c.l.b16 %v4174
  %v5052 = vunpack.c.l.b16 %v4175
  %v5053 = vunpack.c.l.b16 %v4176
  %v5054 = vunpack.c.l.b16 %v4177
  %v5055 = vunpack.c.l.b16 %v4178
  %v5056 = vunpack.c.l.b16 %v4179
  %v5057 = vunpack.c.l.b16 %v4180
  %v5058 = vunpack.c.l.b16 %v4181
  %v5059 = vunpack.c.l.b16 %v4182
  %v5060 = vunpack.c.l.b16 %v4183
  %v5061 = vunpack.c.l.b16 %v4184
  %v5062 = vunpack.c.l.b16 %v4185
  %v5063 = vunpack.c.l.b16 %v4186
  %v5064 = vunpack.c.l.b16 %v4187
  %v5065 = vunpack.c.l.b16 %v4188
  %v5066 = vunpack.c.l.b16 %v4189
  %v5067 = vunpack.c.l.b16 %v4190
  %v5068 = vunpack.c.l.b16 %v4191
  %v5069 = vunpack.c.l.b16 %v4192
  %v5070 = vunpack.c.l.b16 %v4193
  %v5071 = vunpack.c.l.b16 %v4194
  %v5072 = vunpack.c.l.b16 %v4195
  %v5073 = vunpack.c.l.b16 %v4196
  %v5074 = vunpack.c.l.b16 %v4197
  %v5075 = vunpack.c.l.b16 %v4198
  %v5076 = vunpack.c.l.b16 %v4199
  %v5077 = vunpack.c.l.b16 %v4200
  %v5078 = vunpack.c.l.b16 %v4201
  %v5079 = vunpack.c.l.b16 %v4202
  %v5080 = vunpack.c.l.b16 %v4203
  %v5081 = vunpack.c.l.b16 %v4204
  %v5082 = vunpack.c.l.b16 %v4205
  %v5083 = vunpack.c.l.b16 %v4206
  %v5084 = vunpack.c.l.b16 %v4207
  %v5085 = vunpack.c.l.b16 %v4208
  %v5086 = vunpack.c.l.b16 %v4209
  %v5087 = vunpack.c.l.b16 %v4210
  %v5088 = vunpack.c.l.b16 %v4211
  %v5089 = vunpack.c.l.b16 %v4212
  %v5090 = vunpack.c.l.b16 %v4213
  %v5091 = vunpack.c.l.b16 %v4214
  %v5092 = vunpack.c.l.b16 %v4215
  %v5093 = vunpack.c.l.b16 %v4216
  %v5094 = vunpack.c.l.b16 %v4217
  %v5095 = vunpack.c.l.b16 %v4218
  %v5096 = vunpack.c.l.b16 %v4219
  %v5097 = vunpack.c.l.b16 %v4220
  %v5098 = vunpack.c.l.b16 %v4221
  %v5099 = vunpack.c.l.b16 %v4222
  %v5100 = vunpack.c.l.b16 %v4223
  %v5101 = vunpack.c.l.b16 %v4224
  %v5102 = vunpack.c.l.b16 %v4225
  %v5103 = vunpack.c.l.b16 %v4226
  %v5104 = vunpack.c.l.b16 %v4227
  %v5105 = vunpack.c.l.b16 %v4228
  %v5106 = vunpack.c.l.b16 %v4229
  %v5107 = vunpack.c.l.b16 %v4230
  %v5108 = vunpack.c.l.b16 %v4231
  %v5109 = vunpack.c.l.b16 %v4232
  %v5110 = vunpack.c.l.b16 %v4233
  %v5111 = vunpack.c.l.b16 %v4234
  %v5112 = vunpack.c.l.b16 %v4235
  %v5113 = vunpack.c.l.b16 %v4236
  %v5114 = vunpack.c.l.b16 %v4237
  %v5115 = vunpack.c.l.b16 %v4238
  %v5116 = vunpack.c.l.b16 %v4239
  %v5117 = vunpack.c.l.b16 %v4240
  %v5118 = vunpack.c.l.b16 %v4241
  %v5119 = vunpack.c.l.b16 %v4242
  %v5120 = vunpack.c.l.b16 %v4243
  %v5121 = vunpack.c.l.b16 %v4244
  %v5122 = vunpack.c.l.b16 %v4245
  %v5123 = vunpack.c.l.b16 %v4246
  %v5124 = vunpack.c.l.b16 %v4247
  %v5125 = vunpack.c.l.b16 %v4248
  %v5126 = vunpack.c.l.b16 %v4249
  %v5127 = vunpack.c.l.b16 %v4250
  %v5128 = vunpack.c.l.b16 %v4251
  %v5129 = vunpack.c.l.b16 %v4252
  %v5130 = vunpack.c.l.b16 %v4253
  %v5131 = vunpack.c.l.b16 %v4254
  %v5132 = vunpack.c.l.b16 %v4255
  %v5133 = vunpack.c.l.b16 %v4256
  %v5134 = vpack.c.b16 %v4991, %v4990
  %v5135 = vpack.c.b16 %v4993, %v4992
  %v5136 = vpack.c.b16 %v4995, %v4994
  %v5137 = vpack.c.b16 %v4997, %v4996
  %v5138 = vpack.c.b16 %v4999, %v4998
  %v5139 = vpack.c.b16 %v5001, %v5000
  %v5140 = vpack.c.b16 %v5003, %v5002
  %v5141 = vpack.c.b16 %v5005, %v5004
  %v5142 = vpack.c.b16 %v5007, %v5006
  %v5143 = vpack.c.b16 %v5009, %v5008
  %v5144 = vpack.c.b16 %v5011, %v5010
  %v5145 = vpack.c.b16 %v5013, %v5012
  %v5146 = vpack.c.b16 %v5015, %v5014
  %v5147 = vpack.c.b16 %v5017, %v5016
  %v5148 = vpack.c.b16 %v5019, %v5018
  %v5149 = vpack.c.b16 %v5021, %v5020
  %v5150 = vpack.c.b16 %v5023, %v5022
  %v5151 = vpack.c.b16 %v5025, %v5024
  %v5152 = vpack.c.b16 %v5027, %v5026
  %v5153 = vpack.c.b16 %v5029, %v5028
  %v5154 = vpack.c.b16 %v5031, %v5030
  %v5155 = vpack.c.b16 %v5033, %v5032
  %v5156 = vpack.c.b16 %v5035, %v5034
  %v5157 = vpack.c.b16 %v5037, %v5036
  %v5158 = vpack.c.b16 %v5039, %v5038
  %v5159 = vpack.c.b16 %v5041, %v5040
  %v5160 = vpack.c.b16 %v5043, %v5042
  %v5161 = vpack.c.b16 %v5045, %v5044
  %v5162 = vpack.c.b16 %v5047, %v5046
  %v5163 = vpack.c.b16 %v5049, %v5048
  %v5164 = vpack.c.b16 %v5051, %v5050
  %v5165 = vpack.c.b16 %v5053, %v5052
  %v5166 = vpack.c.b16 %v5055, %v5054
  %v5167 = vpack.c.b16 %v5057, %v5056
  %v5168 = vpack.c.b16 %v5059, %v5058
  %v5169 = vpack.c.b16 %v5061, %v5060
  %v5170 = vpack.c.b16 %v5063, %v5062
  %v5171 = vpack.c.b16 %v5065, %v5064
  %v5172 = vpack.c.b16 %v5067, %v5066
  %v5173 = vpack.c.b16 %v5069, %v5068
  %v5174 = vpack.c.b16 %v5071, %v5070
  %v5175 = vpack.c.b16 %v5073, %v5072
  %v5176 = vpack.c.b16 %v5075, %v5074
  %v5177 = vpack.c.b16 %v5077, %v5076
  %v5178 = vpack.c.b16 %v5079, %v5078
  %v5179 = vpack.c.b16 %v5081, %v5080
  %v5180 = vpack.c.b16 %v5083, %v5082
  %v5181 = vpack.c.b16 %v5085, %v5084
  %v5182 = vpack.c.b16 %v5087, %v5086
  %v5183 = vpack.c.b16 %v5089, %v5088
  %v5184 = vpack.c.b16 %v5091, %v5090
  %v5185 = vpack.c.b16 %v5093, %v5092
  %v5186 = vpack.c.b16 %v5095, %v5094
  %v5187 = vpack.c.b16 %v5097, %v5096
  %v5188 = vpack.c.b16 %v5099, %v5098
  %v5189 = vpack.c.b16 %v5101, %v5100
  %v5190 = vpack.c.b16 %v5103, %v5102
  %v5191 = vpack.c.b16 %v5105, %v5104
  %v5192 = vpack.c.b16 %v5107, %v5106
  %v5193 = vpack.c.b16 %v5109, %v5108
  %v5194 = vpack.c.b16 %v5111, %v5110
  %v5195 = vpack.c.b16 %v5113, %v5112
  %v5196 = vpack.c.b16 %v5115, %v5114
  %v5197 = vpack.c.b16 %v5117, %v5116
  %v5198 = vpack.c.b16 %v5119, %v5118
  %v5199 = vpack.c.b16 %v5121, %v5120
  %v5200 = vpack.c.b16 %v5123, %v5122
  %v5201 = vpack.c.b16 %v5125, %v5124
  %v5202 = vpack.c.b16 %v5127, %v5126
  %v5203 = vpack.c.b16 %v5129, %v5128
  %v5204 = vpack.c.b16 %v5131, %v5130
  %v5205 = vpack.c.b16 %v5133, %v5132
  %5278 = vmatprep.subr.bf16.mxu0 0
  %5279 = vmatpush1.bf16.msra.mxu0 %v5134
  %5280 = vmatprep.subr.bf16.mxu0 0
  %5281 = vmatpush1.bf16.msra.mxu0 %v5135
  %5282 = vmatprep.subr.bf16.mxu0 0
  %5283 = vmatpush1.bf16.msra.mxu0 %v5136
  %5284 = vmatprep.subr.bf16.mxu0 0
  %5285 = vmatpush1.bf16.msra.mxu0 %v5137
  %5286 = vmatprep.subr.bf16.mxu0 0
  %5287 = vmatpush1.bf16.msra.mxu0 %v5138
  %5288 = vmatprep.subr.bf16.mxu0 0
  %5289 = vmatpush1.bf16.msra.mxu0 %v5139
  %5290 = vmatprep.subr.bf16.mxu0 0
  %5291 = vmatpush1.bf16.msra.mxu0 %v5140
  %5292 = vmatprep.subr.bf16.mxu0 0
  %5293 = vmatpush1.bf16.msra.mxu0 %v5141
  %5294 = vmatprep.subr.bf16.mxu0 0
  %5295 = vmatpush1.bf16.msra.mxu0 %v5142
  %5296 = vmatprep.subr.bf16.mxu0 0
  %5297 = vmatpush1.bf16.msra.mxu0 %v5143
  %5298 = vmatprep.subr.bf16.mxu0 0
  %5299 = vmatpush1.bf16.msra.mxu0 %v5144
  %5300 = vmatprep.subr.bf16.mxu0 0
  %5301 = vmatpush1.bf16.msra.mxu0 %v5145
  %5302 = vmatprep.subr.bf16.mxu0 0
  %5303 = vmatpush1.bf16.msra.mxu0 %v5146
  %5304 = vmatprep.subr.bf16.mxu0 0
  %5305 = vmatpush1.bf16.msra.mxu0 %v5147
  %5306 = vmatprep.subr.bf16.mxu0 0
  %5307 = vmatpush1.bf16.msra.mxu0 %v5148
  %5308 = vmatprep.subr.bf16.mxu0 0
  %5309 = vmatpush1.bf16.msra.mxu0 %v5149
  %5310 = vmatprep.mubr.bf16.mxu0 %v4613
  %5311 = vmatmul.mubr.bf16.gmra.mrb[0].mxu0 %v4612
  %v5312 = vpop.f32.mrb[0].mxu0
  %v5313 = vadd.f32 %v4261, %v5312
  %v5314 = vpop.f32.mrb[0].mxu0
  %v5315 = vpop.f32.mrb[0].mxu0
  %v5316 = vadd.f32 %v4261, %v5315
  %v5317 = vpop.f32.mrb[0].mxu0
  %5318 = vmatprep.mubr.bf16.mxu0 %v4622
  %5319 = vmatmul.mubr.bf16.gmra.mrb[0].mxu0 %v4621
  %v5320 = vpop.f32.mrb[0].mxu0
  %v5321 = vadd.f32 %v4261, %v5320
  %v5322 = vpop.f32.mrb[0].mxu0
  %v5323 = vpop.f32.mrb[0].mxu0
  %v5324 = vadd.f32 %v4261, %v5323
  %v5325 = vpop.f32.mrb[0].mxu0
  %5326 = vmatprep.mubr.bf16.mxu0 %v4631
  %5327 = vmatmul.mubr.bf16.gmra.mrb[0].mxu0 %v4630
  %v5328 = vpop.f32.mrb[0].mxu0
  %v5329 = vadd.f32 %v4261, %v5328
  %v5330 = vpop.f32.mrb[0].mxu0
  %v5331 = vpop.f32.mrb[0].mxu0
  %v5332 = vadd.f32 %v4261, %v5331
  %v5333 = vpop.f32.mrb[0].mxu0
  %5334 = vmatprep.mubr.bf16.mxu0 %v4640
  %5335 = vmatmul.mubr.bf16.gmra.mrb[0].mxu0 %v4639
  %v5336 = vpop.f32.mrb[0].mxu0
  %v5337 = vadd.f32 %v4261, %v5336
  %v5338 = vpop.f32.mrb[0].mxu0
  %v5339 = vpop.f32.mrb[0].mxu0
  %v5340 = vadd.f32 %v4261, %v5339
  %v5341 = vpop.f32.mrb[0].mxu0
  %5342 = vmatprep.mubr.bf16.mxu0 %v4649
  %5343 = vmatmul.mubr.bf16.gmra.mrb[0].mxu0 %v4648
  %v5344 = vpop.f32.mrb[0].mxu0
  %v5345 = vadd.f32 %v4261, %v5344
  %v5346 = vpop.f32.mrb[0].mxu0
  %v5347 = vpop.f32.mrb[0].mxu0
  %v5348 = vadd.f32 %v4261, %v5347
  %v5349 = vpop.f32.mrb[0].mxu0
  %5350 = vmatprep.mubr.bf16.mxu0 %v4658
  %5351 = vmatmul.mubr.bf16.gmra.mrb[0].mxu0 %v4657
  %v5352 = vpop.f32.mrb[0].mxu0
  %v5353 = vadd.f32 %v4261, %v5352
  %v5354 = vpop.f32.mrb[0].mxu0
  %v5355 = vpop.f32.mrb[0].mxu0
  %v5356 = vadd.f32 %v4261, %v5355
  %v5357 = vpop.f32.mrb[0].mxu0
  %5358 = vmatprep.mubr.bf16.mxu0 %v4667
  %5359 = vmatmul.mubr.bf16.gmra.mrb[0].mxu0 %v4666
  %v5360 = vpop.f32.mrb[0].mxu0
  %v5361 = vadd.f32 %v4261, %v5360
  %v5362 = vpop.f32.mrb[0].mxu0
  %v5363 = vpop.f32.mrb[0].mxu0
  %v5364 = vadd.f32 %v4261, %v5363
  %v5365 = vpop.f32.mrb[0].mxu0
  %5366 = vmatprep.mubr.bf16.mxu0 %v4676
  %5367 = vmatmul.mubr.bf16.gmra.mrb[0].mxu0 %v4675
  %v5368 = vpop.f32.mrb[0].mxu0
  %v5369 = vadd.f32 %v4261, %v5368
  %v5370 = vpop.f32.mrb[0].mxu0
  %v5371 = vpop.f32.mrb[0].mxu0
  %v5372 = vadd.f32 %v4261, %v5371
  %v5373 = vpop.f32.mrb[0].mxu0
  %5374 = vmatprep.mubr.bf16.mxu0 %v4685
  %5375 = vmatmul.mubr.bf16.gmra.mrb[0].mxu0 %v4684
  %v5376 = vpop.f32.mrb[0].mxu0
  %v5377 = vadd.f32 %v4261, %v5376
  %v5378 = vpop.f32.mrb[0].mxu0
  %v5379 = vpop.f32.mrb[0].mxu0
  %v5380 = vadd.f32 %v4261, %v5379
  %v5381 = vpop.f32.mrb[0].mxu0
  %5382 = vmatprep.mubr.bf16.mxu0 %v4694
  %5383 = vmatmul.mubr.bf16.gmra.mrb[0].mxu0 %v4693
  %v5384 = vpop.f32.mrb[0].mxu0
  %v5385 = vadd.f32 %v4261, %v5384
  %v5386 = vpop.f32.mrb[0].mxu0
  %v5387 = vpop.f32.mrb[0].mxu0
  %v5388 = vadd.f32 %v4261, %v5387
  %v5389 = vpop.f32.mrb[0].mxu0
  %5390 = vmatprep.mubr.bf16.mxu0 %v4703
  %5391 = vmatmul.mubr.bf16.gmra.mrb[0].mxu0 %v4702
  %v5392 = vpop.f32.mrb[0].mxu0
  %v5393 = vadd.f32 %v4261, %v5392
  %v5394 = vpop.f32.mrb[0].mxu0
  %v5395 = vpop.f32.mrb[0].mxu0
  %v5396 = vadd.f32 %v4261, %v5395
  %v5397 = vpop.f32.mrb[0].mxu0
  %5398 = vmatprep.mubr.bf16.mxu0 %v4712
  %5399 = vmatmul.mubr.bf16.gmra.mrb[0].mxu0 %v4711
  %v5400 = vpop.f32.mrb[0].mxu0
  %v5401 = vadd.f32 %v4261, %v5400
  %v5402 = vpop.f32.mrb[0].mxu0
  %v5403 = vpop.f32.mrb[0].mxu0
  %v5404 = vadd.f32 %v4261, %v5403
  %v5405 = vpop.f32.mrb[0].mxu0
  %5406 = vmatprep.mubr.bf16.mxu0 %v4721
  %5407 = vmatmul.mubr.bf16.gmra.mrb[0].mxu0 %v4720
  %v5408 = vpop.f32.mrb[0].mxu0
  %v5409 = vadd.f32 %v4261, %v5408
  %v5410 = vpop.f32.mrb[0].mxu0
  %v5411 = vpop.f32.mrb[0].mxu0
  %v5412 = vpop.f32.mrb[0].mxu0
  %5413 = vdwg.mxu0
  %5414 = vmatprep.subr.bf16.mxu0 0
  %5415 = vmatpush1.bf16.msra.mxu0 %v5150
  %5416 = vmatprep.subr.bf16.mxu0 0
  %5417 = vmatpush1.bf16.msra.mxu0 %v5151
  %5418 = vmatprep.subr.bf16.mxu0 0
  %5419 = vmatpush1.bf16.msra.mxu0 %v5152
  %5420 = vmatprep.subr.bf16.mxu0 0
  %5421 = vmatpush1.bf16.msra.mxu0 %v5153
  %5422 = vmatprep.subr.bf16.mxu0 0
  %5423 = vmatpush1.bf16.msra.mxu0 %v5154
  %5424 = vmatprep.subr.bf16.mxu0 0
  %5425 = vmatpush1.bf16.msra.mxu0 %v5155
  %5426 = vmatprep.subr.bf16.mxu0 0
  %5427 = vmatpush1.bf16.msra.mxu0 %v5156
  %5428 = vmatprep.subr.bf16.mxu0 0
  %5429 = vmatpush1.bf16.msra.mxu0 %v5157
  %5430 = vmatprep.subr.bf16.mxu0 0
  %5431 = vmatpush1.bf16.msra.mxu0 %v5158
  %5432 = vmatprep.subr.bf16.mxu0 0
  %5433 = vmatpush1.bf16.msra.mxu0 %v5159
  %5434 = vmatprep.subr.bf16.mxu0 0
  %5435 = vmatpush1.bf16.msra.mxu0 %v5160
  %5436 = vmatprep.subr.bf16.mxu0 0
  %5437 = vmatpush1.bf16.msra.mxu0 %v5161
  %5438 = vmatprep.subr.bf16.mxu0 0
  %5439 = vmatpush1.bf16.msra.mxu0 %v5162
  %5440 = vmatprep.subr.bf16.mxu0 0
  %5441 = vmatpush1.bf16.msra.mxu0 %v5163
  %5442 = vmatprep.subr.bf16.mxu0 0
  %5443 = vmatpush1.bf16.msra.mxu0 %v5164
  %5444 = vmatprep.subr.bf16.mxu0 0
  %5445 = vmatpush1.bf16.msra.mxu0 %v5165
  %5446 = vmatprep.mubr.bf16.mxu0 %v4615
  %5447 = vmatmul.mubr.bf16.gmra.mrb[0].mxu0 %v4614
  %v5448 = vpop.f32.mrb[0].mxu0
  %v5449 = vadd.f32 %v5313, %v5448
  %v5450 = vpop.f32.mrb[0].mxu0
  %v5451 = vpop.f32.mrb[0].mxu0
  %v5452 = vadd.f32 %v5316, %v5451
  %v5453 = vpop.f32.mrb[0].mxu0
  %5454 = vmatprep.mubr.bf16.mxu0 %v4624
  %5455 = vmatmul.mubr.bf16.gmra.mrb[0].mxu0 %v4623
  %v5456 = vpop.f32.mrb[0].mxu0
  %v5457 = vadd.f32 %v5321, %v5456
  %v5458 = vpop.f32.mrb[0].mxu0
  %v5459 = vpop.f32.mrb[0].mxu0
  %v5460 = vadd.f32 %v5324, %v5459
  %v5461 = vpop.f32.mrb[0].mxu0
  %5462 = vmatprep.mubr.bf16.mxu0 %v4633
  %5463 = vmatmul.mubr.bf16.gmra.mrb[0].mxu0 %v4632
  %v5464 = vpop.f32.mrb[0].mxu0
  %v5465 = vadd.f32 %v5329, %v5464
  %v5466 = vpop.f32.mrb[0].mxu0
  %v5467 = vpop.f32.mrb[0].mxu0
  %v5468 = vadd.f32 %v5332, %v5467
  %v5469 = vpop.f32.mrb[0].mxu0
  %5470 = vmatprep.mubr.bf16.mxu0 %v4642
  %5471 = vmatmul.mubr.bf16.gmra.mrb[0].mxu0 %v4641
  %v5472 = vpop.f32.mrb[0].mxu0
  %v5473 = vadd.f32 %v5337, %v5472
  %v5474 = vpop.f32.mrb[0].mxu0
  %v5475 = vpop.f32.mrb[0].mxu0
  %v5476 = vadd.f32 %v5340, %v5475
  %v5477 = vpop.f32.mrb[0].mxu0
  %5478 = vmatprep.mubr.bf16.mxu0 %v4651
  %5479 = vmatmul.mubr.bf16.gmra.mrb[0].mxu0 %v4650
  %v5480 = vpop.f32.mrb[0].mxu0
  %v5481 = vadd.f32 %v5345, %v5480
  %v5482 = vpop.f32.mrb[0].mxu0
  %v5483 = vpop.f32.mrb[0].mxu0
  %v5484 = vadd.f32 %v5348, %v5483
  %v5485 = vpop.f32.mrb[0].mxu0
  %5486 = vmatprep.mubr.bf16.mxu0 %v4660
  %5487 = vmatmul.mubr.bf16.gmra.mrb[0].mxu0 %v4659
  %v5488 = vpop.f32.mrb[0].mxu0
  %v5489 = vadd.f32 %v5353, %v5488
  %v5490 = vpop.f32.mrb[0].mxu0
  %v5491 = vpop.f32.mrb[0].mxu0
  %v5492 = vadd.f32 %v5356, %v5491
  %v5493 = vpop.f32.mrb[0].mxu0
  %5494 = vmatprep.mubr.bf16.mxu0 %v4669
  %5495 = vmatmul.mubr.bf16.gmra.mrb[0].mxu0 %v4668
  %v5496 = vpop.f32.mrb[0].mxu0
  %v5497 = vadd.f32 %v5361, %v5496
  %v5498 = vpop.f32.mrb[0].mxu0
  %v5499 = vpop.f32.mrb[0].mxu0
  %v5500 = vadd.f32 %v5364, %v5499
  %v5501 = vpop.f32.mrb[0].mxu0
  %5502 = vmatprep.mubr.bf16.mxu0 %v4678
  %5503 = vmatmul.mubr.bf16.gmra.mrb[0].mxu0 %v4677
  %v5504 = vpop.f32.mrb[0].mxu0
  %v5505 = vadd.f32 %v5369, %v5504
  %v5506 = vpop.f32.mrb[0].mxu0
  %v5507 = vpop.f32.mrb[0].mxu0
  %v5508 = vadd.f32 %v5372, %v5507
  %v5509 = vpop.f32.mrb[0].mxu0
  %5510 = vmatprep.mubr.bf16.mxu0 %v4687
  %5511 = vmatmul.mubr.bf16.gmra.mrb[0].mxu0 %v4686
  %v5512 = vpop.f32.mrb[0].mxu0
  %v5513 = vadd.f32 %v5377, %v5512
  %v5514 = vpop.f32.mrb[0].mxu0
  %v5515 = vpop.f32.mrb[0].mxu0
  %v5516 = vadd.f32 %v5380, %v5515
  %v5517 = vpop.f32.mrb[0].mxu0
  %5518 = vmatprep.mubr.bf16.mxu0 %v4696
  %5519 = vmatmul.mubr.bf16.gmra.mrb[0].mxu0 %v4695
  %v5520 = vpop.f32.mrb[0].mxu0
  %v5521 = vadd.f32 %v5385, %v5520
  %v5522 = vpop.f32.mrb[0].mxu0
  %v5523 = vpop.f32.mrb[0].mxu0
  %v5524 = vadd.f32 %v5388, %v5523
  %v5525 = vpop.f32.mrb[0].mxu0
  %5526 = vmatprep.mubr.bf16.mxu0 %v4705
  %5527 = vmatmul.mubr.bf16.gmra.mrb[0].mxu0 %v4704
  %v5528 = vpop.f32.mrb[0].mxu0
  %v5529 = vadd.f32 %v5393, %v5528
  %v5530 = vpop.f32.mrb[0].mxu0
  %v5531 = vpop.f32.mrb[0].mxu0
  %v5532 = vadd.f32 %v5396, %v5531
  %v5533 = vpop.f32.mrb[0].mxu0
  %5534 = vmatprep.mubr.bf16.mxu0 %v4714
  %5535 = vmatmul.mubr.bf16.gmra.mrb[0].mxu0 %v4713
  %v5536 = vpop.f32.mrb[0].mxu0
  %v5537 = vadd.f32 %v5401, %v5536
  %v5538 = vpop.f32.mrb[0].mxu0
  %v5539 = vpop.f32.mrb[0].mxu0
  %v5540 = vadd.f32 %v5404, %v5539
  %v5541 = vpop.f32.mrb[0].mxu0
  %5542 = vmatprep.mubr.bf16.mxu0 %v4723
  %5543 = vmatmul.mubr.bf16.gmra.mrb[0].mxu0 %v4722
  %v5544 = vpop.f32.mrb[0].mxu0
  %v5545 = vadd.f32 %v5409, %v5544
  %v5546 = vpop.f32.mrb[0].mxu0
  %v5547 = vpop.f32.mrb[0].mxu0
  %v5548 = vpop.f32.mrb[0].mxu0
  %5549 = vdwg.mxu0
  %5550 = vmatprep.subr.bf16.mxu0 0
  %5551 = vmatpush1.bf16.msra.mxu0 %v5166
  %5552 = vmatprep.subr.bf16.mxu0 0
  %5553 = vmatpush1.bf16.msra.mxu0 %v5167
  %5554 = vmatprep.subr.bf16.mxu0 0
  %5555 = vmatpush1.bf16.msra.mxu0 %v5168
  %5556 = vmatprep.subr.bf16.mxu0 0
  %5557 = vmatpush1.bf16.msra.mxu0 %v5169
  %5558 = vmatprep.subr.bf16.mxu0 0
  %5559 = vmatpush1.bf16.msra.mxu0 %v5170
  %5560 = vmatprep.subr.bf16.mxu0 0
  %5561 = vmatpush1.bf16.msra.mxu0 %v5171
  %5562 = vmatprep.subr.bf16.mxu0 0
  %5563 = vmatpush1.bf16.msra.mxu0 %v5172
  %5564 = vmatprep.subr.bf16.mxu0 0
  %5565 = vmatpush1.bf16.msra.mxu0 %v5173
  %5566 = vmatprep.subr.bf16.mxu0 0
  %5567 = vmatpush1.bf16.msra.mxu0 %v5174
  %5568 = vmatprep.subr.bf16.mxu0 0
  %5569 = vmatpush1.bf16.msra.mxu0 %v5175
  %5570 = vmatprep.subr.bf16.mxu0 0
  %5571 = vmatpush1.bf16.msra.mxu0 %v5176
  %5572 = vmatprep.subr.bf16.mxu0 0
  %5573 = vmatpush1.bf16.msra.mxu0 %v5177
  %5574 = vmatprep.subr.bf16.mxu0 0
  %5575 = vmatpush1.bf16.msra.mxu0 %v5178
  %5576 = vmatprep.subr.bf16.mxu0 0
  %5577 = vmatpush1.bf16.msra.mxu0 %v5179
  %5578 = vmatprep.subr.bf16.mxu0 0
  %5579 = vmatpush1.bf16.msra.mxu0 %v5180
  %5580 = vmatprep.subr.bf16.mxu0 0
  %5581 = vmatpush1.bf16.msra.mxu0 %v5181
  %5582 = vmatprep.mubr.bf16.mxu0 %v4617
  %5583 = vmatmul.mubr.bf16.gmra.mrb[0].mxu0 %v4616
  %v5584 = vpop.f32.mrb[0].mxu0
  %v5585 = vadd.f32 %v5449, %v5584
  %v5586 = vpop.f32.mrb[0].mxu0
  %v5587 = vpop.f32.mrb[0].mxu0
  %v5588 = vadd.f32 %v5452, %v5587
  %v5589 = vpop.f32.mrb[0].mxu0
  %5590 = vmatprep.mubr.bf16.mxu0 %v4626
  %5591 = vmatmul.mubr.bf16.gmra.mrb[0].mxu0 %v4625
  %v5592 = vpop.f32.mrb[0].mxu0
  %v5593 = vadd.f32 %v5457, %v5592
  %v5594 = vpop.f32.mrb[0].mxu0
  %v5595 = vpop.f32.mrb[0].mxu0
  %v5596 = vadd.f32 %v5460, %v5595
  %v5597 = vpop.f32.mrb[0].mxu0
  %5598 = vmatprep.mubr.bf16.mxu0 %v4635
  %5599 = vmatmul.mubr.bf16.gmra.mrb[0].mxu0 %v4634
  %v5600 = vpop.f32.mrb[0].mxu0
  %v5601 = vadd.f32 %v5465, %v5600
  %v5602 = vpop.f32.mrb[0].mxu0
  %v5603 = vpop.f32.mrb[0].mxu0
  %v5604 = vadd.f32 %v5468, %v5603
  %v5605 = vpop.f32.mrb[0].mxu0
  %5606 = vmatprep.mubr.bf16.mxu0 %v4644
  %5607 = vmatmul.mubr.bf16.gmra.mrb[0].mxu0 %v4643
  %v5608 = vpop.f32.mrb[0].mxu0
  %v5609 = vadd.f32 %v5473, %v5608
  %v5610 = vpop.f32.mrb[0].mxu0
  %v5611 = vpop.f32.mrb[0].mxu0
  %v5612 = vadd.f32 %v5476, %v5611
  %v5613 = vpop.f32.mrb[0].mxu0
  %5614 = vmatprep.mubr.bf16.mxu0 %v4653
  %5615 = vmatmul.mubr.bf16.gmra.mrb[0].mxu0 %v4652
  %v5616 = vpop.f32.mrb[0].mxu0
  %v5617 = vadd.f32 %v5481, %v5616
  %v5618 = vpop.f32.mrb[0].mxu0
  %v5619 = vpop.f32.mrb[0].mxu0
  %v5620 = vadd.f32 %v5484, %v5619
  %v5621 = vpop.f32.mrb[0].mxu0
  %5622 = vmatprep.mubr.bf16.mxu0 %v4662
  %5623 = vmatmul.mubr.bf16.gmra.mrb[0].mxu0 %v4661
  %v5624 = vpop.f32.mrb[0].mxu0
  %v5625 = vadd.f32 %v5489, %v5624
  %v5626 = vpop.f32.mrb[0].mxu0
  %v5627 = vpop.f32.mrb[0].mxu0
  %v5628 = vadd.f32 %v5492, %v5627
  %v5629 = vpop.f32.mrb[0].mxu0
  %5630 = vmatprep.mubr.bf16.mxu0 %v4671
  %5631 = vmatmul.mubr.bf16.gmra.mrb[0].mxu0 %v4670
  %v5632 = vpop.f32.mrb[0].mxu0
  %v5633 = vadd.f32 %v5497, %v5632
  %v5634 = vpop.f32.mrb[0].mxu0
  %v5635 = vpop.f32.mrb[0].mxu0
  %v5636 = vadd.f32 %v5500, %v5635
  %v5637 = vpop.f32.mrb[0].mxu0
  %5638 = vmatprep.mubr.bf16.mxu0 %v4680
  %5639 = vmatmul.mubr.bf16.gmra.mrb[0].mxu0 %v4679
  %v5640 = vpop.f32.mrb[0].mxu0
  %v5641 = vadd.f32 %v5505, %v5640
  %v5642 = vpop.f32.mrb[0].mxu0
  %v5643 = vpop.f32.mrb[0].mxu0
  %v5644 = vadd.f32 %v5508, %v5643
  %v5645 = vpop.f32.mrb[0].mxu0
  %5646 = vmatprep.mubr.bf16.mxu0 %v4689
  %5647 = vmatmul.mubr.bf16.gmra.mrb[0].mxu0 %v4688
  %v5648 = vpop.f32.mrb[0].mxu0
  %v5649 = vadd.f32 %v5513, %v5648
  %v5650 = vpop.f32.mrb[0].mxu0
  %v5651 = vpop.f32.mrb[0].mxu0
  %v5652 = vadd.f32 %v5516, %v5651
  %v5653 = vpop.f32.mrb[0].mxu0
  %5654 = vmatprep.mubr.bf16.mxu0 %v4698
  %5655 = vmatmul.mubr.bf16.gmra.mrb[0].mxu0 %v4697
  %v5656 = vpop.f32.mrb[0].mxu0
  %v5657 = vadd.f32 %v5521, %v5656
  %v5658 = vpop.f32.mrb[0].mxu0
  %v5659 = vpop.f32.mrb[0].mxu0
  %v5660 = vadd.f32 %v5524, %v5659
  %v5661 = vpop.f32.mrb[0].mxu0
  %5662 = vmatprep.mubr.bf16.mxu0 %v4707
  %5663 = vmatmul.mubr.bf16.gmra.mrb[0].mxu0 %v4706
  %v5664 = vpop.f32.mrb[0].mxu0
  %v5665 = vadd.f32 %v5529, %v5664
  %v5666 = vpop.f32.mrb[0].mxu0
  %v5667 = vpop.f32.mrb[0].mxu0
  %v5668 = vadd.f32 %v5532, %v5667
  %v5669 = vpop.f32.mrb[0].mxu0
  %5670 = vmatprep.mubr.bf16.mxu0 %v4716
  %5671 = vmatmul.mubr.bf16.gmra.mrb[0].mxu0 %v4715
  %v5672 = vpop.f32.mrb[0].mxu0
  %v5673 = vadd.f32 %v5537, %v5672
  %v5674 = vpop.f32.mrb[0].mxu0
  %v5675 = vpop.f32.mrb[0].mxu0
  %v5676 = vadd.f32 %v5540, %v5675
  %v5677 = vpop.f32.mrb[0].mxu0
  %5678 = vmatprep.mubr.bf16.mxu0 %v4725
  %5679 = vmatmul.mubr.bf16.gmra.mrb[0].mxu0 %v4724
  %v5680 = vpop.f32.mrb[0].mxu0
  %v5681 = vadd.f32 %v5545, %v5680
  %v5682 = vpop.f32.mrb[0].mxu0
  %v5683 = vpop.f32.mrb[0].mxu0
  %v5684 = vpop.f32.mrb[0].mxu0
  %5685 = vdwg.mxu0
  %5686 = vmatprep.subr.bf16.mxu0 0
  %5687 = vmatpush1.bf16.msra.mxu0 %v5182
  %5688 = vmatprep.subr.bf16.mxu0 0
  %5689 = vmatpush1.bf16.msra.mxu0 %v5183
  %5690 = vmatprep.subr.bf16.mxu0 0
  %5691 = vmatpush1.bf16.msra.mxu0 %v5184
  %5692 = vmatprep.subr.bf16.mxu0 0
  %5693 = vmatpush1.bf16.msra.mxu0 %v5185
  %5694 = vmatprep.subr.bf16.mxu0 0
  %5695 = vmatpush1.bf16.msra.mxu0 %v5186
  %5696 = vmatprep.subr.bf16.mxu0 0
  %5697 = vmatpush1.bf16.msra.mxu0 %v5187
  %5698 = vmatprep.subr.bf16.mxu0 0
  %5699 = vmatpush1.bf16.msra.mxu0 %v5188
  %5700 = vmatprep.subr.bf16.mxu0 0
  %5701 = vmatpush1.bf16.msra.mxu0 %v5189
  %5702 = vmatprep.subr.bf16.mxu0 0
  %5703 = vmatpush1.bf16.msra.mxu0 %v5190
  %5704 = vmatprep.subr.bf16.mxu0 0
  %5705 = vmatpush1.bf16.msra.mxu0 %v5191
  %5706 = vmatprep.subr.bf16.mxu0 0
  %5707 = vmatpush1.bf16.msra.mxu0 %v5192
  %5708 = vmatprep.subr.bf16.mxu0 0
  %5709 = vmatpush1.bf16.msra.mxu0 %v5193
  %5710 = vmatprep.subr.bf16.mxu0 0
  %5711 = vmatpush1.bf16.msra.mxu0 %v5194
  %5712 = vmatprep.subr.bf16.mxu0 0
  %5713 = vmatpush1.bf16.msra.mxu0 %v5195
  %5714 = vmatprep.subr.bf16.mxu0 0
  %5715 = vmatpush1.bf16.msra.mxu0 %v5196
  %5716 = vmatprep.subr.bf16.mxu0 0
  %5717 = vmatpush1.bf16.msra.mxu0 %v5197
  %5718 = vmatprep.mubr.bf16.mxu0 %v4619
  %5719 = vmatmul.mubr.bf16.gmra.mrb[0].mxu0 %v4618
  %v5720 = vpop.f32.mrb[0].mxu0
  %v5721 = vadd.f32 %v5585, %v5720
  %v5722 = vpop.f32.mrb[0].mxu0
  %v5723 = vpop.f32.mrb[0].mxu0
  %v5724 = vadd.f32 %v5588, %v5723
  %v5725 = vpop.f32.mrb[0].mxu0
  %5726 = vmatprep.mubr.bf16.mxu0 %v4628
  %5727 = vmatmul.mubr.bf16.gmra.mrb[0].mxu0 %v4627
  %v5728 = vpop.f32.mrb[0].mxu0
  %v5729 = vadd.f32 %v5593, %v5728
  %v5730 = vpop.f32.mrb[0].mxu0
  %v5731 = vpop.f32.mrb[0].mxu0
  %v5732 = vadd.f32 %v5596, %v5731
  %v5733 = vpop.f32.mrb[0].mxu0
  %5734 = vmatprep.mubr.bf16.mxu0 %v4637
  %5735 = vmatmul.mubr.bf16.gmra.mrb[0].mxu0 %v4636
  %v5736 = vpop.f32.mrb[0].mxu0
  %v5737 = vadd.f32 %v5601, %v5736
  %v5738 = vpop.f32.mrb[0].mxu0
  %v5739 = vpop.f32.mrb[0].mxu0
  %v5740 = vadd.f32 %v5604, %v5739
  %v5741 = vpop.f32.mrb[0].mxu0
  %5742 = vmatprep.mubr.bf16.mxu0 %v4646
  %5743 = vmatmul.mubr.bf16.gmra.mrb[0].mxu0 %v4645
  %v5744 = vpop.f32.mrb[0].mxu0
  %v5745 = vadd.f32 %v5609, %v5744
  %v5746 = vpop.f32.mrb[0].mxu0
  %v5747 = vpop.f32.mrb[0].mxu0
  %v5748 = vadd.f32 %v5612, %v5747
  %v5749 = vpop.f32.mrb[0].mxu0
  %5750 = vmatprep.mubr.bf16.mxu0 %v4655
  %5751 = vmatmul.mubr.bf16.gmra.mrb[0].mxu0 %v4654
  %v5752 = vpop.f32.mrb[0].mxu0
  %v5753 = vadd.f32 %v5617, %v5752
  %v5754 = vpop.f32.mrb[0].mxu0
  %v5755 = vpop.f32.mrb[0].mxu0
  %v5756 = vadd.f32 %v5620, %v5755
  %v5757 = vpop.f32.mrb[0].mxu0
  %5758 = vmatprep.mubr.bf16.mxu0 %v4664
  %5759 = vmatmul.mubr.bf16.gmra.mrb[0].mxu0 %v4663
  %v5760 = vpop.f32.mrb[0].mxu0
  %v5761 = vadd.f32 %v5625, %v5760
  %v5762 = vpop.f32.mrb[0].mxu0
  %v5763 = vpop.f32.mrb[0].mxu0
  %v5764 = vadd.f32 %v5628, %v5763
  %v5765 = vpop.f32.mrb[0].mxu0
  %5766 = vmatprep.mubr.bf16.mxu0 %v4673
  %5767 = vmatmul.mubr.bf16.gmra.mrb[0].mxu0 %v4672
  %v5768 = vpop.f32.mrb[0].mxu0
  %v5769 = vadd.f32 %v5633, %v5768
  %v5770 = vpop.f32.mrb[0].mxu0
  %v5771 = vpop.f32.mrb[0].mxu0
  %v5772 = vadd.f32 %v5636, %v5771
  %v5773 = vpop.f32.mrb[0].mxu0
  %5774 = vmatprep.mubr.bf16.mxu0 %v4682
  %5775 = vmatmul.mubr.bf16.gmra.mrb[0].mxu0 %v4681
  %v5776 = vpop.f32.mrb[0].mxu0
  %v5777 = vadd.f32 %v5641, %v5776
  %v5778 = vpop.f32.mrb[0].mxu0
  %v5779 = vpop.f32.mrb[0].mxu0
  %v5780 = vadd.f32 %v5644, %v5779
  %v5781 = vpop.f32.mrb[0].mxu0
  %5782 = vmatprep.mubr.bf16.mxu0 %v4691
  %5783 = vmatmul.mubr.bf16.gmra.mrb[0].mxu0 %v4690
  %v5784 = vpop.f32.mrb[0].mxu0
  %v5785 = vadd.f32 %v5649, %v5784
  %v5786 = vpop.f32.mrb[0].mxu0
  %v5787 = vpop.f32.mrb[0].mxu0
  %v5788 = vadd.f32 %v5652, %v5787
  %v5789 = vpop.f32.mrb[0].mxu0
  %5790 = vmatprep.mubr.bf16.mxu0 %v4700
  %5791 = vmatmul.mubr.bf16.gmra.mrb[0].mxu0 %v4699
  %v5792 = vpop.f32.mrb[0].mxu0
  %v5793 = vadd.f32 %v5657, %v5792
  %v5794 = vpop.f32.mrb[0].mxu0
  %v5795 = vpop.f32.mrb[0].mxu0
  %v5796 = vadd.f32 %v5660, %v5795
  %v5797 = vpop.f32.mrb[0].mxu0
  %5798 = vmatprep.mubr.bf16.mxu0 %v4709
  %5799 = vmatmul.mubr.bf16.gmra.mrb[0].mxu0 %v4708
  %v5800 = vpop.f32.mrb[0].mxu0
  %v5801 = vadd.f32 %v5665, %v5800
  %v5802 = vpop.f32.mrb[0].mxu0
  %v5803 = vpop.f32.mrb[0].mxu0
  %v5804 = vadd.f32 %v5668, %v5803
  %v5805 = vpop.f32.mrb[0].mxu0
  %5806 = vmatprep.mubr.bf16.mxu0 %v4718
  %5807 = vmatmul.mubr.bf16.gmra.mrb[0].mxu0 %v4717
  %v5808 = vpop.f32.mrb[0].mxu0
  %v5809 = vadd.f32 %v5673, %v5808
  %v5810 = vpop.f32.mrb[0].mxu0
  %v5811 = vpop.f32.mrb[0].mxu0
  %v5812 = vadd.f32 %v5676, %v5811
  %v5813 = vpop.f32.mrb[0].mxu0
  %5814 = vmatprep.mubr.bf16.mxu0 %v4727
  %5815 = vmatmul.mubr.bf16.gmra.mrb[0].mxu0 %v4726
  %v5816 = vpop.f32.mrb[0].mxu0
  %v5817 = vadd.f32 %v5681, %v5816
  %v5818 = vpop.f32.mrb[0].mxu0
  %v5819 = vpop.f32.mrb[0].mxu0
  %v5820 = vpop.f32.mrb[0].mxu0
  %5821 = vdwg.mxu0
  %5822 = vmatprep.subr.bf16.mxu0 0
  %5823 = vmatpush1.bf16.msra.mxu0 %v5198
  %5824 = vmatprep.subr.bf16.mxu0 0
  %5825 = vmatpush1.bf16.msra.mxu0 %v5199
  %5826 = vmatprep.subr.bf16.mxu0 0
  %5827 = vmatpush1.bf16.msra.mxu0 %v5200
  %5828 = vmatprep.subr.bf16.mxu0 0
  %5829 = vmatpush1.bf16.msra.mxu0 %v5201
  %5830 = vmatprep.subr.bf16.mxu0 0
  %5831 = vmatpush1.bf16.msra.mxu0 %v5202
  %5832 = vmatprep.subr.bf16.mxu0 0
  %5833 = vmatpush1.bf16.msra.mxu0 %v5203
  %5834 = vmatprep.subr.bf16.mxu0 0
  %5835 = vmatpush1.bf16.msra.mxu0 %v5204
  %5836 = vmatprep.subr.bf16.mxu0 0
  %5837 = vmatpush1.bf16.msra.mxu0 %v5205
  %5838 = vmatprep.subr.bf16.mxu0 0
  %5839 = vmatpush1.bf16.msra.mxu0 0
  %5840 = vmatprep.subr.bf16.mxu0 0
  %5841 = vmatpush1.bf16.msra.mxu0 0
  %5842 = vmatprep.subr.bf16.mxu0 0
  %5843 = vmatpush1.bf16.msra.mxu0 0
  %5844 = vmatprep.subr.bf16.mxu0 0
  %5845 = vmatpush1.bf16.msra.mxu0 0
  %5846 = vmatprep.subr.bf16.mxu0 0
  %5847 = vmatpush1.bf16.msra.mxu0 0
  %5848 = vmatprep.subr.bf16.mxu0 0
  %5849 = vmatpush1.bf16.msra.mxu0 0
  %5850 = vmatprep.subr.bf16.mxu0 0
  %5851 = vmatpush1.bf16.msra.mxu0 0
  %5852 = vmatprep.subr.bf16.mxu0 0
  %5853 = vmatpush1.bf16.msra.mxu0 0
  %5854 = vmatprep.mubr.bf16.mxu0 0
  %5855 = vmatmul.mubr.bf16.gmra.mrb[0].mxu0 %v4620
  %v5856 = vpop.f32.mrb[0].mxu0
  %v5857 = vadd.f32 %v5721, %v5856
  %v5858 = vpop.f32.mrb[0].mxu0
  %v5859 = vpop.f32.mrb[0].mxu0
  %v5860 = vadd.f32 %v5724, %v5859
  %v5861 = vpop.f32.mrb[0].mxu0
  %5862 = vmatprep.mubr.bf16.mxu0 0
  %5863 = vmatmul.mubr.bf16.gmra.mrb[0].mxu0 %v4629
  %v5864 = vpop.f32.mrb[0].mxu0
  %v5865 = vadd.f32 %v5729, %v5864
  %v5866 = vpop.f32.mrb[0].mxu0
  %v5867 = vpop.f32.mrb[0].mxu0
  %v5868 = vadd.f32 %v5732, %v5867
  %v5869 = vpop.f32.mrb[0].mxu0
  %5870 = vmatprep.mubr.bf16.mxu0 0
  %5871 = vmatmul.mubr.bf16.gmra.mrb[0].mxu0 %v4638
  %v5872 = vpop.f32.mrb[0].mxu0
  %v5873 = vadd.f32 %v5737, %v5872
  %v5874 = vpop.f32.mrb[0].mxu0
  %v5875 = vpop.f32.mrb[0].mxu0
  %v5876 = vadd.f32 %v5740, %v5875
  %v5877 = vpop.f32.mrb[0].mxu0
  %5878 = vmatprep.mubr.bf16.mxu0 0
  %5879 = vmatmul.mubr.bf16.gmra.mrb[0].mxu0 %v4647
  %v5880 = vpop.f32.mrb[0].mxu0
  %v5881 = vadd.f32 %v5745, %v5880
  %v5882 = vpop.f32.mrb[0].mxu0
  %v5883 = vpop.f32.mrb[0].mxu0
  %v5884 = vadd.f32 %v5748, %v5883
  %v5885 = vpop.f32.mrb[0].mxu0
  %5886 = vmatprep.mubr.bf16.mxu0 0
  %5887 = vmatmul.mubr.bf16.gmra.mrb[0].mxu0 %v4656
  %v5888 = vpop.f32.mrb[0].mxu0
  %v5889 = vadd.f32 %v5753, %v5888
  %v5890 = vpop.f32.mrb[0].mxu0
  %v5891 = vpop.f32.mrb[0].mxu0
  %v5892 = vadd.f32 %v5756, %v5891
  %v5893 = vpop.f32.mrb[0].mxu0
  %5894 = vmatprep.mubr.bf16.mxu0 0
  %5895 = vmatmul.mubr.bf16.gmra.mrb[0].mxu0 %v4665
  %v5896 = vpop.f32.mrb[0].mxu0
  %v5897 = vadd.f32 %v5761, %v5896
  %v5898 = vpop.f32.mrb[0].mxu0
  %v5899 = vpop.f32.mrb[0].mxu0
  %v5900 = vadd.f32 %v5764, %v5899
  %v5901 = vpop.f32.mrb[0].mxu0
  %5902 = vmatprep.mubr.bf16.mxu0 0
  %5903 = vmatmul.mubr.bf16.gmra.mrb[0].mxu0 %v4674
  %v5904 = vpop.f32.mrb[0].mxu0
  %v5905 = vadd.f32 %v5769, %v5904
  %v5906 = vpop.f32.mrb[0].mxu0
  %v5907 = vpop.f32.mrb[0].mxu0
  %v5908 = vadd.f32 %v5772, %v5907
  %v5909 = vpop.f32.mrb[0].mxu0
  %5910 = vmatprep.mubr.bf16.mxu0 0
  %5911 = vmatmul.mubr.bf16.gmra.mrb[0].mxu0 %v4683
  %v5912 = vpop.f32.mrb[0].mxu0
  %v5913 = vadd.f32 %v5777, %v5912
  %v5914 = vpop.f32.mrb[0].mxu0
  %v5915 = vpop.f32.mrb[0].mxu0
  %v5916 = vadd.f32 %v5780, %v5915
  %v5917 = vpop.f32.mrb[0].mxu0
  %5918 = vmatprep.mubr.bf16.mxu0 0
  %5919 = vmatmul.mubr.bf16.gmra.mrb[0].mxu0 %v4692
  %v5920 = vpop.f32.mrb[0].mxu0
  %v5921 = vadd.f32 %v5785, %v5920
  %v5922 = vpop.f32.mrb[0].mxu0
  %v5923 = vpop.f32.mrb[0].mxu0
  %v5924 = vadd.f32 %v5788, %v5923
  %v5925 = vpop.f32.mrb[0].mxu0
  %5926 = vmatprep.mubr.bf16.mxu0 0
  %5927 = vmatmul.mubr.bf16.gmra.mrb[0].mxu0 %v4701
  %v5928 = vpop.f32.mrb[0].mxu0
  %v5929 = vadd.f32 %v5793, %v5928
  %v5930 = vpop.f32.mrb[0].mxu0
  %v5931 = vpop.f32.mrb[0].mxu0
  %v5932 = vadd.f32 %v5796, %v5931
  %v5933 = vpop.f32.mrb[0].mxu0
  %5934 = vmatprep.mubr.bf16.mxu0 0
  %5935 = vmatmul.mubr.bf16.gmra.mrb[0].mxu0 %v4710
  %v5936 = vpop.f32.mrb[0].mxu0
  %v5937 = vadd.f32 %v5801, %v5936
  %v5938 = vpop.f32.mrb[0].mxu0
  %v5939 = vpop.f32.mrb[0].mxu0
  %v5940 = vadd.f32 %v5804, %v5939
  %v5941 = vpop.f32.mrb[0].mxu0
  %5942 = vmatprep.mubr.bf16.mxu0 0
  %5943 = vmatmul.mubr.bf16.gmra.mrb[0].mxu0 %v4719
  %v5944 = vpop.f32.mrb[0].mxu0
  %v5945 = vadd.f32 %v5809, %v5944
  %v5946 = vpop.f32.mrb[0].mxu0
  %v5947 = vpop.f32.mrb[0].mxu0
  %v5948 = vadd.f32 %v5812, %v5947
  %v5949 = vpop.f32.mrb[0].mxu0
  %5950 = vmatprep.mubr.bf16.mxu0 0
  %5951 = vmatmul.mubr.bf16.gmra.mrb[0].mxu0 %v4728
  %v5952 = vpop.f32.mrb[0].mxu0
  %v5953 = vadd.f32 %v5817, %v5952
  %v5954 = vpop.f32.mrb[0].mxu0
  %v5955 = vpop.f32.mrb[0].mxu0
  %v5956 = vpop.f32.mrb[0].mxu0
  %5957 = vdwg.mxu0
  %v5958 = vmax.f32 %v5857, 0.0
  %v5959 = vmax.f32 %v5860, 0.0
  %v5960 = vmax.f32 %v5865, 0.0
  %v5961 = vmax.f32 %v5868, 0.0
  %v5962 = vmax.f32 %v5873, 0.0
  %v5963 = vmax.f32 %v5876, 0.0
  %v5964 = vmax.f32 %v5881, 0.0
  %v5965 = vmax.f32 %v5884, 0.0
  %v5966 = vmax.f32 %v5889, 0.0
  %v5967 = vmax.f32 %v5892, 0.0
  %v5968 = vmax.f32 %v5897, 0.0
  %v5969 = vmax.f32 %v5900, 0.0
  %v5970 = vmax.f32 %v5905, 0.0
  %v5971 = vmax.f32 %v5908, 0.0
  %v5972 = vmax.f32 %v5913, 0.0
  %v5973 = vmax.f32 %v5916, 0.0
  %v5974 = vmax.f32 %v5921, 0.0
  %v5975 = vmax.f32 %v5924, 0.0
  %v5976 = vmax.f32 %v5929, 0.0
  %v5977 = vmax.f32 %v5932, 0.0
  %v5978 = vmax.f32 %v5937, 0.0
  %v5979 = vmax.f32 %v5940, 0.0
  %v5980 = vmax.f32 %v5945, 0.0
  %v5981 = vmax.f32 %v5948, 0.0
  %v5982 = vmax.f32 %v5953, 0.0
  %v5983 = vadd.f32 %v1563, %v5958
  %v5984 = vadd.f32 %v1566, %v5959
  %v5985 = vadd.f32 %v1571, %v5960
  %v5986 = vadd.f32 %v1574, %v5961
  %v5987 = vadd.f32 %v1579, %v5962
  %v5988 = vadd.f32 %v1582, %v5963
  %v5989 = vadd.f32 %v1587, %v5964
  %v5990 = vadd.f32 %v1590, %v5965
  %v5991 = vadd.f32 %v1595, %v5966
  %v5992 = vadd.f32 %v1598, %v5967
  %v5993 = vadd.f32 %v1603, %v5968
  %v5994 = vadd.f32 %v1606, %v5969
  %v5995 = vadd.f32 %v1611, %v5970
  %v5996 = vadd.f32 %v1614, %v5971
  %v5997 = vadd.f32 %v1619, %v5972
  %v5998 = vadd.f32 %v1622, %v5973
  %v5999 = vadd.f32 %v1627, %v5974
  %v6000 = vadd.f32 %v1630, %v5975
  %v6001 = vadd.f32 %v1635, %v5976
  %v6002 = vadd.f32 %v1638, %v5977
  %v6003 = vadd.f32 %v1643, %v5978
  %v6004 = vadd.f32 %v1646, %v5979
  %v6005 = vadd.f32 %v1651, %v5980
  %v6006 = vadd.f32 %v1654, %v5981
  %v6007 = vadd.f32 %v1659, %v5982
  %6008 = vst [vmem:[%s6] sm:$0xff] %v5983
  %6009 = vst [vmem:[%s6 + $0x8] sm:$0xff] %v5984
  %6010 = vst [vmem:[%s6 + $0x10] sm:$0xff] %v5985
  %6011 = vst [vmem:[%s6 + $0x18] sm:$0xff] %v5986
  %6012 = vst [vmem:[%s6 + $0x20] sm:$0xff] %v5987
  %6013 = vst [vmem:[%s6 + $0x28] sm:$0xff] %v5988
  %6014 = vst [vmem:[%s6 + $0x30] sm:$0xff] %v5989
  %6015 = vst [vmem:[%s6 + $0x38] sm:$0xff] %v5990
  %6016 = vst [vmem:[%s6 + $0x40] sm:$0xff] %v5991
  %6017 = vst [vmem:[%s6 + $0x48] sm:$0xff] %v5992
  %6018 = vst [vmem:[%s6 + $0x50] sm:$0xff] %v5993
  %6019 = vst [vmem:[%s6 + $0x58] sm:$0xff] %v5994
  %6020 = vst [vmem:[%s6 + $0x60] sm:$0xff] %v5995
  %6021 = vst [vmem:[%s6 + $0x68] sm:$0xff] %v5996
  %6022 = vst [vmem:[%s6 + $0x70] sm:$0xff] %v5997
  %6023 = vst [vmem:[%s6 + $0x78] sm:$0xff] %v5998
  %6024 = vst [vmem:[%s6 + $0x80] sm:$0xff] %v5999
  %6025 = vst [vmem:[%s6 + $0x88] sm:$0xff] %v6000
  %6026 = vst [vmem:[%s6 + $0x90] sm:$0xff] %v6001
  %6027 = vst [vmem:[%s6 + $0x98] sm:$0xff] %v6002
  %6028 = vst [vmem:[%s6 + $0xa0] sm:$0xff] %v6003
  %6029 = vst [vmem:[%s6 + $0xa8] sm:$0xff] %v6004
  %6030 = vst [vmem:[%s6 + $0xb0] sm:$0xff] %v6005
  %6031 = vst [vmem:[%s6 + $0xb8] sm:$0xff] %v6006
  %6032 = vst [vmem:[%s6 + $0xc0] sm:$0xff] %v6007
  // Predicated region
  $region26: #{dimnet_forward.1} parent=0 // pred_check
    _
  $region27: #{dimnet_forward.1} parent=0 // pred_check_branch
    %6034 = sbr.rel (0) target = $region29
  $region28: #{dimnet_forward.1} parent=0 // pred_region
    _
  $region29: #{dimnet_forward.1} parent=0 // pred_fallthru
    _
  // Predicated region
  $region30: #{dimnet_forward.1} parent=0 // pred_check
    _
  $region31: #{dimnet_forward.1} parent=0 // pred_check_branch
    %6036 = sbr.rel (0) target = $region33
  $region32: #{dimnet_forward.1} parent=0 // pred_region
    _
  $region33: #{dimnet_forward.1} parent=0 // pred_fallthru
    _

</llo_original>
